<compile_context>
chip_gen: v7x
topology: tpu7x:2x2x1
jax: 0.10.0
libtpu: 0.0.40
codegen_flags: <defaults>
</compile_context>

<pallas_src>
import jax
import jax.numpy as jnp
from jax.experimental import pallas as pl
from jax.experimental.pallas import tpu as pltpu


_VMEM_LIMIT = 32 * 1024 * 1024  # explicit; safe on v5e/v6e/v7x scoped budgets


def _round_up(a, b):
    return pl.cdiv(a, b) * b


# ----------------------------------------------------------------------------
# Fused MLP kernel: split first Linear over concatenated inputs, ReLU stack,
# optional GroupNorm(1, C) (== per-row layer-norm over channels), optional
# fused residual add with one of the inputs.
# ----------------------------------------------------------------------------
def _make_mlp_kernel(n_inputs, n_linear, layer_norm, residual_index):
    def kernel(*refs):
        out_ref = refs[-1]
        idx = 0
        xs = [refs[idx + i] for i in range(n_inputs)]
        idx += n_inputs

        # First linear: h = sum_i x_i @ W1_i + b1   (avoids HBM concat)
        h = None
        for i in range(n_inputs):
            w = refs[idx][...]                       # bf16 (d_i, h)
            idx += 1
            part = jnp.dot(xs[i][...].astype(jnp.bfloat16), w,
                           preferred_element_type=jnp.float32)
            h = part if h is None else h + part
        h = h + refs[idx][...]                       # f32 bias (1, h)
        idx += 1
        h = jnp.maximum(h, 0.0)

        # Remaining linears; ReLU after all but the last.
        for l in range(1, n_linear):
            w = refs[idx][...]
            b = refs[idx + 1][...]
            idx += 2
            h = jnp.dot(h.astype(jnp.bfloat16), w,
                        preferred_element_type=jnp.float32) + b
            if l < n_linear - 1:
                h = jnp.maximum(h, 0.0)

        if layer_norm:  # GroupNorm(1, C): per-row stats over all channels, f32
            gw = refs[idx][...]
            gb = refs[idx + 1][...]
            idx += 2
            mean = jnp.mean(h, axis=-1, keepdims=True)
            var = jnp.mean((h - mean) ** 2, axis=-1, keepdims=True)
            h = (h - mean) * jax.lax.rsqrt(var + 1e-5) * gw + gb

        if residual_index is not None:               # fused residual add
            h = h + xs[residual_index][...].astype(jnp.float32)

        out_ref[...] = h.astype(out_ref.dtype)

    return kernel


def mlp_forward(inputs, params, *, residual_index=None, tile=1024):
    """Applies the fused MLP to the (implicit) concatenation of `inputs`.

    inputs: list of [rows, d_i] arrays sharing the same row count.
    residual_index: if not None, output += inputs[residual_index].
    """
    ws, bs, gn = params["Ws"], params["bs"], params["gn"]
    n_rows = inputs[0].shape[0]
    out_dim = ws[-1].shape[1]
    in_dims = [int(a.shape[1]) for a in inputs]
    assert sum(in_dims) == ws[0].shape[0]

    # cdiv-based row tiling with zero padding (arbitrary N / E supported).
    tile_eff = min(tile, _round_up(n_rows, 8))
    rows_pad = _round_up(n_rows, tile_eff)

    def pad_rows(a):
        if a.shape[0] == rows_pad:
            return a
        return jnp.pad(a, ((0, rows_pad - a.shape[0]), (0, 0)))

    call_inputs = []
    in_specs = []
    for a in inputs:
        call_inputs.append(pad_rows(a))
        in_specs.append(pl.BlockSpec((tile_eff, a.shape[1]), lambda i: (i, 0)))

    # First-layer weight split per input (static slices, done at trace time).
    off = 0
    for d in in_dims:
        w_part = ws[0][off:off + d, :]
        off += d
        call_inputs.append(w_part)
        in_specs.append(pl.BlockSpec(w_part.shape, lambda i: (0, 0)))
    b1 = bs[0].reshape(1, -1)
    call_inputs.append(b1)
    in_specs.append(pl.BlockSpec(b1.shape, lambda i: (0, 0)))

    for w, b in zip(ws[1:], bs[1:]):
        b2 = b.reshape(1, -1)
        call_inputs += [w, b2]
        in_specs += [pl.BlockSpec(w.shape, lambda i: (0, 0)),
                     pl.BlockSpec(b2.shape, lambda i: (0, 0))]

    layer_norm = gn is not None
    if layer_norm:
        gw = gn[0].reshape(1, -1)
        gb = gn[1].reshape(1, -1)
        call_inputs += [gw, gb]
        in_specs += [pl.BlockSpec((1, out_dim), lambda i: (0, 0)),
                     pl.BlockSpec((1, out_dim), lambda i: (0, 0))]

    kernel = _make_mlp_kernel(len(inputs), len(ws), layer_norm, residual_index)
    out = pl.pallas_call(
        kernel,
        out_shape=jax.ShapeDtypeStruct((rows_pad, out_dim), jnp.float32),
        grid=(rows_pad // tile_eff,),
        in_specs=in_specs,
        out_specs=pl.BlockSpec((tile_eff, out_dim), lambda i: (i, 0)),
        compiler_params=pltpu.CompilerParams(
            dimension_semantics=("parallel",),
            vmem_limit_bytes=_VMEM_LIMIT,
        ),
    )(*call_inputs)
    return out[:n_rows] if rows_pad != n_rows else out


# ----------------------------------------------------------------------------
# Tiled scatter-mean (segment mean over edge receivers) via one-hot bf16
# matmul on the MXU. Grid = (node tiles [parallel], edge tiles [reduction]);
# VMEM f32 accumulator; normalization by precomputed reciprocal degrees.
# Matches torch_scatter.scatter(..., reduce='mean'): empty buckets give 0.
# ----------------------------------------------------------------------------
def _scatter_mean_kernel(recv_ref, e_ref, inv_ref, out_ref, acc_ref):
    k = pl.program_id(1)

    @pl.when(k == 0)
    def _():
        acc_ref[...] = jnp.zeros_like(acc_ref)

    n = pl.program_id(0)
    tile_n = acc_ref.shape[0]
    tile_e = recv_ref.shape[1]
    node_ids = n * tile_n + jax.lax.broadcasted_iota(
        jnp.int32, (tile_n, tile_e), 0)
    onehot = (node_ids == recv_ref[...]).astype(jnp.bfloat16)  # (Tn, Te)
    acc_ref[...] += jnp.dot(onehot, e_ref[...].astype(jnp.bfloat16),
                            preferred_element_type=jnp.float32)

    @pl.when(k == pl.num_programs(1) - 1)
    def _():
        out_ref[...] = (acc_ref[...] * inv_ref[...]).astype(out_ref.dtype)


def scatter_mean(e, recv, inv_counts, num_nodes, *, tile_n=256, tile_e=1024):
    n_edges, h = e.shape

    tile_n_eff = min(tile_n, _round_up(num_nodes, 8))
    n_pad = _round_up(num_nodes, tile_n_eff)
    tile_e_eff = min(tile_e, _round_up(n_edges, 8))
    e_pad = _round_up(n_edges, tile_e_eff)

    recv = recv.astype(jnp.int32)
    if e_pad != n_edges:
        e = jnp.pad(e, ((0, e_pad - n_edges), (0, 0)))
        recv = jnp.pad(recv, (0, e_pad - n_edges), constant_values=-1)
    recv2 = recv.reshape(1, e_pad)
    if n_pad != num_nodes:
        inv_counts = jnp.pad(inv_counts, ((0, n_pad - num_nodes), (0, 0)),
                             constant_values=1.0)

    out = pl.pallas_call(
        _scatter_mean_kernel,
        out_shape=jax.ShapeDtypeStruct((n_pad, h), jnp.float32),
        grid=(n_pad // tile_n_eff, e_pad // tile_e_eff),
        in_specs=[
            pl.BlockSpec((1, tile_e_eff), lambda n, k: (0, k)),   # recv ids
            pl.BlockSpec((tile_e_eff, h), lambda n, k: (k, 0)),   # edge feats
            pl.BlockSpec((tile_n_eff, 1), lambda n, k: (n, 0)),   # 1/deg
        ],
        out_specs=pl.BlockSpec((tile_n_eff, h), lambda n, k: (n, 0)),
        scratch_shapes=[pltpu.VMEM((tile_n_eff, h), jnp.float32)],
        compiler_params=pltpu.CompilerParams(
            dimension_semantics=("parallel", "arbitrary"),
            vmem_limit_bytes=_VMEM_LIMIT,
        ),
    )(recv2, e, inv_counts)
    return out[:num_nodes] if n_pad != num_nodes else out


# ----------------------------------------------------------------------------
# Deterministic parameter initialization (shapes follow the PyTorch module).
# Weights stored bf16 (MXU native); biases / GroupNorm params in f32.
# ----------------------------------------------------------------------------
def init_mlp(key, in_dim, h_dim, out_dim, n_layers, layer_norm):
    dims = [in_dim] + [h_dim] * (n_layers + 1) + [out_dim]
    ws, bs = [], []
    for i in range(len(dims) - 1):
        key, kw, kb = jax.random.split(key, 3)
        w = 0.1 * jax.random.normal(kw, (dims[i], dims[i + 1]), jnp.float32)
        ws.append(w.astype(jnp.bfloat16))
        bs.append(0.1 * jax.random.normal(kb, (dims[i + 1],), jnp.float32))
    gn = None
    if layer_norm:
        key, kw, kb = jax.random.split(key, 3)
        gn = (
            1.0 + 0.1 * jax.random.normal(kw, (out_dim,), jnp.float32),
            0.1 * jax.random.normal(kb, (out_dim,), jnp.float32),
        )
    return {"Ws": ws, "bs": bs, "gn": gn}


def init_meshgraphnet(key, x_dim, e_dim, n_blocks, h_dim, out_dim, n_layers=1):
    keys = jax.random.split(key, 3 + 2 * n_blocks)
    params = {
        "encoder_x": init_mlp(keys[0], x_dim, h_dim, h_dim, n_layers, True),
        "encoder_e": init_mlp(keys[1], e_dim, h_dim, h_dim, n_layers, True),
        "blocks": [],
        "decoder": init_mlp(keys[2], h_dim, h_dim, out_dim, n_layers, False),
    }
    for n in range(n_blocks):
        params["blocks"].append(
            {
                "edge_mlp": init_mlp(keys[3 + 2 * n], 3 * h_dim, h_dim, h_dim,
                                     n_layers, True),
                "node_mlp": init_mlp(keys[4 + 2 * n], 2 * h_dim, h_dim, h_dim,
                                     n_layers, True),
            }
        )
    return params


# ----------------------------------------------------------------------------
# Full MeshGraphNet forward (encoder -> processor blocks -> decoder).
# ----------------------------------------------------------------------------
def meshgraphnet_forward(params, x, edge_index, e, x_scale=1):
    if x_scale != 1:
        x = x * x_scale
    x = mlp_forward([x], params["encoder_x"])          # [N, h]
    e = mlp_forward([e], params["encoder_e"])          # [E, h]
    send = edge_index[0]
    recv = edge_index[1]
    num_nodes = x.shape[0]

    # Receiver degrees are constant across all processor blocks: compute once.
    counts = jnp.zeros((num_nodes,), jnp.float32).at[recv].add(1.0)
    inv_counts = (1.0 / jnp.maximum(counts, 1.0)).reshape(num_nodes, 1)

    for blk in params["blocks"]:
        # EdgeConv: msg = MLP([x_i, x_j, e]); e <- e + msg  (concat + residual
        # fused into the Pallas MLP kernel; gathers stay as XLA glue).
        x_j = jnp.take(x, send, axis=0)
        x_i = jnp.take(x, recv, axis=0)
        e = mlp_forward([x_i, x_j, e], blk["edge_mlp"], residual_index=2)
        # NodeConv: agg = scatter_mean(e, recv); x <- x + MLP([x, agg])
        agg = scatter_mean(e, recv, inv_counts, num_nodes)
        x = mlp_forward([x, agg], blk["node_mlp"], residual_index=0)

    y = mlp_forward([x], params["decoder"])            # [N, out_dim]
    return y


if __name__ == "__main__":
    key = jax.random.PRNGKey(0)
    x_dim, e_dim, h_dim, out_dim = 6, 3, 32, 3
    n_blocks, n_layers = 2, 1
    n_nodes, n_edges = 16, 32

    k_x, k_e, k_ei, k_p = jax.random.split(key, 4)
    x = jax.random.normal(k_x, (n_nodes, x_dim), jnp.float32)
    e = jax.random.normal(k_e, (n_edges, e_dim), jnp.float32)
    edge_index = jax.random.randint(k_ei, (2, n_edges), 0, n_nodes, jnp.int32)

    params = init_meshgraphnet(k_p, x_dim, e_dim, n_blocks, h_dim, out_dim,
                               n_layers)

    fwd = jax.jit(meshgraphnet_forward, static_argnames=("x_scale",))
    y = fwd(params, x, edge_index, e)
    y = jax.block_until_ready(y)
    assert y.shape == (n_nodes, out_dim)
    assert bool(jnp.all(jnp.isfinite(y)))
    print("KERNEL_OK")
</pallas_src>

<mosaic_0001>
module attributes {stable_mosaic.version = 11 : i64} {
  func.func private @main(%arg0: i32) attributes {dimension_semantics = [#tpu.dimension_semantics<core_parallel>], iteration_bounds = array<i64: 2>, tpu.core_type = #tpu.core_type<sc_scalar_subcore>, window_params = []} {
    return
  }
}

module attributes {stable_mosaic.version = 11 : i64} {
  func.func private @main(%arg0: i32) attributes {dimension_semantics = [#tpu.dimension_semantics<core_parallel>], iteration_bounds = array<i64: 2>, tpu.core_type = #tpu.core_type<sc_scalar_subcore>, window_params = []} {
    return
  }
}

module attributes {stable_mosaic.version = 11 : i64} {
  func.func @kernel(%arg0: i32, %arg1: memref<16x6xf32, #tpu.memory_space<vmem>>, %arg2: memref<6x32xbf16, #tpu.memory_space<vmem>>, %arg3: memref<1x32xf32, #tpu.memory_space<vmem>>, %arg4: memref<32x32xbf16, #tpu.memory_space<vmem>>, %arg5: memref<1x32xf32, #tpu.memory_space<vmem>>, %arg6: memref<32x32xbf16, #tpu.memory_space<vmem>>, %arg7: memref<1x32xf32, #tpu.memory_space<vmem>>, %arg8: memref<1x32xf32, #tpu.memory_space<vmem>>, %arg9: memref<1x32xf32, #tpu.memory_space<vmem>>, %arg10: memref<16x32xf32, #tpu.memory_space<vmem>>) attributes {dimension_semantics = [#tpu.dimension_semantics<parallel>], iteration_bounds = array<i64: 1>, scalar_prefetch = 0 : i64, scratch_operands = 0 : i64, tpu.core_type = #tpu.core_type<tc>, window_params = [{transform_indices = @transform_0, window_bounds = array<i64: 16, 6>}, {pipeline_mode = #tpu.pipeline_mode<synchronous>, transform_indices = @transform_1, window_bounds = array<i64: 6, 32>}, {pipeline_mode = #tpu.pipeline_mode<synchronous>, transform_indices = @transform_2, window_bounds = array<i64: 1, 32>}, {pipeline_mode = #tpu.pipeline_mode<synchronous>, transform_indices = @transform_3, window_bounds = array<i64: 32, 32>}, {pipeline_mode = #tpu.pipeline_mode<synchronous>, transform_indices = @transform_4, window_bounds = array<i64: 1, 32>}, {pipeline_mode = #tpu.pipeline_mode<synchronous>, transform_indices = @transform_5, window_bounds = array<i64: 32, 32>}, {pipeline_mode = #tpu.pipeline_mode<synchronous>, transform_indices = @transform_6, window_bounds = array<i64: 1, 32>}, {pipeline_mode = #tpu.pipeline_mode<synchronous>, transform_indices = @transform_7, window_bounds = array<i64: 1, 32>}, {pipeline_mode = #tpu.pipeline_mode<synchronous>, transform_indices = @transform_8, window_bounds = array<i64: 1, 32>}, {transform_indices = @transform_9, window_bounds = array<i64: 16, 32>}]} {
    %c0 = arith.constant 0 : index
    %c0_0 = arith.constant 0 : index
    %0 = vector.load %arg2[%c0, %c0_0] : memref<6x32xbf16, #tpu.memory_space<vmem>>, vector<6x32xbf16>
    %c0_1 = arith.constant 0 : index
    %c0_2 = arith.constant 0 : index
    %1 = vector.load %arg1[%c0_1, %c0_2] : memref<16x6xf32, #tpu.memory_space<vmem>>, vector<16x6xf32>
    %2 = arith.truncf %1 : vector<16x6xf32> to vector<16x6xbf16>
    %cst = arith.constant dense<0.000000e+00> : vector<16x32xf32>
    %3 = tpu.matmul %2, %0, %cst {dimension_numbers = #tpu.dot_dimension_numbers<[1], [0], [0], [1], [0, 0, 1, 1], [], []>} : vector<16x6xbf16>, vector<6x32xbf16>, vector<16x32xf32> -> vector<16x32xf32>
    %c0_3 = arith.constant 0 : index
    %c0_4 = arith.constant 0 : index
    %4 = vector.load %arg3[%c0_3, %c0_4] : memref<1x32xf32, #tpu.memory_space<vmem>>, vector<1x32xf32>
    %5 = vector.broadcast %4 : vector<1x32xf32> to vector<16x32xf32>
    %6 = arith.addf %3, %5 : vector<16x32xf32>
    %cst_5 = arith.constant 0.000000e+00 : f32
    %7 = vector.broadcast %cst_5 : f32 to vector<16x32xf32>
    %8 = arith.maximumf %6, %7 : vector<16x32xf32>
    %c0_6 = arith.constant 0 : index
    %c0_7 = arith.constant 0 : index
    %9 = vector.load %arg4[%c0_6, %c0_7] : memref<32x32xbf16, #tpu.memory_space<vmem>>, vector<32x32xbf16>
    %c0_8 = arith.constant 0 : index
    %c0_9 = arith.constant 0 : index
    %10 = vector.load %arg5[%c0_8, %c0_9] : memref<1x32xf32, #tpu.memory_space<vmem>>, vector<1x32xf32>
    %11 = arith.truncf %8 : vector<16x32xf32> to vector<16x32xbf16>
    %cst_10 = arith.constant dense<0.000000e+00> : vector<16x32xf32>
    %12 = tpu.matmul %11, %9, %cst_10 {dimension_numbers = #tpu.dot_dimension_numbers<[1], [0], [0], [1], [0, 0, 1, 1], [], []>} : vector<16x32xbf16>, vector<32x32xbf16>, vector<16x32xf32> -> vector<16x32xf32>
    %13 = vector.broadcast %10 : vector<1x32xf32> to vector<16x32xf32>
    %14 = arith.addf %12, %13 : vector<16x32xf32>
    %cst_11 = arith.constant 0.000000e+00 : f32
    %15 = vector.broadcast %cst_11 : f32 to vector<16x32xf32>
    %16 = arith.maximumf %14, %15 : vector<16x32xf32>
    %c0_12 = arith.constant 0 : index
    %c0_13 = arith.constant 0 : index
    %17 = vector.load %arg6[%c0_12, %c0_13] : memref<32x32xbf16, #tpu.memory_space<vmem>>, vector<32x32xbf16>
    %c0_14 = arith.constant 0 : index
    %c0_15 = arith.constant 0 : index
    %18 = vector.load %arg7[%c0_14, %c0_15] : memref<1x32xf32, #tpu.memory_space<vmem>>, vector<1x32xf32>
    %19 = arith.truncf %16 : vector<16x32xf32> to vector<16x32xbf16>
    %cst_16 = arith.constant dense<0.000000e+00> : vector<16x32xf32>
    %20 = tpu.matmul %19, %17, %cst_16 {dimension_numbers = #tpu.dot_dimension_numbers<[1], [0], [0], [1], [0, 0, 1, 1], [], []>} : vector<16x32xbf16>, vector<32x32xbf16>, vector<16x32xf32> -> vector<16x32xf32>
    %21 = vector.broadcast %18 : vector<1x32xf32> to vector<16x32xf32>
    %22 = arith.addf %20, %21 : vector<16x32xf32>
    %c0_17 = arith.constant 0 : index
    %c0_18 = arith.constant 0 : index
    %23 = vector.load %arg8[%c0_17, %c0_18] : memref<1x32xf32, #tpu.memory_space<vmem>>, vector<1x32xf32>
    %c0_19 = arith.constant 0 : index
    %c0_20 = arith.constant 0 : index
    %24 = vector.load %arg9[%c0_19, %c0_20] : memref<1x32xf32, #tpu.memory_space<vmem>>, vector<1x32xf32>
    %cst_21 = arith.constant dense<0.000000e+00> : vector<16xf32>
    %25 = vector.multi_reduction <add>, %22, %cst_21 [1] : vector<16x32xf32> to vector<16xf32>
    %26 = vector.shape_cast %25 : vector<16xf32> to vector<16x1xf32>
    %cst_22 = arith.constant 3.200000e+01 : f32
    %27 = vector.broadcast %cst_22 : f32 to vector<16x1xf32>
    %28 = arith.divf %26, %27 : vector<16x1xf32>
    %29 = vector.broadcast %28 : vector<16x1xf32> to vector<16x32xf32>
    %30 = arith.subf %22, %29 : vector<16x32xf32>
    %31 = arith.mulf %30, %30 : vector<16x32xf32>
    %cst_23 = arith.constant dense<0.000000e+00> : vector<16xf32>
    %32 = vector.multi_reduction <add>, %31, %cst_23 [1] : vector<16x32xf32> to vector<16xf32>
    %33 = vector.shape_cast %32 : vector<16xf32> to vector<16x1xf32>
    %cst_24 = arith.constant 3.200000e+01 : f32
    %34 = vector.broadcast %cst_24 : f32 to vector<16x1xf32>
    %35 = arith.divf %33, %34 : vector<16x1xf32>
    %36 = vector.broadcast %28 : vector<16x1xf32> to vector<16x32xf32>
    %37 = arith.subf %22, %36 : vector<16x32xf32>
    %cst_25 = arith.constant 9.99999974E-6 : f32
    %38 = vector.broadcast %cst_25 : f32 to vector<16x1xf32>
    %39 = arith.addf %35, %38 : vector<16x1xf32>
    %40 = math.rsqrt %39 : vector<16x1xf32>
    %41 = vector.broadcast %40 : vector<16x1xf32> to vector<16x32xf32>
    %42 = arith.mulf %37, %41 : vector<16x32xf32>
    %43 = vector.broadcast %23 : vector<1x32xf32> to vector<16x32xf32>
    %44 = arith.mulf %42, %43 : vector<16x32xf32>
    %45 = vector.broadcast %24 : vector<1x32xf32> to vector<16x32xf32>
    %46 = arith.addf %44, %45 : vector<16x32xf32>
    %c0_26 = arith.constant 0 : index
    %c0_27 = arith.constant 0 : index
    %47 = vector.load %arg10[%c0_26, %c0_27] : memref<16x32xf32, #tpu.memory_space<vmem>>, vector<16x32xf32>
    tpu.vector_store %arg10[%c0_26, %c0_27], %46 {strides = array<i32>} : memref<16x32xf32, #tpu.memory_space<vmem>>, vector<16x32xf32>,
    return
  }
  func.func @transform_0(%arg0: i32) -> (i32, i32) {
    %c0_i32 = arith.constant 0 : i32
    %c0_i32_0 = arith.constant 0 : i32
    return %arg0, %c0_i32 : i32, i32
  }
  func.func @transform_1(%arg0: i32) -> (i32, i32) {
    %c0_i32 = arith.constant 0 : i32
    %c0_i32_0 = arith.constant 0 : i32
    %c0_i32_1 = arith.constant 0 : i32
    return %c0_i32, %c0_i32_0 : i32, i32
  }
  func.func @transform_2(%arg0: i32) -> (i32, i32) {
    %c0_i32 = arith.constant 0 : i32
    %c0_i32_0 = arith.constant 0 : i32
    %c0_i32_1 = arith.constant 0 : i32
    return %c0_i32, %c0_i32_0 : i32, i32
  }
  func.func @transform_3(%arg0: i32) -> (i32, i32) {
    %c0_i32 = arith.constant 0 : i32
    %c0_i32_0 = arith.constant 0 : i32
    %c0_i32_1 = arith.constant 0 : i32
    return %c0_i32, %c0_i32_0 : i32, i32
  }
  func.func @transform_4(%arg0: i32) -> (i32, i32) {
    %c0_i32 = arith.constant 0 : i32
    %c0_i32_0 = arith.constant 0 : i32
    %c0_i32_1 = arith.constant 0 : i32
    return %c0_i32, %c0_i32_0 : i32, i32
  }
  func.func @transform_5(%arg0: i32) -> (i32, i32) {
    %c0_i32 = arith.constant 0 : i32
    %c0_i32_0 = arith.constant 0 : i32
    %c0_i32_1 = arith.constant 0 : i32
    return %c0_i32, %c0_i32_0 : i32, i32
  }
  func.func @transform_6(%arg0: i32) -> (i32, i32) {
    %c0_i32 = arith.constant 0 : i32
    %c0_i32_0 = arith.constant 0 : i32
    %c0_i32_1 = arith.constant 0 : i32
    return %c0_i32, %c0_i32_0 : i32, i32
  }
  func.func @transform_7(%arg0: i32) -> (i32, i32) {
    %c0_i32 = arith.constant 0 : i32
    %c0_i32_0 = arith.constant 0 : i32
    %c0_i32_1 = arith.constant 0 : i32
    return %c0_i32, %c0_i32_0 : i32, i32
  }
  func.func @transform_8(%arg0: i32) -> (i32, i32) {
    %c0_i32 = arith.constant 0 : i32
    %c0_i32_0 = arith.constant 0 : i32
    %c0_i32_1 = arith.constant 0 : i32
    return %c0_i32, %c0_i32_0 : i32, i32
  }
  func.func @transform_9(%arg0: i32) -> (i32, i32) {
    %c0_i32 = arith.constant 0 : i32
    %c0_i32_0 = arith.constant 0 : i32
    return %arg0, %c0_i32 : i32, i32
  }
}

module attributes {stable_mosaic.version = 11 : i64} {
  func.func @kernel(%arg0: i32, %arg1: memref<32x3xf32, #tpu.memory_space<vmem>>, %arg2: memref<3x32xbf16, #tpu.memory_space<vmem>>, %arg3: memref<1x32xf32, #tpu.memory_space<vmem>>, %arg4: memref<32x32xbf16, #tpu.memory_space<vmem>>, %arg5: memref<1x32xf32, #tpu.memory_space<vmem>>, %arg6: memref<32x32xbf16, #tpu.memory_space<vmem>>, %arg7: memref<1x32xf32, #tpu.memory_space<vmem>>, %arg8: memref<1x32xf32, #tpu.memory_space<vmem>>, %arg9: memref<1x32xf32, #tpu.memory_space<vmem>>, %arg10: memref<32x32xf32, #tpu.memory_space<vmem>>) attributes {dimension_semantics = [#tpu.dimension_semantics<parallel>], iteration_bounds = array<i64: 1>, scalar_prefetch = 0 : i64, scratch_operands = 0 : i64, tpu.core_type = #tpu.core_type<tc>, window_params = [{transform_indices = @transform_0, window_bounds = array<i64: 32, 3>}, {pipeline_mode = #tpu.pipeline_mode<synchronous>, transform_indices = @transform_1, window_bounds = array<i64: 3, 32>}, {pipeline_mode = #tpu.pipeline_mode<synchronous>, transform_indices = @transform_2, window_bounds = array<i64: 1, 32>}, {pipeline_mode = #tpu.pipeline_mode<synchronous>, transform_indices = @transform_3, window_bounds = array<i64: 32, 32>}, {pipeline_mode = #tpu.pipeline_mode<synchronous>, transform_indices = @transform_4, window_bounds = array<i64: 1, 32>}, {pipeline_mode = #tpu.pipeline_mode<synchronous>, transform_indices = @transform_5, window_bounds = array<i64: 32, 32>}, {pipeline_mode = #tpu.pipeline_mode<synchronous>, transform_indices = @transform_6, window_bounds = array<i64: 1, 32>}, {pipeline_mode = #tpu.pipeline_mode<synchronous>, transform_indices = @transform_7, window_bounds = array<i64: 1, 32>}, {pipeline_mode = #tpu.pipeline_mode<synchronous>, transform_indices = @transform_8, window_bounds = array<i64: 1, 32>}, {transform_indices = @transform_9, window_bounds = array<i64: 32, 32>}]} {
    %c0 = arith.constant 0 : index
    %c0_0 = arith.constant 0 : index
    %0 = vector.load %arg2[%c0, %c0_0] : memref<3x32xbf16, #tpu.memory_space<vmem>>, vector<3x32xbf16>
    %c0_1 = arith.constant 0 : index
    %c0_2 = arith.constant 0 : index
    %1 = vector.load %arg1[%c0_1, %c0_2] : memref<32x3xf32, #tpu.memory_space<vmem>>, vector<32x3xf32>
    %2 = arith.truncf %1 : vector<32x3xf32> to vector<32x3xbf16>
    %cst = arith.constant dense<0.000000e+00> : vector<32x32xf32>
    %3 = tpu.matmul %2, %0, %cst {dimension_numbers = #tpu.dot_dimension_numbers<[1], [0], [0], [1], [0, 0, 1, 1], [], []>} : vector<32x3xbf16>, vector<3x32xbf16>, vector<32x32xf32> -> vector<32x32xf32>
    %c0_3 = arith.constant 0 : index
    %c0_4 = arith.constant 0 : index
    %4 = vector.load %arg3[%c0_3, %c0_4] : memref<1x32xf32, #tpu.memory_space<vmem>>, vector<1x32xf32>
    %5 = vector.broadcast %4 : vector<1x32xf32> to vector<32x32xf32>
    %6 = arith.addf %3, %5 : vector<32x32xf32>
    %cst_5 = arith.constant 0.000000e+00 : f32
    %7 = vector.broadcast %cst_5 : f32 to vector<32x32xf32>
    %8 = arith.maximumf %6, %7 : vector<32x32xf32>
    %c0_6 = arith.constant 0 : index
    %c0_7 = arith.constant 0 : index
    %9 = vector.load %arg4[%c0_6, %c0_7] : memref<32x32xbf16, #tpu.memory_space<vmem>>, vector<32x32xbf16>
    %c0_8 = arith.constant 0 : index
    %c0_9 = arith.constant 0 : index
    %10 = vector.load %arg5[%c0_8, %c0_9] : memref<1x32xf32, #tpu.memory_space<vmem>>, vector<1x32xf32>
    %11 = arith.truncf %8 : vector<32x32xf32> to vector<32x32xbf16>
    %cst_10 = arith.constant dense<0.000000e+00> : vector<32x32xf32>
    %12 = tpu.matmul %11, %9, %cst_10 {dimension_numbers = #tpu.dot_dimension_numbers<[1], [0], [0], [1], [0, 0, 1, 1], [], []>} : vector<32x32xbf16>, vector<32x32xbf16>, vector<32x32xf32> -> vector<32x32xf32>
    %13 = vector.broadcast %10 : vector<1x32xf32> to vector<32x32xf32>
    %14 = arith.addf %12, %13 : vector<32x32xf32>
    %cst_11 = arith.constant 0.000000e+00 : f32
    %15 = vector.broadcast %cst_11 : f32 to vector<32x32xf32>
    %16 = arith.maximumf %14, %15 : vector<32x32xf32>
    %c0_12 = arith.constant 0 : index
    %c0_13 = arith.constant 0 : index
    %17 = vector.load %arg6[%c0_12, %c0_13] : memref<32x32xbf16, #tpu.memory_space<vmem>>, vector<32x32xbf16>
    %c0_14 = arith.constant 0 : index
    %c0_15 = arith.constant 0 : index
    %18 = vector.load %arg7[%c0_14, %c0_15] : memref<1x32xf32, #tpu.memory_space<vmem>>, vector<1x32xf32>
    %19 = arith.truncf %16 : vector<32x32xf32> to vector<32x32xbf16>
    %cst_16 = arith.constant dense<0.000000e+00> : vector<32x32xf32>
    %20 = tpu.matmul %19, %17, %cst_16 {dimension_numbers = #tpu.dot_dimension_numbers<[1], [0], [0], [1], [0, 0, 1, 1], [], []>} : vector<32x32xbf16>, vector<32x32xbf16>, vector<32x32xf32> -> vector<32x32xf32>
    %21 = vector.broadcast %18 : vector<1x32xf32> to vector<32x32xf32>
    %22 = arith.addf %20, %21 : vector<32x32xf32>
    %c0_17 = arith.constant 0 : index
    %c0_18 = arith.constant 0 : index
    %23 = vector.load %arg8[%c0_17, %c0_18] : memref<1x32xf32, #tpu.memory_space<vmem>>, vector<1x32xf32>
    %c0_19 = arith.constant 0 : index
    %c0_20 = arith.constant 0 : index
    %24 = vector.load %arg9[%c0_19, %c0_20] : memref<1x32xf32, #tpu.memory_space<vmem>>, vector<1x32xf32>
    %cst_21 = arith.constant dense<0.000000e+00> : vector<32xf32>
    %25 = vector.multi_reduction <add>, %22, %cst_21 [1] : vector<32x32xf32> to vector<32xf32>
    %26 = vector.shape_cast %25 : vector<32xf32> to vector<32x1xf32>
    %cst_22 = arith.constant 3.200000e+01 : f32
    %27 = vector.broadcast %cst_22 : f32 to vector<32x1xf32>
    %28 = arith.divf %26, %27 : vector<32x1xf32>
    %29 = vector.broadcast %28 : vector<32x1xf32> to vector<32x32xf32>
    %30 = arith.subf %22, %29 : vector<32x32xf32>
    %31 = arith.mulf %30, %30 : vector<32x32xf32>
    %cst_23 = arith.constant dense<0.000000e+00> : vector<32xf32>
    %32 = vector.multi_reduction <add>, %31, %cst_23 [1] : vector<32x32xf32> to vector<32xf32>
    %33 = vector.shape_cast %32 : vector<32xf32> to vector<32x1xf32>
    %cst_24 = arith.constant 3.200000e+01 : f32
    %34 = vector.broadcast %cst_24 : f32 to vector<32x1xf32>
    %35 = arith.divf %33, %34 : vector<32x1xf32>
    %36 = vector.broadcast %28 : vector<32x1xf32> to vector<32x32xf32>
    %37 = arith.subf %22, %36 : vector<32x32xf32>
    %cst_25 = arith.constant 9.99999974E-6 : f32
    %38 = vector.broadcast %cst_25 : f32 to vector<32x1xf32>
    %39 = arith.addf %35, %38 : vector<32x1xf32>
    %40 = math.rsqrt %39 : vector<32x1xf32>
    %41 = vector.broadcast %40 : vector<32x1xf32> to vector<32x32xf32>
    %42 = arith.mulf %37, %41 : vector<32x32xf32>
    %43 = vector.broadcast %23 : vector<1x32xf32> to vector<32x32xf32>
    %44 = arith.mulf %42, %43 : vector<32x32xf32>
    %45 = vector.broadcast %24 : vector<1x32xf32> to vector<32x32xf32>
    %46 = arith.addf %44, %45 : vector<32x32xf32>
    %c0_26 = arith.constant 0 : index
    %c0_27 = arith.constant 0 : index
    %47 = vector.load %arg10[%c0_26, %c0_27] : memref<32x32xf32, #tpu.memory_space<vmem>>, vector<32x32xf32>
    tpu.vector_store %arg10[%c0_26, %c0_27], %46 {strides = array<i32>} : memref<32x32xf32, #tpu.memory_space<vmem>>, vector<32x32xf32>,
    return
  }
  func.func @transform_0(%arg0: i32) -> (i32, i32) {
    %c0_i32 = arith.constant 0 : i32
    %c0_i32_0 = arith.constant 0 : i32
    return %arg0, %c0_i32 : i32, i32
  }
  func.func @transform_1(%arg0: i32) -> (i32, i32) {
    %c0_i32 = arith.constant 0 : i32
    %c0_i32_0 = arith.constant 0 : i32
    %c0_i32_1 = arith.constant 0 : i32
    return %c0_i32, %c0_i32_0 : i32, i32
  }
  func.func @transform_2(%arg0: i32) -> (i32, i32) {
    %c0_i32 = arith.constant 0 : i32
    %c0_i32_0 = arith.constant 0 : i32
    %c0_i32_1 = arith.constant 0 : i32
    return %c0_i32, %c0_i32_0 : i32, i32
  }
  func.func @transform_3(%arg0: i32) -> (i32, i32) {
    %c0_i32 = arith.constant 0 : i32
    %c0_i32_0 = arith.constant 0 : i32
    %c0_i32_1 = arith.constant 0 : i32
    return %c0_i32, %c0_i32_0 : i32, i32
  }
  func.func @transform_4(%arg0: i32) -> (i32, i32) {
    %c0_i32 = arith.constant 0 : i32
    %c0_i32_0 = arith.constant 0 : i32
    %c0_i32_1 = arith.constant 0 : i32
    return %c0_i32, %c0_i32_0 : i32, i32
  }
  func.func @transform_5(%arg0: i32) -> (i32, i32) {
    %c0_i32 = arith.constant 0 : i32
    %c0_i32_0 = arith.constant 0 : i32
    %c0_i32_1 = arith.constant 0 : i32
    return %c0_i32, %c0_i32_0 : i32, i32
  }
  func.func @transform_6(%arg0: i32) -> (i32, i32) {
    %c0_i32 = arith.constant 0 : i32
    %c0_i32_0 = arith.constant 0 : i32
    %c0_i32_1 = arith.constant 0 : i32
    return %c0_i32, %c0_i32_0 : i32, i32
  }
  func.func @transform_7(%arg0: i32) -> (i32, i32) {
    %c0_i32 = arith.constant 0 : i32
    %c0_i32_0 = arith.constant 0 : i32
    %c0_i32_1 = arith.constant 0 : i32
    return %c0_i32, %c0_i32_0 : i32, i32
  }
  func.func @transform_8(%arg0: i32) -> (i32, i32) {
    %c0_i32 = arith.constant 0 : i32
    %c0_i32_0 = arith.constant 0 : i32
    %c0_i32_1 = arith.constant 0 : i32
    return %c0_i32, %c0_i32_0 : i32, i32
  }
  func.func @transform_9(%arg0: i32) -> (i32, i32) {
    %c0_i32 = arith.constant 0 : i32
    %c0_i32_0 = arith.constant 0 : i32
    return %arg0, %c0_i32 : i32, i32
  }
}

module attributes {stable_mosaic.version = 11 : i64} {
  func.func @kernel(%arg0: i32, %arg1: memref<32x32xf32, #tpu.memory_space<vmem>>, %arg2: memref<32x32xf32, #tpu.memory_space<vmem>>, %arg3: memref<32x32xf32, #tpu.memory_space<vmem>>, %arg4: memref<32x32xbf16, #tpu.memory_space<vmem>>, %arg5: memref<32x32xbf16, #tpu.memory_space<vmem>>, %arg6: memref<32x32xbf16, #tpu.memory_space<vmem>>, %arg7: memref<1x32xf32, #tpu.memory_space<vmem>>, %arg8: memref<32x32xbf16, #tpu.memory_space<vmem>>, %arg9: memref<1x32xf32, #tpu.memory_space<vmem>>, %arg10: memref<32x32xbf16, #tpu.memory_space<vmem>>, %arg11: memref<1x32xf32, #tpu.memory_space<vmem>>, %arg12: memref<1x32xf32, #tpu.memory_space<vmem>>, %arg13: memref<1x32xf32, #tpu.memory_space<vmem>>, %arg14: memref<32x32xf32, #tpu.memory_space<vmem>>) attributes {dimension_semantics = [#tpu.dimension_semantics<parallel>], iteration_bounds = array<i64: 1>, scalar_prefetch = 0 : i64, scratch_operands = 0 : i64, tpu.core_type = #tpu.core_type<tc>, window_params = [{transform_indices = @transform_0, window_bounds = array<i64: 32, 32>}, {transform_indices = @transform_1, window_bounds = array<i64: 32, 32>}, {transform_indices = @transform_2, window_bounds = array<i64: 32, 32>}, {pipeline_mode = #tpu.pipeline_mode<synchronous>, transform_indices = @transform_3, window_bounds = array<i64: 32, 32>}, {pipeline_mode = #tpu.pipeline_mode<synchronous>, transform_indices = @transform_4, window_bounds = array<i64: 32, 32>}, {pipeline_mode = #tpu.pipeline_mode<synchronous>, transform_indices = @transform_5, window_bounds = array<i64: 32, 32>}, {pipeline_mode = #tpu.pipeline_mode<synchronous>, transform_indices = @transform_6, window_bounds = array<i64: 1, 32>}, {pipeline_mode = #tpu.pipeline_mode<synchronous>, transform_indices = @transform_7, window_bounds = array<i64: 32, 32>}, {pipeline_mode = #tpu.pipeline_mode<synchronous>, transform_indices = @transform_8, window_bounds = array<i64: 1, 32>}, {pipeline_mode = #tpu.pipeline_mode<synchronous>, transform_indices = @transform_9, window_bounds = array<i64: 32, 32>}, {pipeline_mode = #tpu.pipeline_mode<synchronous>, transform_indices = @transform_10, window_bounds = array<i64: 1, 32>}, {pipeline_mode = #tpu.pipeline_mode<synchronous>, transform_indices = @transform_11, window_bounds = array<i64: 1, 32>}, {pipeline_mode = #tpu.pipeline_mode<synchronous>, transform_indices = @transform_12, window_bounds = array<i64: 1, 32>}, {transform_indices = @transform_13, window_bounds = array<i64: 32, 32>}]} {
    %c0 = arith.constant 0 : index
    %c0_0 = arith.constant 0 : index
    %0 = vector.load %arg4[%c0, %c0_0] : memref<32x32xbf16, #tpu.memory_space<vmem>>, vector<32x32xbf16>
    %c0_1 = arith.constant 0 : index
    %c0_2 = arith.constant 0 : index
    %1 = vector.load %arg1[%c0_1, %c0_2] : memref<32x32xf32, #tpu.memory_space<vmem>>, vector<32x32xf32>
    %2 = arith.truncf %1 : vector<32x32xf32> to vector<32x32xbf16>
    %cst = arith.constant dense<0.000000e+00> : vector<32x32xf32>
    %3 = tpu.matmul %2, %0, %cst {dimension_numbers = #tpu.dot_dimension_numbers<[1], [0], [0], [1], [0, 0, 1, 1], [], []>} : vector<32x32xbf16>, vector<32x32xbf16>, vector<32x32xf32> -> vector<32x32xf32>
    %c0_3 = arith.constant 0 : index
    %c0_4 = arith.constant 0 : index
    %4 = vector.load %arg5[%c0_3, %c0_4] : memref<32x32xbf16, #tpu.memory_space<vmem>>, vector<32x32xbf16>
    %c0_5 = arith.constant 0 : index
    %c0_6 = arith.constant 0 : index
    %5 = vector.load %arg2[%c0_5, %c0_6] : memref<32x32xf32, #tpu.memory_space<vmem>>, vector<32x32xf32>
    %6 = arith.truncf %5 : vector<32x32xf32> to vector<32x32xbf16>
    %cst_7 = arith.constant dense<0.000000e+00> : vector<32x32xf32>
    %7 = tpu.matmul %6, %4, %cst_7 {dimension_numbers = #tpu.dot_dimension_numbers<[1], [0], [0], [1], [0, 0, 1, 1], [], []>} : vector<32x32xbf16>, vector<32x32xbf16>, vector<32x32xf32> -> vector<32x32xf32>
    %8 = arith.addf %3, %7 : vector<32x32xf32>
    %c0_8 = arith.constant 0 : index
    %c0_9 = arith.constant 0 : index
    %9 = vector.load %arg6[%c0_8, %c0_9] : memref<32x32xbf16, #tpu.memory_space<vmem>>, vector<32x32xbf16>
    %c0_10 = arith.constant 0 : index
    %c0_11 = arith.constant 0 : index
    %10 = vector.load %arg3[%c0_10, %c0_11] : memref<32x32xf32, #tpu.memory_space<vmem>>, vector<32x32xf32>
    %11 = arith.truncf %10 : vector<32x32xf32> to vector<32x32xbf16>
    %cst_12 = arith.constant dense<0.000000e+00> : vector<32x32xf32>
    %12 = tpu.matmul %11, %9, %cst_12 {dimension_numbers = #tpu.dot_dimension_numbers<[1], [0], [0], [1], [0, 0, 1, 1], [], []>} : vector<32x32xbf16>, vector<32x32xbf16>, vector<32x32xf32> -> vector<32x32xf32>
    %13 = arith.addf %8, %12 : vector<32x32xf32>
    %c0_13 = arith.constant 0 : index
    %c0_14 = arith.constant 0 : index
    %14 = vector.load %arg7[%c0_13, %c0_14] : memref<1x32xf32, #tpu.memory_space<vmem>>, vector<1x32xf32>
    %15 = vector.broadcast %14 : vector<1x32xf32> to vector<32x32xf32>
    %16 = arith.addf %13, %15 : vector<32x32xf32>
    %cst_15 = arith.constant 0.000000e+00 : f32
    %17 = vector.broadcast %cst_15 : f32 to vector<32x32xf32>
    %18 = arith.maximumf %16, %17 : vector<32x32xf32>
    %c0_16 = arith.constant 0 : index
    %c0_17 = arith.constant 0 : index
    %19 = vector.load %arg8[%c0_16, %c0_17] : memref<32x32xbf16, #tpu.memory_space<vmem>>, vector<32x32xbf16>
    %c0_18 = arith.constant 0 : index
    %c0_19 = arith.constant 0 : index
    %20 = vector.load %arg9[%c0_18, %c0_19] : memref<1x32xf32, #tpu.memory_space<vmem>>, vector<1x32xf32>
    %21 = arith.truncf %18 : vector<32x32xf32> to vector<32x32xbf16>
    %cst_20 = arith.constant dense<0.000000e+00> : vector<32x32xf32>
    %22 = tpu.matmul %21, %19, %cst_20 {dimension_numbers = #tpu.dot_dimension_numbers<[1], [0], [0], [1], [0, 0, 1, 1], [], []>} : vector<32x32xbf16>, vector<32x32xbf16>, vector<32x32xf32> -> vector<32x32xf32>
    %23 = vector.broadcast %20 : vector<1x32xf32> to vector<32x32xf32>
    %24 = arith.addf %22, %23 : vector<32x32xf32>
    %cst_21 = arith.constant 0.000000e+00 : f32
    %25 = vector.broadcast %cst_21 : f32 to vector<32x32xf32>
    %26 = arith.maximumf %24, %25 : vector<32x32xf32>
    %c0_22 = arith.constant 0 : index
    %c0_23 = arith.constant 0 : index
    %27 = vector.load %arg10[%c0_22, %c0_23] : memref<32x32xbf16, #tpu.memory_space<vmem>>, vector<32x32xbf16>
    %c0_24 = arith.constant 0 : index
    %c0_25 = arith.constant 0 : index
    %28 = vector.load %arg11[%c0_24, %c0_25] : memref<1x32xf32, #tpu.memory_space<vmem>>, vector<1x32xf32>
    %29 = arith.truncf %26 : vector<32x32xf32> to vector<32x32xbf16>
    %cst_26 = arith.constant dense<0.000000e+00> : vector<32x32xf32>
    %30 = tpu.matmul %29, %27, %cst_26 {dimension_numbers = #tpu.dot_dimension_numbers<[1], [0], [0], [1], [0, 0, 1, 1], [], []>} : vector<32x32xbf16>, vector<32x32xbf16>, vector<32x32xf32> -> vector<32x32xf32>
    %31 = vector.broadcast %28 : vector<1x32xf32> to vector<32x32xf32>
    %32 = arith.addf %30, %31 : vector<32x32xf32>
    %c0_27 = arith.constant 0 : index
    %c0_28 = arith.constant 0 : index
    %33 = vector.load %arg12[%c0_27, %c0_28] : memref<1x32xf32, #tpu.memory_space<vmem>>, vector<1x32xf32>
    %c0_29 = arith.constant 0 : index
    %c0_30 = arith.constant 0 : index
    %34 = vector.load %arg13[%c0_29, %c0_30] : memref<1x32xf32, #tpu.memory_space<vmem>>, vector<1x32xf32>
    %cst_31 = arith.constant dense<0.000000e+00> : vector<32xf32>
    %35 = vector.multi_reduction <add>, %32, %cst_31 [1] : vector<32x32xf32> to vector<32xf32>
    %36 = vector.shape_cast %35 : vector<32xf32> to vector<32x1xf32>
    %cst_32 = arith.constant 3.200000e+01 : f32
    %37 = vector.broadcast %cst_32 : f32 to vector<32x1xf32>
    %38 = arith.divf %36, %37 : vector<32x1xf32>
    %39 = vector.broadcast %38 : vector<32x1xf32> to vector<32x32xf32>
    %40 = arith.subf %32, %39 : vector<32x32xf32>
    %41 = arith.mulf %40, %40 : vector<32x32xf32>
    %cst_33 = arith.constant dense<0.000000e+00> : vector<32xf32>
    %42 = vector.multi_reduction <add>, %41, %cst_33 [1] : vector<32x32xf32> to vector<32xf32>
    %43 = vector.shape_cast %42 : vector<32xf32> to vector<32x1xf32>
    %cst_34 = arith.constant 3.200000e+01 : f32
    %44 = vector.broadcast %cst_34 : f32 to vector<32x1xf32>
    %45 = arith.divf %43, %44 : vector<32x1xf32>
    %46 = vector.broadcast %38 : vector<32x1xf32> to vector<32x32xf32>
    %47 = arith.subf %32, %46 : vector<32x32xf32>
    %cst_35 = arith.constant 9.99999974E-6 : f32
    %48 = vector.broadcast %cst_35 : f32 to vector<32x1xf32>
    %49 = arith.addf %45, %48 : vector<32x1xf32>
    %50 = math.rsqrt %49 : vector<32x1xf32>
    %51 = vector.broadcast %50 : vector<32x1xf32> to vector<32x32xf32>
    %52 = arith.mulf %47, %51 : vector<32x32xf32>
    %53 = vector.broadcast %33 : vector<1x32xf32> to vector<32x32xf32>
    %54 = arith.mulf %52, %53 : vector<32x32xf32>
    %55 = vector.broadcast %34 : vector<1x32xf32> to vector<32x32xf32>
    %56 = arith.addf %54, %55 : vector<32x32xf32>
    %c0_36 = arith.constant 0 : index
    %c0_37 = arith.constant 0 : index
    %57 = vector.load %arg3[%c0_36, %c0_37] : memref<32x32xf32, #tpu.memory_space<vmem>>, vector<32x32xf32>
    %58 = arith.addf %56, %57 : vector<32x32xf32>
    %c0_38 = arith.constant 0 : index
    %c0_39 = arith.constant 0 : index
    %59 = vector.load %arg14[%c0_38, %c0_39] : memref<32x32xf32, #tpu.memory_space<vmem>>, vector<32x32xf32>
    tpu.vector_store %arg14[%c0_38, %c0_39], %58 {strides = array<i32>} : memref<32x32xf32, #tpu.memory_space<vmem>>, vector<32x32xf32>,
    return
  }
  func.func @transform_0(%arg0: i32) -> (i32, i32) {
    %c0_i32 = arith.constant 0 : i32
    %c0_i32_0 = arith.constant 0 : i32
    return %arg0, %c0_i32 : i32, i32
  }
  func.func @transform_1(%arg0: i32) -> (i32, i32) {
    %c0_i32 = arith.constant 0 : i32
    %c0_i32_0 = arith.constant 0 : i32
    return %arg0, %c0_i32 : i32, i32
  }
  func.func @transform_2(%arg0: i32) -> (i32, i32) {
    %c0_i32 = arith.constant 0 : i32
    %c0_i32_0 = arith.constant 0 : i32
    return %arg0, %c0_i32 : i32, i32
  }
  func.func @transform_3(%arg0: i32) -> (i32, i32) {
    %c0_i32 = arith.constant 0 : i32
    %c0_i32_0 = arith.constant 0 : i32
    %c0_i32_1 = arith.constant 0 : i32
    return %c0_i32, %c0_i32_0 : i32, i32
  }
  func.func @transform_4(%arg0: i32) -> (i32, i32) {
    %c0_i32 = arith.constant 0 : i32
    %c0_i32_0 = arith.constant 0 : i32
    %c0_i32_1 = arith.constant 0 : i32
    return %c0_i32, %c0_i32_0 : i32, i32
  }
  func.func @transform_5(%arg0: i32) -> (i32, i32) {
    %c0_i32 = arith.constant 0 : i32
    %c0_i32_0 = arith.constant 0 : i32
    %c0_i32_1 = arith.constant 0 : i32
    return %c0_i32, %c0_i32_0 : i32, i32
  }
  func.func @transform_6(%arg0: i32) -> (i32, i32) {
    %c0_i32 = arith.constant 0 : i32
    %c0_i32_0 = arith.constant 0 : i32
    %c0_i32_1 = arith.constant 0 : i32
    return %c0_i32, %c0_i32_0 : i32, i32
  }
  func.func @transform_7(%arg0: i32) -> (i32, i32) {
    %c0_i32 = arith.constant 0 : i32
    %c0_i32_0 = arith.constant 0 : i32
    %c0_i32_1 = arith.constant 0 : i32
    return %c0_i32, %c0_i32_0 : i32, i32
  }
  func.func @transform_8(%arg0: i32) -> (i32, i32) {
    %c0_i32 = arith.constant 0 : i32
    %c0_i32_0 = arith.constant 0 : i32
    %c0_i32_1 = arith.constant 0 : i32
    return %c0_i32, %c0_i32_0 : i32, i32
  }
  func.func @transform_9(%arg0: i32) -> (i32, i32) {
    %c0_i32 = arith.constant 0 : i32
    %c0_i32_0 = arith.constant 0 : i32
    %c0_i32_1 = arith.constant 0 : i32
    return %c0_i32, %c0_i32_0 : i32, i32
  }
  func.func @transform_10(%arg0: i32) -> (i32, i32) {
    %c0_i32 = arith.constant 0 : i32
    %c0_i32_0 = arith.constant 0 : i32
    %c0_i32_1 = arith.constant 0 : i32
    return %c0_i32, %c0_i32_0 : i32, i32
  }
  func.func @transform_11(%arg0: i32) -> (i32, i32) {
    %c0_i32 = arith.constant 0 : i32
    %c0_i32_0 = arith.constant 0 : i32
    %c0_i32_1 = arith.constant 0 : i32
    return %c0_i32, %c0_i32_0 : i32, i32
  }
  func.func @transform_12(%arg0: i32) -> (i32, i32) {
    %c0_i32 = arith.constant 0 : i32
    %c0_i32_0 = arith.constant 0 : i32
    %c0_i32_1 = arith.constant 0 : i32
    return %c0_i32, %c0_i32_0 : i32, i32
  }
  func.func @transform_13(%arg0: i32) -> (i32, i32) {
    %c0_i32 = arith.constant 0 : i32
    %c0_i32_0 = arith.constant 0 : i32
    return %arg0, %c0_i32 : i32, i32
  }
}

module attributes {stable_mosaic.version = 11 : i64} {
  func.func @_scatter_mean_kernel(%arg0: i32, %arg1: i32, %arg2: memref<1x32xi32, #tpu.memory_space<vmem>>, %arg3: memref<32x32xf32, #tpu.memory_space<vmem>>, %arg4: memref<16x1xf32, #tpu.memory_space<vmem>>, %arg5: memref<16x32xf32, #tpu.memory_space<vmem>>, %arg6: memref<16x32xf32, #tpu.memory_space<vmem>>) attributes {dimension_semantics = [#tpu.dimension_semantics<parallel>, #tpu.dimension_semantics<arbitrary>], iteration_bounds = array<i64: 1, 1>, scalar_prefetch = 0 : i64, scratch_operands = 1 : i64, tpu.core_type = #tpu.core_type<tc>, window_params = [{transform_indices = @transform_0, window_bounds = array<i64: 1, 32>}, {transform_indices = @transform_1, window_bounds = array<i64: 32, 32>}, {transform_indices = @transform_2, window_bounds = array<i64: 16, 1>}, {transform_indices = @transform_3, window_bounds = array<i64: 16, 32>}]} {
    %c0_i32 = arith.constant 0 : i32
    %0 = arith.cmpi eq, %arg1, %c0_i32 : i32
    %1 = arith.extui %0 : i1 to i32
    %c0_i32_0 = arith.constant 0 : i32
    %2 = arith.cmpi ne, %1, %c0_i32_0 : i32
    scf.if %2 {
      %cst_10 = arith.constant 0.000000e+00 : f32
      %22 = vector.broadcast %cst_10 : f32 to vector<16x32xf32>
      %c0_11 = arith.constant 0 : index
      %c0_12 = arith.constant 0 : index
      %23 = vector.load %arg6[%c0_11, %c0_12] : memref<16x32xf32, #tpu.memory_space<vmem>>, vector<16x32xf32>
      tpu.vector_store %arg6[%c0_11, %c0_12], %22 {strides = array<i32>} : memref<16x32xf32, #tpu.memory_space<vmem>>, vector<16x32xf32>,
    } else {
    }
    %c16_i32 = arith.constant 16 : i32
    %3 = arith.muli %arg0, %c16_i32 : i32
    %4 = tpu.iota {dimensions = array<i32: 0>} : vector<16x32xi32>
    %5 = vector.broadcast %3 : i32 to vector<16x32xi32>
    %6 = arith.addi %5, %4 : vector<16x32xi32>
    %c0 = arith.constant 0 : index
    %c0_1 = arith.constant 0 : index
    %7 = vector.load %arg2[%c0, %c0_1] : memref<1x32xi32, #tpu.memory_space<vmem>>, vector<1x32xi32>
    %8 = vector.broadcast %7 : vector<1x32xi32> to vector<16x32xi32>
    %9 = arith.cmpi eq, %6, %8 : vector<16x32xi32>
    %10 = arith.extui %9 : vector<16x32xi1> to vector<16x32xi32>
    %11 = arith.sitofp %10 : vector<16x32xi32> to vector<16x32xf32>
    %12 = arith.truncf %11 : vector<16x32xf32> to vector<16x32xbf16>
    %c0_2 = arith.constant 0 : index
    %c0_3 = arith.constant 0 : index
    %13 = vector.load %arg6[%c0_2, %c0_3] : memref<16x32xf32, #tpu.memory_space<vmem>>, vector<16x32xf32>
    %c0_4 = arith.constant 0 : index
    %c0_5 = arith.constant 0 : index
    %14 = vector.load %arg3[%c0_4, %c0_5] : memref<32x32xf32, #tpu.memory_space<vmem>>, vector<32x32xf32>
    %15 = arith.truncf %14 : vector<32x32xf32> to vector<32x32xbf16>
    %cst = arith.constant dense<0.000000e+00> : vector<16x32xf32>
    %16 = tpu.matmul %12, %15, %cst {dimension_numbers = #tpu.dot_dimension_numbers<[1], [0], [0], [1], [0, 0, 1, 1], [], []>} : vector<16x32xbf16>, vector<32x32xbf16>, vector<16x32xf32> -> vector<16x32xf32>
    %17 = arith.addf %13, %16 : vector<16x32xf32>
    %c0_6 = arith.constant 0 : index
    %c0_7 = arith.constant 0 : index
    %18 = vector.load %arg6[%c0_6, %c0_7] : memref<16x32xf32, #tpu.memory_space<vmem>>, vector<16x32xf32>
    tpu.vector_store %arg6[%c0_6, %c0_7], %17 {strides = array<i32>} : memref<16x32xf32, #tpu.memory_space<vmem>>, vector<16x32xf32>,
    %c0_i32_8 = arith.constant 0 : i32
    %19 = arith.cmpi eq, %arg1, %c0_i32_8 : i32
    %20 = arith.extui %19 : i1 to i32
    %c0_i32_9 = arith.constant 0 : i32
    %21 = arith.cmpi ne, %20, %c0_i32_9 : i32
    scf.if %21 {
      %c0_10 = arith.constant 0 : index
      %c0_11 = arith.constant 0 : index
      %22 = vector.load %arg6[%c0_10, %c0_11] : memref<16x32xf32, #tpu.memory_space<vmem>>, vector<16x32xf32>
      %c0_12 = arith.constant 0 : index
      %c0_13 = arith.constant 0 : index
      %23 = vector.load %arg4[%c0_12, %c0_13] : memref<16x1xf32, #tpu.memory_space<vmem>>, vector<16x1xf32>
      %24 = vector.broadcast %23 : vector<16x1xf32> to vector<16x32xf32>
      %25 = arith.mulf %22, %24 : vector<16x32xf32>
      %c0_14 = arith.constant 0 : index
      %c0_15 = arith.constant 0 : index
      %26 = vector.load %arg5[%c0_14, %c0_15] : memref<16x32xf32, #tpu.memory_space<vmem>>, vector<16x32xf32>
      tpu.vector_store %arg5[%c0_14, %c0_15], %25 {strides = array<i32>} : memref<16x32xf32, #tpu.memory_space<vmem>>, vector<16x32xf32>,
    } else {
    }
    return
  }
  func.func @transform_0(%arg0: i32, %arg1: i32) -> (i32, i32) {
    %c0_i32 = arith.constant 0 : i32
    %c0_i32_0 = arith.constant 0 : i32
    return %c0_i32, %arg1 : i32, i32
  }
  func.func @transform_1(%arg0: i32, %arg1: i32) -> (i32, i32) {
    %c0_i32 = arith.constant 0 : i32
    %c0_i32_0 = arith.constant 0 : i32
    return %arg1, %c0_i32 : i32, i32
  }
  func.func @transform_2(%arg0: i32, %arg1: i32) -> (i32, i32) {
    %c0_i32 = arith.constant 0 : i32
    %c0_i32_0 = arith.constant 0 : i32
    return %arg0, %c0_i32 : i32, i32
  }
  func.func @transform_3(%arg0: i32, %arg1: i32) -> (i32, i32) {
    %c0_i32 = arith.constant 0 : i32
    %c0_i32_0 = arith.constant 0 : i32
    return %arg0, %c0_i32 : i32, i32
  }
}

module attributes {stable_mosaic.version = 11 : i64} {
  func.func @kernel(%arg0: i32, %arg1: memref<16x32xf32, #tpu.memory_space<vmem>>, %arg2: memref<16x32xf32, #tpu.memory_space<vmem>>, %arg3: memref<32x32xbf16, #tpu.memory_space<vmem>>, %arg4: memref<32x32xbf16, #tpu.memory_space<vmem>>, %arg5: memref<1x32xf32, #tpu.memory_space<vmem>>, %arg6: memref<32x32xbf16, #tpu.memory_space<vmem>>, %arg7: memref<1x32xf32, #tpu.memory_space<vmem>>, %arg8: memref<32x32xbf16, #tpu.memory_space<vmem>>, %arg9: memref<1x32xf32, #tpu.memory_space<vmem>>, %arg10: memref<1x32xf32, #tpu.memory_space<vmem>>, %arg11: memref<1x32xf32, #tpu.memory_space<vmem>>, %arg12: memref<16x32xf32, #tpu.memory_space<vmem>>) attributes {dimension_semantics = [#tpu.dimension_semantics<parallel>], iteration_bounds = array<i64: 1>, scalar_prefetch = 0 : i64, scratch_operands = 0 : i64, tpu.core_type = #tpu.core_type<tc>, window_params = [{transform_indices = @transform_0, window_bounds = array<i64: 16, 32>}, {transform_indices = @transform_1, window_bounds = array<i64: 16, 32>}, {pipeline_mode = #tpu.pipeline_mode<synchronous>, transform_indices = @transform_2, window_bounds = array<i64: 32, 32>}, {pipeline_mode = #tpu.pipeline_mode<synchronous>, transform_indices = @transform_3, window_bounds = array<i64: 32, 32>}, {pipeline_mode = #tpu.pipeline_mode<synchronous>, transform_indices = @transform_4, window_bounds = array<i64: 1, 32>}, {pipeline_mode = #tpu.pipeline_mode<synchronous>, transform_indices = @transform_5, window_bounds = array<i64: 32, 32>}, {pipeline_mode = #tpu.pipeline_mode<synchronous>, transform_indices = @transform_6, window_bounds = array<i64: 1, 32>}, {pipeline_mode = #tpu.pipeline_mode<synchronous>, transform_indices = @transform_7, window_bounds = array<i64: 32, 32>}, {pipeline_mode = #tpu.pipeline_mode<synchronous>, transform_indices = @transform_8, window_bounds = array<i64: 1, 32>}, {pipeline_mode = #tpu.pipeline_mode<synchronous>, transform_indices = @transform_9, window_bounds = array<i64: 1, 32>}, {pipeline_mode = #tpu.pipeline_mode<synchronous>, transform_indices = @transform_10, window_bounds = array<i64: 1, 32>}, {transform_indices = @transform_11, window_bounds = array<i64: 16, 32>}]} {
    %c0 = arith.constant 0 : index
    %c0_0 = arith.constant 0 : index
    %0 = vector.load %arg3[%c0, %c0_0] : memref<32x32xbf16, #tpu.memory_space<vmem>>, vector<32x32xbf16>
    %c0_1 = arith.constant 0 : index
    %c0_2 = arith.constant 0 : index
    %1 = vector.load %arg1[%c0_1, %c0_2] : memref<16x32xf32, #tpu.memory_space<vmem>>, vector<16x32xf32>
    %2 = arith.truncf %1 : vector<16x32xf32> to vector<16x32xbf16>
    %cst = arith.constant dense<0.000000e+00> : vector<16x32xf32>
    %3 = tpu.matmul %2, %0, %cst {dimension_numbers = #tpu.dot_dimension_numbers<[1], [0], [0], [1], [0, 0, 1, 1], [], []>} : vector<16x32xbf16>, vector<32x32xbf16>, vector<16x32xf32> -> vector<16x32xf32>
    %c0_3 = arith.constant 0 : index
    %c0_4 = arith.constant 0 : index
    %4 = vector.load %arg4[%c0_3, %c0_4] : memref<32x32xbf16, #tpu.memory_space<vmem>>, vector<32x32xbf16>
    %c0_5 = arith.constant 0 : index
    %c0_6 = arith.constant 0 : index
    %5 = vector.load %arg2[%c0_5, %c0_6] : memref<16x32xf32, #tpu.memory_space<vmem>>, vector<16x32xf32>
    %6 = arith.truncf %5 : vector<16x32xf32> to vector<16x32xbf16>
    %cst_7 = arith.constant dense<0.000000e+00> : vector<16x32xf32>
    %7 = tpu.matmul %6, %4, %cst_7 {dimension_numbers = #tpu.dot_dimension_numbers<[1], [0], [0], [1], [0, 0, 1, 1], [], []>} : vector<16x32xbf16>, vector<32x32xbf16>, vector<16x32xf32> -> vector<16x32xf32>
    %8 = arith.addf %3, %7 : vector<16x32xf32>
    %c0_8 = arith.constant 0 : index
    %c0_9 = arith.constant 0 : index
    %9 = vector.load %arg5[%c0_8, %c0_9] : memref<1x32xf32, #tpu.memory_space<vmem>>, vector<1x32xf32>
    %10 = vector.broadcast %9 : vector<1x32xf32> to vector<16x32xf32>
    %11 = arith.addf %8, %10 : vector<16x32xf32>
    %cst_10 = arith.constant 0.000000e+00 : f32
    %12 = vector.broadcast %cst_10 : f32 to vector<16x32xf32>
    %13 = arith.maximumf %11, %12 : vector<16x32xf32>
    %c0_11 = arith.constant 0 : index
    %c0_12 = arith.constant 0 : index
    %14 = vector.load %arg6[%c0_11, %c0_12] : memref<32x32xbf16, #tpu.memory_space<vmem>>, vector<32x32xbf16>
    %c0_13 = arith.constant 0 : index
    %c0_14 = arith.constant 0 : index
    %15 = vector.load %arg7[%c0_13, %c0_14] : memref<1x32xf32, #tpu.memory_space<vmem>>, vector<1x32xf32>
    %16 = arith.truncf %13 : vector<16x32xf32> to vector<16x32xbf16>
    %cst_15 = arith.constant dense<0.000000e+00> : vector<16x32xf32>
    %17 = tpu.matmul %16, %14, %cst_15 {dimension_numbers = #tpu.dot_dimension_numbers<[1], [0], [0], [1], [0, 0, 1, 1], [], []>} : vector<16x32xbf16>, vector<32x32xbf16>, vector<16x32xf32> -> vector<16x32xf32>
    %18 = vector.broadcast %15 : vector<1x32xf32> to vector<16x32xf32>
    %19 = arith.addf %17, %18 : vector<16x32xf32>
    %cst_16 = arith.constant 0.000000e+00 : f32
    %20 = vector.broadcast %cst_16 : f32 to vector<16x32xf32>
    %21 = arith.maximumf %19, %20 : vector<16x32xf32>
    %c0_17 = arith.constant 0 : index
    %c0_18 = arith.constant 0 : index
    %22 = vector.load %arg8[%c0_17, %c0_18] : memref<32x32xbf16, #tpu.memory_space<vmem>>, vector<32x32xbf16>
    %c0_19 = arith.constant 0 : index
    %c0_20 = arith.constant 0 : index
    %23 = vector.load %arg9[%c0_19, %c0_20] : memref<1x32xf32, #tpu.memory_space<vmem>>, vector<1x32xf32>
    %24 = arith.truncf %21 : vector<16x32xf32> to vector<16x32xbf16>
    %cst_21 = arith.constant dense<0.000000e+00> : vector<16x32xf32>
    %25 = tpu.matmul %24, %22, %cst_21 {dimension_numbers = #tpu.dot_dimension_numbers<[1], [0], [0], [1], [0, 0, 1, 1], [], []>} : vector<16x32xbf16>, vector<32x32xbf16>, vector<16x32xf32> -> vector<16x32xf32>
    %26 = vector.broadcast %23 : vector<1x32xf32> to vector<16x32xf32>
    %27 = arith.addf %25, %26 : vector<16x32xf32>
    %c0_22 = arith.constant 0 : index
    %c0_23 = arith.constant 0 : index
    %28 = vector.load %arg10[%c0_22, %c0_23] : memref<1x32xf32, #tpu.memory_space<vmem>>, vector<1x32xf32>
    %c0_24 = arith.constant 0 : index
    %c0_25 = arith.constant 0 : index
    %29 = vector.load %arg11[%c0_24, %c0_25] : memref<1x32xf32, #tpu.memory_space<vmem>>, vector<1x32xf32>
    %cst_26 = arith.constant dense<0.000000e+00> : vector<16xf32>
    %30 = vector.multi_reduction <add>, %27, %cst_26 [1] : vector<16x32xf32> to vector<16xf32>
    %31 = vector.shape_cast %30 : vector<16xf32> to vector<16x1xf32>
    %cst_27 = arith.constant 3.200000e+01 : f32
    %32 = vector.broadcast %cst_27 : f32 to vector<16x1xf32>
    %33 = arith.divf %31, %32 : vector<16x1xf32>
    %34 = vector.broadcast %33 : vector<16x1xf32> to vector<16x32xf32>
    %35 = arith.subf %27, %34 : vector<16x32xf32>
    %36 = arith.mulf %35, %35 : vector<16x32xf32>
    %cst_28 = arith.constant dense<0.000000e+00> : vector<16xf32>
    %37 = vector.multi_reduction <add>, %36, %cst_28 [1] : vector<16x32xf32> to vector<16xf32>
    %38 = vector.shape_cast %37 : vector<16xf32> to vector<16x1xf32>
    %cst_29 = arith.constant 3.200000e+01 : f32
    %39 = vector.broadcast %cst_29 : f32 to vector<16x1xf32>
    %40 = arith.divf %38, %39 : vector<16x1xf32>
    %41 = vector.broadcast %33 : vector<16x1xf32> to vector<16x32xf32>
    %42 = arith.subf %27, %41 : vector<16x32xf32>
    %cst_30 = arith.constant 9.99999974E-6 : f32
    %43 = vector.broadcast %cst_30 : f32 to vector<16x1xf32>
    %44 = arith.addf %40, %43 : vector<16x1xf32>
    %45 = math.rsqrt %44 : vector<16x1xf32>
    %46 = vector.broadcast %45 : vector<16x1xf32> to vector<16x32xf32>
    %47 = arith.mulf %42, %46 : vector<16x32xf32>
    %48 = vector.broadcast %28 : vector<1x32xf32> to vector<16x32xf32>
    %49 = arith.mulf %47, %48 : vector<16x32xf32>
    %50 = vector.broadcast %29 : vector<1x32xf32> to vector<16x32xf32>
    %51 = arith.addf %49, %50 : vector<16x32xf32>
    %c0_31 = arith.constant 0 : index
    %c0_32 = arith.constant 0 : index
    %52 = vector.load %arg1[%c0_31, %c0_32] : memref<16x32xf32, #tpu.memory_space<vmem>>, vector<16x32xf32>
    %53 = arith.addf %51, %52 : vector<16x32xf32>
    %c0_33 = arith.constant 0 : index
    %c0_34 = arith.constant 0 : index
    %54 = vector.load %arg12[%c0_33, %c0_34] : memref<16x32xf32, #tpu.memory_space<vmem>>, vector<16x32xf32>
    tpu.vector_store %arg12[%c0_33, %c0_34], %53 {strides = array<i32>} : memref<16x32xf32, #tpu.memory_space<vmem>>, vector<16x32xf32>,
    return
  }
  func.func @transform_0(%arg0: i32) -> (i32, i32) {
    %c0_i32 = arith.constant 0 : i32
    %c0_i32_0 = arith.constant 0 : i32
    return %arg0, %c0_i32 : i32, i32
  }
  func.func @transform_1(%arg0: i32) -> (i32, i32) {
    %c0_i32 = arith.constant 0 : i32
    %c0_i32_0 = arith.constant 0 : i32
    return %arg0, %c0_i32 : i32, i32
  }
  func.func @transform_2(%arg0: i32) -> (i32, i32) {
    %c0_i32 = arith.constant 0 : i32
    %c0_i32_0 = arith.constant 0 : i32
    %c0_i32_1 = arith.constant 0 : i32
    return %c0_i32, %c0_i32_0 : i32, i32
  }
  func.func @transform_3(%arg0: i32) -> (i32, i32) {
    %c0_i32 = arith.constant 0 : i32
    %c0_i32_0 = arith.constant 0 : i32
    %c0_i32_1 = arith.constant 0 : i32
    return %c0_i32, %c0_i32_0 : i32, i32
  }
  func.func @transform_4(%arg0: i32) -> (i32, i32) {
    %c0_i32 = arith.constant 0 : i32
    %c0_i32_0 = arith.constant 0 : i32
    %c0_i32_1 = arith.constant 0 : i32
    return %c0_i32, %c0_i32_0 : i32, i32
  }
  func.func @transform_5(%arg0: i32) -> (i32, i32) {
    %c0_i32 = arith.constant 0 : i32
    %c0_i32_0 = arith.constant 0 : i32
    %c0_i32_1 = arith.constant 0 : i32
    return %c0_i32, %c0_i32_0 : i32, i32
  }
  func.func @transform_6(%arg0: i32) -> (i32, i32) {
    %c0_i32 = arith.constant 0 : i32
    %c0_i32_0 = arith.constant 0 : i32
    %c0_i32_1 = arith.constant 0 : i32
    return %c0_i32, %c0_i32_0 : i32, i32
  }
  func.func @transform_7(%arg0: i32) -> (i32, i32) {
    %c0_i32 = arith.constant 0 : i32
    %c0_i32_0 = arith.constant 0 : i32
    %c0_i32_1 = arith.constant 0 : i32
    return %c0_i32, %c0_i32_0 : i32, i32
  }
  func.func @transform_8(%arg0: i32) -> (i32, i32) {
    %c0_i32 = arith.constant 0 : i32
    %c0_i32_0 = arith.constant 0 : i32
    %c0_i32_1 = arith.constant 0 : i32
    return %c0_i32, %c0_i32_0 : i32, i32
  }
  func.func @transform_9(%arg0: i32) -> (i32, i32) {
    %c0_i32 = arith.constant 0 : i32
    %c0_i32_0 = arith.constant 0 : i32
    %c0_i32_1 = arith.constant 0 : i32
    return %c0_i32, %c0_i32_0 : i32, i32
  }
  func.func @transform_10(%arg0: i32) -> (i32, i32) {
    %c0_i32 = arith.constant 0 : i32
    %c0_i32_0 = arith.constant 0 : i32
    %c0_i32_1 = arith.constant 0 : i32
    return %c0_i32, %c0_i32_0 : i32, i32
  }
  func.func @transform_11(%arg0: i32) -> (i32, i32) {
    %c0_i32 = arith.constant 0 : i32
    %c0_i32_0 = arith.constant 0 : i32
    return %arg0, %c0_i32 : i32, i32
  }
}

module attributes {stable_mosaic.version = 11 : i64} {
  func.func @kernel(%arg0: i32, %arg1: memref<16x32xf32, #tpu.memory_space<vmem>>, %arg2: memref<32x32xbf16, #tpu.memory_space<vmem>>, %arg3: memref<1x32xf32, #tpu.memory_space<vmem>>, %arg4: memref<32x32xbf16, #tpu.memory_space<vmem>>, %arg5: memref<1x32xf32, #tpu.memory_space<vmem>>, %arg6: memref<32x3xbf16, #tpu.memory_space<vmem>>, %arg7: memref<1x3xf32, #tpu.memory_space<vmem>>, %arg8: memref<16x3xf32, #tpu.memory_space<vmem>>) attributes {dimension_semantics = [#tpu.dimension_semantics<parallel>], iteration_bounds = array<i64: 1>, scalar_prefetch = 0 : i64, scratch_operands = 0 : i64, tpu.core_type = #tpu.core_type<tc>, window_params = [{transform_indices = @transform_0, window_bounds = array<i64: 16, 32>}, {pipeline_mode = #tpu.pipeline_mode<synchronous>, transform_indices = @transform_1, window_bounds = array<i64: 32, 32>}, {pipeline_mode = #tpu.pipeline_mode<synchronous>, transform_indices = @transform_2, window_bounds = array<i64: 1, 32>}, {pipeline_mode = #tpu.pipeline_mode<synchronous>, transform_indices = @transform_3, window_bounds = array<i64: 32, 32>}, {pipeline_mode = #tpu.pipeline_mode<synchronous>, transform_indices = @transform_4, window_bounds = array<i64: 1, 32>}, {pipeline_mode = #tpu.pipeline_mode<synchronous>, transform_indices = @transform_5, window_bounds = array<i64: 32, 3>}, {pipeline_mode = #tpu.pipeline_mode<synchronous>, transform_indices = @transform_6, window_bounds = array<i64: 1, 3>}, {transform_indices = @transform_7, window_bounds = array<i64: 16, 3>}]} {
    %c0 = arith.constant 0 : index
    %c0_0 = arith.constant 0 : index
    %0 = vector.load %arg2[%c0, %c0_0] : memref<32x32xbf16, #tpu.memory_space<vmem>>, vector<32x32xbf16>
    %c0_1 = arith.constant 0 : index
    %c0_2 = arith.constant 0 : index
    %1 = vector.load %arg1[%c0_1, %c0_2] : memref<16x32xf32, #tpu.memory_space<vmem>>, vector<16x32xf32>
    %2 = arith.truncf %1 : vector<16x32xf32> to vector<16x32xbf16>
    %cst = arith.constant dense<0.000000e+00> : vector<16x32xf32>
    %3 = tpu.matmul %2, %0, %cst {dimension_numbers = #tpu.dot_dimension_numbers<[1], [0], [0], [1], [0, 0, 1, 1], [], []>} : vector<16x32xbf16>, vector<32x32xbf16>, vector<16x32xf32> -> vector<16x32xf32>
    %c0_3 = arith.constant 0 : index
    %c0_4 = arith.constant 0 : index
    %4 = vector.load %arg3[%c0_3, %c0_4] : memref<1x32xf32, #tpu.memory_space<vmem>>, vector<1x32xf32>
    %5 = vector.broadcast %4 : vector<1x32xf32> to vector<16x32xf32>
    %6 = arith.addf %3, %5 : vector<16x32xf32>
    %cst_5 = arith.constant 0.000000e+00 : f32
    %7 = vector.broadcast %cst_5 : f32 to vector<16x32xf32>
    %8 = arith.maximumf %6, %7 : vector<16x32xf32>
    %c0_6 = arith.constant 0 : index
    %c0_7 = arith.constant 0 : index
    %9 = vector.load %arg4[%c0_6, %c0_7] : memref<32x32xbf16, #tpu.memory_space<vmem>>, vector<32x32xbf16>
    %c0_8 = arith.constant 0 : index
    %c0_9 = arith.constant 0 : index
    %10 = vector.load %arg5[%c0_8, %c0_9] : memref<1x32xf32, #tpu.memory_space<vmem>>, vector<1x32xf32>
    %11 = arith.truncf %8 : vector<16x32xf32> to vector<16x32xbf16>
    %cst_10 = arith.constant dense<0.000000e+00> : vector<16x32xf32>
    %12 = tpu.matmul %11, %9, %cst_10 {dimension_numbers = #tpu.dot_dimension_numbers<[1], [0], [0], [1], [0, 0, 1, 1], [], []>} : vector<16x32xbf16>, vector<32x32xbf16>, vector<16x32xf32> -> vector<16x32xf32>
    %13 = vector.broadcast %10 : vector<1x32xf32> to vector<16x32xf32>
    %14 = arith.addf %12, %13 : vector<16x32xf32>
    %cst_11 = arith.constant 0.000000e+00 : f32
    %15 = vector.broadcast %cst_11 : f32 to vector<16x32xf32>
    %16 = arith.maximumf %14, %15 : vector<16x32xf32>
    %c0_12 = arith.constant 0 : index
    %c0_13 = arith.constant 0 : index
    %17 = vector.load %arg6[%c0_12, %c0_13] : memref<32x3xbf16, #tpu.memory_space<vmem>>, vector<32x3xbf16>
    %c0_14 = arith.constant 0 : index
    %c0_15 = arith.constant 0 : index
    %18 = vector.load %arg7[%c0_14, %c0_15] : memref<1x3xf32, #tpu.memory_space<vmem>>, vector<1x3xf32>
    %19 = arith.truncf %16 : vector<16x32xf32> to vector<16x32xbf16>
    %cst_16 = arith.constant dense<0.000000e+00> : vector<16x3xf32>
    %20 = tpu.matmul %19, %17, %cst_16 {dimension_numbers = #tpu.dot_dimension_numbers<[1], [0], [0], [1], [0, 0, 1, 1], [], []>} : vector<16x32xbf16>, vector<32x3xbf16>, vector<16x3xf32> -> vector<16x3xf32>
    %21 = vector.broadcast %18 : vector<1x3xf32> to vector<16x3xf32>
    %22 = arith.addf %20, %21 : vector<16x3xf32>
    %c0_17 = arith.constant 0 : index
    %c0_18 = arith.constant 0 : index
    %23 = vector.load %arg8[%c0_17, %c0_18] : memref<16x3xf32, #tpu.memory_space<vmem>>, vector<16x3xf32>
    tpu.vector_store %arg8[%c0_17, %c0_18], %22 {strides = array<i32>} : memref<16x3xf32, #tpu.memory_space<vmem>>, vector<16x3xf32>,
    return
  }
  func.func @transform_0(%arg0: i32) -> (i32, i32) {
    %c0_i32 = arith.constant 0 : i32
    %c0_i32_0 = arith.constant 0 : i32
    return %arg0, %c0_i32 : i32, i32
  }
  func.func @transform_1(%arg0: i32) -> (i32, i32) {
    %c0_i32 = arith.constant 0 : i32
    %c0_i32_0 = arith.constant 0 : i32
    %c0_i32_1 = arith.constant 0 : i32
    return %c0_i32, %c0_i32_0 : i32, i32
  }
  func.func @transform_2(%arg0: i32) -> (i32, i32) {
    %c0_i32 = arith.constant 0 : i32
    %c0_i32_0 = arith.constant 0 : i32
    %c0_i32_1 = arith.constant 0 : i32
    return %c0_i32, %c0_i32_0 : i32, i32
  }
  func.func @transform_3(%arg0: i32) -> (i32, i32) {
    %c0_i32 = arith.constant 0 : i32
    %c0_i32_0 = arith.constant 0 : i32
    %c0_i32_1 = arith.constant 0 : i32
    return %c0_i32, %c0_i32_0 : i32, i32
  }
  func.func @transform_4(%arg0: i32) -> (i32, i32) {
    %c0_i32 = arith.constant 0 : i32
    %c0_i32_0 = arith.constant 0 : i32
    %c0_i32_1 = arith.constant 0 : i32
    return %c0_i32, %c0_i32_0 : i32, i32
  }
  func.func @transform_5(%arg0: i32) -> (i32, i32) {
    %c0_i32 = arith.constant 0 : i32
    %c0_i32_0 = arith.constant 0 : i32
    %c0_i32_1 = arith.constant 0 : i32
    return %c0_i32, %c0_i32_0 : i32, i32
  }
  func.func @transform_6(%arg0: i32) -> (i32, i32) {
    %c0_i32 = arith.constant 0 : i32
    %c0_i32_0 = arith.constant 0 : i32
    %c0_i32_1 = arith.constant 0 : i32
    return %c0_i32, %c0_i32_0 : i32, i32
  }
  func.func @transform_7(%arg0: i32) -> (i32, i32) {
    %c0_i32 = arith.constant 0 : i32
    %c0_i32_0 = arith.constant 0 : i32
    return %arg0, %c0_i32 : i32, i32
  }
}

</mosaic_0001>

<llo_original>
// kernel: meshgraphnet_forward.10
$region0: #{meshgraphnet_forward.10}
  #allocation0 [shape = 'u32[]', space=smem, size = 0x4, offset = 0x4, fixed_abs, tag = 'smem constant byte address 0x4 - core index']
  #allocation1 [shape = 'u32[144,128]{1,0:T(1,128)}', space=vmem, size = 0x12000, scoped, tag = 'internal scratch']
  %s0 = inlined_call_operand.vmem [shape: f32[32,3], index: 0, kind: input, shape index: {}]
  %s1 = inlined_call_operand.vmem [shape: bf16[3,32], index: 1, kind: input, shape index: {}]
  %s2 = inlined_call_operand.vmem [shape: f32[1,32], index: 2, kind: input, shape index: {}]
  %s3 = inlined_call_operand.vmem [shape: bf16[32,32], index: 3, kind: input, shape index: {}]
  %s4 = inlined_call_operand.vmem [shape: f32[1,32], index: 4, kind: input, shape index: {}]
  %s5 = inlined_call_operand.vmem [shape: bf16[32,32], index: 5, kind: input, shape index: {}]
  %s6 = inlined_call_operand.vmem [shape: f32[1,32], index: 6, kind: input, shape index: {}]
  %s7 = inlined_call_operand.vmem [shape: f32[1,32], index: 7, kind: input, shape index: {}]
  %s8 = inlined_call_operand.vmem [shape: f32[1,32], index: 8, kind: input, shape index: {}]
  %s9 = inlined_call_operand.vmem [shape: f32[32,32], index: 9, kind: output, shape index: {}]
  %s10 = sld [smem:[#allocation0]]
  $region46: #{meshgraphnet_forward.10} parent=0
    _
  %s12 = ssub.s32 1, %s10
  %s13 = scalar_select 0, %s12, %s10
  // Predicated region
  $region2: #{meshgraphnet_forward.10} parent=0 // pred_check
    _
  $region3: #{meshgraphnet_forward.10} parent=0 // pred_check_branch
    %15 = sbr.rel (0) target = $region5
  $region4: #{meshgraphnet_forward.10} parent=0 // pred_region
    _
  $region5: #{meshgraphnet_forward.10} parent=0 // pred_fallthru
    _
  // Predicated region
  $region6: #{meshgraphnet_forward.10} parent=0 // pred_check
    _
  $region7: #{meshgraphnet_forward.10} parent=0 // pred_check_branch
    %17 = sbr.rel (0) target = $region9
  $region8: #{meshgraphnet_forward.10} parent=0 // pred_region
    _
  $region9: #{meshgraphnet_forward.10} parent=0 // pred_fallthru
    _
  // Predicated region
  $region10: #{meshgraphnet_forward.10} parent=0 // pred_check
    _
  $region11: #{meshgraphnet_forward.10} parent=0 // pred_check_branch
    %19 = sbr.rel (0) target = $region13
  $region12: #{meshgraphnet_forward.10} parent=0 // pred_region
    _
  $region13: #{meshgraphnet_forward.10} parent=0 // pred_fallthru
    _
  // Predicated region
  $region14: #{meshgraphnet_forward.10} parent=0 // pred_check
    _
  $region15: #{meshgraphnet_forward.10} parent=0 // pred_check_branch
    %21 = sbr.rel (0) target = $region17
  $region16: #{meshgraphnet_forward.10} parent=0 // pred_region
    _
  $region17: #{meshgraphnet_forward.10} parent=0 // pred_fallthru
    _
  // Predicated region
  $region18: #{meshgraphnet_forward.10} parent=0 // pred_check
    _
  $region19: #{meshgraphnet_forward.10} parent=0 // pred_check_branch
    %23 = sbr.rel (0) target = $region21
  $region20: #{meshgraphnet_forward.10} parent=0 // pred_region
    _
  $region21: #{meshgraphnet_forward.10} parent=0 // pred_fallthru
    _
  // Predicated region
  $region22: #{meshgraphnet_forward.10} parent=0 // pred_check
    _
  $region23: #{meshgraphnet_forward.10} parent=0 // pred_check_branch
    %25 = sbr.rel (0) target = $region25
  $region24: #{meshgraphnet_forward.10} parent=0 // pred_region
    _
  $region25: #{meshgraphnet_forward.10} parent=0 // pred_fallthru
    _
  // Predicated region
  $region26: #{meshgraphnet_forward.10} parent=0 // pred_check
    _
  $region27: #{meshgraphnet_forward.10} parent=0 // pred_check_branch
    %27 = sbr.rel (0) target = $region29
  $region28: #{meshgraphnet_forward.10} parent=0 // pred_region
    _
  $region29: #{meshgraphnet_forward.10} parent=0 // pred_fallthru
    _
  // Predicated region
  $region30: #{meshgraphnet_forward.10} parent=0 // pred_check
    _
  $region31: #{meshgraphnet_forward.10} parent=0 // pred_check_branch
    %29 = sbr.rel (0) target = $region33
  $region32: #{meshgraphnet_forward.10} parent=0 // pred_region
    _
  $region33: #{meshgraphnet_forward.10} parent=0 // pred_fallthru
    _
  // Predicated region
  $region34: #{meshgraphnet_forward.10} parent=0 // pred_check
    _
  $region35: #{meshgraphnet_forward.10} parent=0 // pred_check_branch
    %31 = sbr.rel (0) target = $region37
  $region36: #{meshgraphnet_forward.10} parent=0 // pred_region
    _
  $region37: #{meshgraphnet_forward.10} parent=0 // pred_fallthru
    _
  %v33 = vld [vmem:[%s1] sm:$0x3]
  %v34 = vld [vmem:[%s0] sm:$0xff]
  %v35 = vld [vmem:[%s0 + $0x8] sm:$0xff]
  %v36 = vld [vmem:[%s0 + $0x10] sm:$0xff]
  %v37 = vld [vmem:[%s0 + $0x18] sm:$0xff]
  %v38 = vpack.c.bf16 %v35, %v34
  %v39 = vpack.c.bf16 %v37, %v36
  %v40 = vld [vmem:[%s2] sm:$0x1]
  %v42 = vlaneseq
  %v43 = vshrl.u32 %v42, 7
  %v44 = vsub.s32 0, %v43
  %v45 = vrot.slane %v40, %v44
  %vm47 = vcmask 23552
  %v49 = vsel %vm47, %v38, 0
  %v52 = vsel %vm47, %v39, 0
  %vm54 = vcmask 1040384
  %vm55 = vcmask 1041408
  %v56 = vsel %vm54, 4294967295, 65535
  %v57 = vsel %vm55, %v56, 0
  %v59 = vand.u32 %v33, %v57
  %61 = vmatprep.subr.bf16.mxu0 0
  %62 = vmatpush1.bf16.msra.mxu0 %v59
  %63 = vmatprep.subr.bf16.mxu0 0
  %64 = vmatpush1.bf16.msra.mxu0 0
  %65 = vmatprep.subr.bf16.mxu0 0
  %66 = vmatpush1.bf16.msra.mxu0 0
  %67 = vmatprep.subr.bf16.mxu0 0
  %68 = vmatpush1.bf16.msra.mxu0 0
  %69 = vmatprep.subr.bf16.mxu0 0
  %70 = vmatpush1.bf16.msra.mxu0 0
  %71 = vmatprep.subr.bf16.mxu0 0
  %72 = vmatpush1.bf16.msra.mxu0 0
  %73 = vmatprep.subr.bf16.mxu0 0
  %74 = vmatpush1.bf16.msra.mxu0 0
  %75 = vmatprep.subr.bf16.mxu0 0
  %76 = vmatpush1.bf16.msra.mxu0 0
  %77 = vmatprep.subr.bf16.mxu0 0
  %78 = vmatpush1.bf16.msra.mxu0 0
  %79 = vmatprep.subr.bf16.mxu0 0
  %80 = vmatpush1.bf16.msra.mxu0 0
  %81 = vmatprep.subr.bf16.mxu0 0
  %82 = vmatpush1.bf16.msra.mxu0 0
  %83 = vmatprep.subr.bf16.mxu0 0
  %84 = vmatpush1.bf16.msra.mxu0 0
  %85 = vmatprep.subr.bf16.mxu0 0
  %86 = vmatpush1.bf16.msra.mxu0 0
  %87 = vmatprep.subr.bf16.mxu0 0
  %88 = vmatpush1.bf16.msra.mxu0 0
  %89 = vmatprep.subr.bf16.mxu0 0
  %90 = vmatpush1.bf16.msra.mxu0 0
  %91 = vmatprep.subr.bf16.mxu0 0
  %92 = vmatpush1.bf16.msra.mxu0 0
  %93 = vmatprep.mubr.bf16.mxu0 0
  %94 = vmatmul.mubr.bf16.gmra.mrb[0].mxu0 %v49
  %v95 = vpop.f32.mrb[0].mxu0
  %v96 = vadd.f32 %v45, %v95
  %v97 = vpop.f32.mrb[0].mxu0
  %v98 = vpop.f32.mrb[0].mxu0
  %v99 = vadd.f32 %v45, %v98
  %v100 = vpop.f32.mrb[0].mxu0
  %101 = vmatprep.mubr.bf16.mxu0 0
  %102 = vmatmul.mubr.bf16.gmra.mrb[0].mxu0 %v52
  %v103 = vpop.f32.mrb[0].mxu0
  %v104 = vadd.f32 %v45, %v103
  %v105 = vpop.f32.mrb[0].mxu0
  %v106 = vpop.f32.mrb[0].mxu0
  %v107 = vadd.f32 %v45, %v106
  %v108 = vpop.f32.mrb[0].mxu0
  %109 = vdwg.mxu0
  %v110 = vmax.f32 %v96, 0.0
  %v111 = vmax.f32 %v99, 0.0
  %v112 = vmax.f32 %v104, 0.0
  %v113 = vmax.f32 %v107, 0.0
  %v114 = vld [vmem:[%s3] sm:$0xf]
  %v115 = vld [vmem:[%s3 + $0x4] sm:$0xf]
  %v116 = vld [vmem:[%s3 + $0x8] sm:$0xf]
  %v117 = vld [vmem:[%s3 + $0xc] sm:$0xf]
  %v118 = vld [vmem:[%s4] sm:$0x1]
  %v119 = vpack.c.bf16 %v111, %v110
  %v120 = vpack.c.bf16 %v113, %v112
  %v122 = vlaneseq
  %v123 = vshrl.u32 %v122, 7
  %v124 = vsub.s32 0, %v123
  %v125 = vrot.slane %v118, %v124
  %v131 = vunpack.c.l.b16 %v114
  %v132 = vunpack.c.l.b16 %v115
  %v133 = vunpack.c.l.b16 %v116
  %v134 = vunpack.c.l.b16 %v117
  %v135 = vpack.c.b16 %v132, %v131
  %v136 = vpack.c.b16 %v134, %v133
  %vm139 = vcmask 261120
  %v141 = vsel %vm139, %v119, 0
  %v144 = vsel %vm139, %v120, 0
  %146 = vmatprep.subr.bf16.mxu0 0
  %147 = vmatpush1.bf16.msra.mxu0 %v135
  %148 = vmatprep.subr.bf16.mxu0 0
  %149 = vmatpush1.bf16.msra.mxu0 %v136
  %150 = vmatprep.subr.bf16.mxu0 0
  %151 = vmatpush1.bf16.msra.mxu0 0
  %152 = vmatprep.subr.bf16.mxu0 0
  %153 = vmatpush1.bf16.msra.mxu0 0
  %154 = vmatprep.subr.bf16.mxu0 0
  %155 = vmatpush1.bf16.msra.mxu0 0
  %156 = vmatprep.subr.bf16.mxu0 0
  %157 = vmatpush1.bf16.msra.mxu0 0
  %158 = vmatprep.subr.bf16.mxu0 0
  %159 = vmatpush1.bf16.msra.mxu0 0
  %160 = vmatprep.subr.bf16.mxu0 0
  %161 = vmatpush1.bf16.msra.mxu0 0
  %162 = vmatprep.subr.bf16.mxu0 0
  %163 = vmatpush1.bf16.msra.mxu0 0
  %164 = vmatprep.subr.bf16.mxu0 0
  %165 = vmatpush1.bf16.msra.mxu0 0
  %166 = vmatprep.subr.bf16.mxu0 0
  %167 = vmatpush1.bf16.msra.mxu0 0
  %168 = vmatprep.subr.bf16.mxu0 0
  %169 = vmatpush1.bf16.msra.mxu0 0
  %170 = vmatprep.subr.bf16.mxu0 0
  %171 = vmatpush1.bf16.msra.mxu0 0
  %172 = vmatprep.subr.bf16.mxu0 0
  %173 = vmatpush1.bf16.msra.mxu0 0
  %174 = vmatprep.subr.bf16.mxu0 0
  %175 = vmatpush1.bf16.msra.mxu0 0
  %176 = vmatprep.subr.bf16.mxu0 0
  %177 = vmatpush1.bf16.msra.mxu0 0
  %178 = vmatprep.mubr.bf16.mxu0 0
  %179 = vmatmul.mubr.bf16.gmra.mrb[0].mxu0 %v141
  %v180 = vpop.f32.mrb[0].mxu0
  %v181 = vadd.f32 %v125, %v180
  %v182 = vpop.f32.mrb[0].mxu0
  %v183 = vpop.f32.mrb[0].mxu0
  %v184 = vadd.f32 %v125, %v183
  %v185 = vpop.f32.mrb[0].mxu0
  %186 = vmatprep.mubr.bf16.mxu0 0
  %187 = vmatmul.mubr.bf16.gmra.mrb[0].mxu0 %v144
  %v188 = vpop.f32.mrb[0].mxu0
  %v189 = vadd.f32 %v125, %v188
  %v190 = vpop.f32.mrb[0].mxu0
  %v191 = vpop.f32.mrb[0].mxu0
  %v192 = vadd.f32 %v125, %v191
  %v193 = vpop.f32.mrb[0].mxu0
  %194 = vdwg.mxu0
  %v195 = vmax.f32 %v181, 0.0
  %v196 = vmax.f32 %v184, 0.0
  %v197 = vmax.f32 %v189, 0.0
  %v198 = vmax.f32 %v192, 0.0
  %v199 = vld [vmem:[%s5] sm:$0xf]
  %v200 = vld [vmem:[%s5 + $0x4] sm:$0xf]
  %v201 = vld [vmem:[%s5 + $0x8] sm:$0xf]
  %v202 = vld [vmem:[%s5 + $0xc] sm:$0xf]
  %v203 = vld [vmem:[%s6] sm:$0x1]
  %v204 = vpack.c.bf16 %v196, %v195
  %v205 = vpack.c.bf16 %v198, %v197
  %v207 = vlaneseq
  %v208 = vshrl.u32 %v207, 7
  %v209 = vsub.s32 0, %v208
  %v210 = vrot.slane %v203, %v209
  %v216 = vunpack.c.l.b16 %v199
  %v217 = vunpack.c.l.b16 %v200
  %v218 = vunpack.c.l.b16 %v201
  %v219 = vunpack.c.l.b16 %v202
  %v220 = vpack.c.b16 %v217, %v216
  %v221 = vpack.c.b16 %v219, %v218
  %v225 = vsel %vm139, %v204, 0
  %v228 = vsel %vm139, %v205, 0
  %230 = vmatprep.subr.bf16.mxu0 0
  %231 = vmatpush1.bf16.msra.mxu0 %v220
  %232 = vmatprep.subr.bf16.mxu0 0
  %233 = vmatpush1.bf16.msra.mxu0 %v221
  %234 = vmatprep.subr.bf16.mxu0 0
  %235 = vmatpush1.bf16.msra.mxu0 0
  %236 = vmatprep.subr.bf16.mxu0 0
  %237 = vmatpush1.bf16.msra.mxu0 0
  %238 = vmatprep.subr.bf16.mxu0 0
  %239 = vmatpush1.bf16.msra.mxu0 0
  %240 = vmatprep.subr.bf16.mxu0 0
  %241 = vmatpush1.bf16.msra.mxu0 0
  %242 = vmatprep.subr.bf16.mxu0 0
  %243 = vmatpush1.bf16.msra.mxu0 0
  %244 = vmatprep.subr.bf16.mxu0 0
  %245 = vmatpush1.bf16.msra.mxu0 0
  %246 = vmatprep.subr.bf16.mxu0 0
  %247 = vmatpush1.bf16.msra.mxu0 0
  %248 = vmatprep.subr.bf16.mxu0 0
  %249 = vmatpush1.bf16.msra.mxu0 0
  %250 = vmatprep.subr.bf16.mxu0 0
  %251 = vmatpush1.bf16.msra.mxu0 0
  %252 = vmatprep.subr.bf16.mxu0 0
  %253 = vmatpush1.bf16.msra.mxu0 0
  %254 = vmatprep.subr.bf16.mxu0 0
  %255 = vmatpush1.bf16.msra.mxu0 0
  %256 = vmatprep.subr.bf16.mxu0 0
  %257 = vmatpush1.bf16.msra.mxu0 0
  %258 = vmatprep.subr.bf16.mxu0 0
  %259 = vmatpush1.bf16.msra.mxu0 0
  %260 = vmatprep.subr.bf16.mxu0 0
  %261 = vmatpush1.bf16.msra.mxu0 0
  %262 = vmatprep.mubr.bf16.mxu0 0
  %263 = vmatmul.mubr.bf16.gmra.mrb[0].mxu0 %v225
  %v264 = vpop.f32.mrb[0].mxu0
  %v265 = vadd.f32 %v210, %v264
  %v266 = vpop.f32.mrb[0].mxu0
  %v267 = vpop.f32.mrb[0].mxu0
  %v268 = vadd.f32 %v210, %v267
  %v269 = vpop.f32.mrb[0].mxu0
  %270 = vmatprep.mubr.bf16.mxu0 0
  %271 = vmatmul.mubr.bf16.gmra.mrb[0].mxu0 %v228
  %v272 = vpop.f32.mrb[0].mxu0
  %v273 = vadd.f32 %v210, %v272
  %v274 = vpop.f32.mrb[0].mxu0
  %v275 = vpop.f32.mrb[0].mxu0
  %v276 = vadd.f32 %v210, %v275
  %v277 = vpop.f32.mrb[0].mxu0
  %278 = vdwg.mxu0
  %v279 = vld [vmem:[%s7] sm:$0x1]
  %v280 = vld [vmem:[%s8] sm:$0x1]
  %v281 = vsel %vm139, %v265, 0.0
  %282 = vadd.xlane.f32.xlu0 %v281
  %v283 = vpop.xlane.xlu0 %282
  %v284 = vsel %vm139, %v268, 0.0
  %285 = vadd.xlane.f32.xlu0 %v284
  %v286 = vpop.xlane.xlu0 %285
  %v287 = vsel %vm139, %v273, 0.0
  %288 = vadd.xlane.f32.xlu0 %v287
  %v289 = vpop.xlane.xlu0 %288
  %v290 = vsel %vm139, %v276, 0.0
  %291 = vadd.xlane.f32.xlu0 %v290
  %v292 = vpop.xlane.xlu0 %291
  %v293 = vrcp.pop 32.0
  %v294 = vmul.f32 %v283, %v293
  %v295 = vmul.f32 %v286, %v293
  %v296 = vmul.f32 %v289, %v293
  %v297 = vmul.f32 %v292, %v293
  %v298 = vsub.f32 %v265, %v294
  %v299 = vsub.f32 %v268, %v295
  %v300 = vsub.f32 %v273, %v296
  %v301 = vsub.f32 %v276, %v297
  %v302 = vmul.f32 %v298, %v298
  %v303 = vmul.f32 %v299, %v299
  %v304 = vmul.f32 %v300, %v300
  %v305 = vmul.f32 %v301, %v301
  %v306 = vsel %vm139, %v302, 0.0
  %307 = vadd.xlane.f32.xlu0 %v306
  %v308 = vpop.xlane.xlu0 %307
  %v309 = vsel %vm139, %v303, 0.0
  %310 = vadd.xlane.f32.xlu0 %v309
  %v311 = vpop.xlane.xlu0 %310
  %v312 = vsel %vm139, %v304, 0.0
  %313 = vadd.xlane.f32.xlu0 %v312
  %v314 = vpop.xlane.xlu0 %313
  %v315 = vsel %vm139, %v305, 0.0
  %316 = vadd.xlane.f32.xlu0 %v315
  %v317 = vpop.xlane.xlu0 %316
  %v318 = vmul.f32 %v308, %v293
  %v319 = vmul.f32 %v311, %v293
  %v320 = vmul.f32 %v314, %v293
  %v321 = vmul.f32 %v317, %v293
  %v322 = vadd.f32 %v318, 1e-05
  %v323 = vadd.f32 %v319, 1e-05
  %v324 = vadd.f32 %v320, 1e-05
  %v325 = vadd.f32 %v321, 1e-05
  %v326 = vrsqrt.pop %v322
  %v327 = vrsqrt.pop %v323
  %v328 = vrsqrt.pop %v324
  %v329 = vrsqrt.pop %v325
  %v330 = vmul.f32 %v298, %v326
  %v331 = vmul.f32 %v299, %v327
  %v332 = vmul.f32 %v300, %v328
  %v333 = vmul.f32 %v301, %v329
  %v335 = vlaneseq
  %v336 = vshrl.u32 %v335, 7
  %v337 = vsub.s32 0, %v336
  %v338 = vrot.slane %v279, %v337
  %v340 = vmul.f32 %v330, %v338
  %v341 = vmul.f32 %v331, %v338
  %v342 = vmul.f32 %v332, %v338
  %v343 = vmul.f32 %v333, %v338
  %v345 = vlaneseq
  %v346 = vshrl.u32 %v345, 7
  %v347 = vsub.s32 0, %v346
  %v348 = vrot.slane %v280, %v347
  %v350 = vadd.f32 %v340, %v348
  %v351 = vadd.f32 %v341, %v348
  %v352 = vadd.f32 %v342, %v348
  %v353 = vadd.f32 %v343, %v348
  %354 = vst.msk [vmem:[%s9] sm:$0xff] %vm139, %v350
  %355 = vst.msk [vmem:[%s9 + $0x8] sm:$0xff] %vm139, %v351
  %356 = vst.msk [vmem:[%s9 + $0x10] sm:$0xff] %vm139, %v352
  %357 = vst.msk [vmem:[%s9 + $0x18] sm:$0xff] %vm139, %v353
  // Predicated region
  $region38: #{meshgraphnet_forward.10} parent=0 // pred_check
    _
  $region39: #{meshgraphnet_forward.10} parent=0 // pred_check_branch
    %359 = sbr.rel (0) target = $region41
  $region40: #{meshgraphnet_forward.10} parent=0 // pred_region
    _
  $region41: #{meshgraphnet_forward.10} parent=0 // pred_fallthru
    _
  // Predicated region
  $region42: #{meshgraphnet_forward.10} parent=0 // pred_check
    _
  $region43: #{meshgraphnet_forward.10} parent=0 // pred_check_branch
    %361 = sbr.rel (0) target = $region45
  $region44: #{meshgraphnet_forward.10} parent=0 // pred_region
    _
  $region45: #{meshgraphnet_forward.10} parent=0 // pred_fallthru
    _

// kernel: meshgraphnet_forward.9
$region0: #{meshgraphnet_forward.9}
  #allocation0 [shape = 'u32[]', space=smem, size = 0x4, offset = 0x4, fixed_abs, tag = 'smem constant byte address 0x4 - core index']
  #allocation1 [shape = 'u32[144,128]{1,0:T(1,128)}', space=vmem, size = 0x12000, scoped, tag = 'internal scratch']
  %s0 = inlined_call_operand.vmem [shape: f32[16,6], index: 0, kind: input, shape index: {}]
  %s1 = inlined_call_operand.vmem [shape: bf16[6,32], index: 1, kind: input, shape index: {}]
  %s2 = inlined_call_operand.vmem [shape: f32[1,32], index: 2, kind: input, shape index: {}]
  %s3 = inlined_call_operand.vmem [shape: bf16[32,32], index: 3, kind: input, shape index: {}]
  %s4 = inlined_call_operand.vmem [shape: f32[1,32], index: 4, kind: input, shape index: {}]
  %s5 = inlined_call_operand.vmem [shape: bf16[32,32], index: 5, kind: input, shape index: {}]
  %s6 = inlined_call_operand.vmem [shape: f32[1,32], index: 6, kind: input, shape index: {}]
  %s7 = inlined_call_operand.vmem [shape: f32[1,32], index: 7, kind: input, shape index: {}]
  %s8 = inlined_call_operand.vmem [shape: f32[1,32], index: 8, kind: input, shape index: {}]
  %s9 = inlined_call_operand.vmem [shape: f32[16,32], index: 9, kind: output, shape index: {}]
  %s10 = sld [smem:[#allocation0]]
  $region46: #{meshgraphnet_forward.9} parent=0
    _
  %s12 = ssub.s32 1, %s10
  %s13 = scalar_select 0, %s12, %s10
  // Predicated region
  $region2: #{meshgraphnet_forward.9} parent=0 // pred_check
    _
  $region3: #{meshgraphnet_forward.9} parent=0 // pred_check_branch
    %15 = sbr.rel (0) target = $region5
  $region4: #{meshgraphnet_forward.9} parent=0 // pred_region
    _
  $region5: #{meshgraphnet_forward.9} parent=0 // pred_fallthru
    _
  // Predicated region
  $region6: #{meshgraphnet_forward.9} parent=0 // pred_check
    _
  $region7: #{meshgraphnet_forward.9} parent=0 // pred_check_branch
    %17 = sbr.rel (0) target = $region9
  $region8: #{meshgraphnet_forward.9} parent=0 // pred_region
    _
  $region9: #{meshgraphnet_forward.9} parent=0 // pred_fallthru
    _
  // Predicated region
  $region10: #{meshgraphnet_forward.9} parent=0 // pred_check
    _
  $region11: #{meshgraphnet_forward.9} parent=0 // pred_check_branch
    %19 = sbr.rel (0) target = $region13
  $region12: #{meshgraphnet_forward.9} parent=0 // pred_region
    _
  $region13: #{meshgraphnet_forward.9} parent=0 // pred_fallthru
    _
  // Predicated region
  $region14: #{meshgraphnet_forward.9} parent=0 // pred_check
    _
  $region15: #{meshgraphnet_forward.9} parent=0 // pred_check_branch
    %21 = sbr.rel (0) target = $region17
  $region16: #{meshgraphnet_forward.9} parent=0 // pred_region
    _
  $region17: #{meshgraphnet_forward.9} parent=0 // pred_fallthru
    _
  // Predicated region
  $region18: #{meshgraphnet_forward.9} parent=0 // pred_check
    _
  $region19: #{meshgraphnet_forward.9} parent=0 // pred_check_branch
    %23 = sbr.rel (0) target = $region21
  $region20: #{meshgraphnet_forward.9} parent=0 // pred_region
    _
  $region21: #{meshgraphnet_forward.9} parent=0 // pred_fallthru
    _
  // Predicated region
  $region22: #{meshgraphnet_forward.9} parent=0 // pred_check
    _
  $region23: #{meshgraphnet_forward.9} parent=0 // pred_check_branch
    %25 = sbr.rel (0) target = $region25
  $region24: #{meshgraphnet_forward.9} parent=0 // pred_region
    _
  $region25: #{meshgraphnet_forward.9} parent=0 // pred_fallthru
    _
  // Predicated region
  $region26: #{meshgraphnet_forward.9} parent=0 // pred_check
    _
  $region27: #{meshgraphnet_forward.9} parent=0 // pred_check_branch
    %27 = sbr.rel (0) target = $region29
  $region28: #{meshgraphnet_forward.9} parent=0 // pred_region
    _
  $region29: #{meshgraphnet_forward.9} parent=0 // pred_fallthru
    _
  // Predicated region
  $region30: #{meshgraphnet_forward.9} parent=0 // pred_check
    _
  $region31: #{meshgraphnet_forward.9} parent=0 // pred_check_branch
    %29 = sbr.rel (0) target = $region33
  $region32: #{meshgraphnet_forward.9} parent=0 // pred_region
    _
  $region33: #{meshgraphnet_forward.9} parent=0 // pred_fallthru
    _
  // Predicated region
  $region34: #{meshgraphnet_forward.9} parent=0 // pred_check
    _
  $region35: #{meshgraphnet_forward.9} parent=0 // pred_check_branch
    %31 = sbr.rel (0) target = $region37
  $region36: #{meshgraphnet_forward.9} parent=0 // pred_region
    _
  $region37: #{meshgraphnet_forward.9} parent=0 // pred_fallthru
    _
  %v33 = vld [vmem:[%s1] sm:$0x7]
  %v34 = vld [vmem:[%s0] sm:$0xff]
  %v35 = vld [vmem:[%s0 + $0x8] sm:$0xff]
  %v36 = vpack.c.bf16 %v35, %v34
  %v37 = vld [vmem:[%s2] sm:$0x1]
  %v39 = vlaneseq
  %v40 = vshrl.u32 %v39, 7
  %v41 = vsub.s32 0, %v40
  %v42 = vrot.slane %v37, %v41
  %vm44 = vcmask 48128
  %v46 = vsel %vm44, %v36, 0
  %vm48 = vcmask 1042432
  %v50 = vsel %vm48, %v33, 0
  %52 = vmatprep.subr.bf16.mxu0 0
  %53 = vmatpush1.bf16.msra.mxu0 %v50
  %54 = vmatprep.subr.bf16.mxu0 0
  %55 = vmatpush1.bf16.msra.mxu0 0
  %56 = vmatprep.subr.bf16.mxu0 0
  %57 = vmatpush1.bf16.msra.mxu0 0
  %58 = vmatprep.subr.bf16.mxu0 0
  %59 = vmatpush1.bf16.msra.mxu0 0
  %60 = vmatprep.subr.bf16.mxu0 0
  %61 = vmatpush1.bf16.msra.mxu0 0
  %62 = vmatprep.subr.bf16.mxu0 0
  %63 = vmatpush1.bf16.msra.mxu0 0
  %64 = vmatprep.subr.bf16.mxu0 0
  %65 = vmatpush1.bf16.msra.mxu0 0
  %66 = vmatprep.subr.bf16.mxu0 0
  %67 = vmatpush1.bf16.msra.mxu0 0
  %68 = vmatprep.subr.bf16.mxu0 0
  %69 = vmatpush1.bf16.msra.mxu0 0
  %70 = vmatprep.subr.bf16.mxu0 0
  %71 = vmatpush1.bf16.msra.mxu0 0
  %72 = vmatprep.subr.bf16.mxu0 0
  %73 = vmatpush1.bf16.msra.mxu0 0
  %74 = vmatprep.subr.bf16.mxu0 0
  %75 = vmatpush1.bf16.msra.mxu0 0
  %76 = vmatprep.subr.bf16.mxu0 0
  %77 = vmatpush1.bf16.msra.mxu0 0
  %78 = vmatprep.subr.bf16.mxu0 0
  %79 = vmatpush1.bf16.msra.mxu0 0
  %80 = vmatprep.subr.bf16.mxu0 0
  %81 = vmatpush1.bf16.msra.mxu0 0
  %82 = vmatprep.subr.bf16.mxu0 0
  %83 = vmatpush1.bf16.msra.mxu0 0
  %84 = vmatprep.mubr.bf16.mxu0 0
  %85 = vmatmul.mubr.bf16.gmra.mrb[0].mxu0 %v46
  %v86 = vpop.f32.mrb[0].mxu0
  %v87 = vadd.f32 %v42, %v86
  %v88 = vpop.f32.mrb[0].mxu0
  %v89 = vpop.f32.mrb[0].mxu0
  %v90 = vadd.f32 %v42, %v89
  %v91 = vpop.f32.mrb[0].mxu0
  %92 = vdwg.mxu0
  %v93 = vmax.f32 %v87, 0.0
  %v94 = vmax.f32 %v90, 0.0
  %v95 = vld [vmem:[%s3] sm:$0xf]
  %v96 = vld [vmem:[%s3 + $0x4] sm:$0xf]
  %v97 = vld [vmem:[%s3 + $0x8] sm:$0xf]
  %v98 = vld [vmem:[%s3 + $0xc] sm:$0xf]
  %v99 = vld [vmem:[%s4] sm:$0x1]
  %v100 = vpack.c.bf16 %v94, %v93
  %v102 = vlaneseq
  %v103 = vshrl.u32 %v102, 7
  %v104 = vsub.s32 0, %v103
  %v105 = vrot.slane %v99, %v104
  %v111 = vunpack.c.l.b16 %v95
  %v112 = vunpack.c.l.b16 %v96
  %v113 = vunpack.c.l.b16 %v97
  %v114 = vunpack.c.l.b16 %v98
  %v115 = vpack.c.b16 %v112, %v111
  %v116 = vpack.c.b16 %v114, %v113
  %vm119 = vcmask 261120
  %v121 = vsel %vm119, %v100, 0
  %123 = vmatprep.subr.bf16.mxu0 0
  %124 = vmatpush1.bf16.msra.mxu0 %v115
  %125 = vmatprep.subr.bf16.mxu0 0
  %126 = vmatpush1.bf16.msra.mxu0 %v116
  %127 = vmatprep.subr.bf16.mxu0 0
  %128 = vmatpush1.bf16.msra.mxu0 0
  %129 = vmatprep.subr.bf16.mxu0 0
  %130 = vmatpush1.bf16.msra.mxu0 0
  %131 = vmatprep.subr.bf16.mxu0 0
  %132 = vmatpush1.bf16.msra.mxu0 0
  %133 = vmatprep.subr.bf16.mxu0 0
  %134 = vmatpush1.bf16.msra.mxu0 0
  %135 = vmatprep.subr.bf16.mxu0 0
  %136 = vmatpush1.bf16.msra.mxu0 0
  %137 = vmatprep.subr.bf16.mxu0 0
  %138 = vmatpush1.bf16.msra.mxu0 0
  %139 = vmatprep.subr.bf16.mxu0 0
  %140 = vmatpush1.bf16.msra.mxu0 0
  %141 = vmatprep.subr.bf16.mxu0 0
  %142 = vmatpush1.bf16.msra.mxu0 0
  %143 = vmatprep.subr.bf16.mxu0 0
  %144 = vmatpush1.bf16.msra.mxu0 0
  %145 = vmatprep.subr.bf16.mxu0 0
  %146 = vmatpush1.bf16.msra.mxu0 0
  %147 = vmatprep.subr.bf16.mxu0 0
  %148 = vmatpush1.bf16.msra.mxu0 0
  %149 = vmatprep.subr.bf16.mxu0 0
  %150 = vmatpush1.bf16.msra.mxu0 0
  %151 = vmatprep.subr.bf16.mxu0 0
  %152 = vmatpush1.bf16.msra.mxu0 0
  %153 = vmatprep.subr.bf16.mxu0 0
  %154 = vmatpush1.bf16.msra.mxu0 0
  %155 = vmatprep.mubr.bf16.mxu0 0
  %156 = vmatmul.mubr.bf16.gmra.mrb[0].mxu0 %v121
  %v157 = vpop.f32.mrb[0].mxu0
  %v158 = vadd.f32 %v105, %v157
  %v159 = vpop.f32.mrb[0].mxu0
  %v160 = vpop.f32.mrb[0].mxu0
  %v161 = vadd.f32 %v105, %v160
  %v162 = vpop.f32.mrb[0].mxu0
  %163 = vdwg.mxu0
  %v164 = vmax.f32 %v158, 0.0
  %v165 = vmax.f32 %v161, 0.0
  %v166 = vld [vmem:[%s5] sm:$0xf]
  %v167 = vld [vmem:[%s5 + $0x4] sm:$0xf]
  %v168 = vld [vmem:[%s5 + $0x8] sm:$0xf]
  %v169 = vld [vmem:[%s5 + $0xc] sm:$0xf]
  %v170 = vld [vmem:[%s6] sm:$0x1]
  %v171 = vpack.c.bf16 %v165, %v164
  %v173 = vlaneseq
  %v174 = vshrl.u32 %v173, 7
  %v175 = vsub.s32 0, %v174
  %v176 = vrot.slane %v170, %v175
  %v182 = vunpack.c.l.b16 %v166
  %v183 = vunpack.c.l.b16 %v167
  %v184 = vunpack.c.l.b16 %v168
  %v185 = vunpack.c.l.b16 %v169
  %v186 = vpack.c.b16 %v183, %v182
  %v187 = vpack.c.b16 %v185, %v184
  %v191 = vsel %vm119, %v171, 0
  %193 = vmatprep.subr.bf16.mxu0 0
  %194 = vmatpush1.bf16.msra.mxu0 %v186
  %195 = vmatprep.subr.bf16.mxu0 0
  %196 = vmatpush1.bf16.msra.mxu0 %v187
  %197 = vmatprep.subr.bf16.mxu0 0
  %198 = vmatpush1.bf16.msra.mxu0 0
  %199 = vmatprep.subr.bf16.mxu0 0
  %200 = vmatpush1.bf16.msra.mxu0 0
  %201 = vmatprep.subr.bf16.mxu0 0
  %202 = vmatpush1.bf16.msra.mxu0 0
  %203 = vmatprep.subr.bf16.mxu0 0
  %204 = vmatpush1.bf16.msra.mxu0 0
  %205 = vmatprep.subr.bf16.mxu0 0
  %206 = vmatpush1.bf16.msra.mxu0 0
  %207 = vmatprep.subr.bf16.mxu0 0
  %208 = vmatpush1.bf16.msra.mxu0 0
  %209 = vmatprep.subr.bf16.mxu0 0
  %210 = vmatpush1.bf16.msra.mxu0 0
  %211 = vmatprep.subr.bf16.mxu0 0
  %212 = vmatpush1.bf16.msra.mxu0 0
  %213 = vmatprep.subr.bf16.mxu0 0
  %214 = vmatpush1.bf16.msra.mxu0 0
  %215 = vmatprep.subr.bf16.mxu0 0
  %216 = vmatpush1.bf16.msra.mxu0 0
  %217 = vmatprep.subr.bf16.mxu0 0
  %218 = vmatpush1.bf16.msra.mxu0 0
  %219 = vmatprep.subr.bf16.mxu0 0
  %220 = vmatpush1.bf16.msra.mxu0 0
  %221 = vmatprep.subr.bf16.mxu0 0
  %222 = vmatpush1.bf16.msra.mxu0 0
  %223 = vmatprep.subr.bf16.mxu0 0
  %224 = vmatpush1.bf16.msra.mxu0 0
  %225 = vmatprep.mubr.bf16.mxu0 0
  %226 = vmatmul.mubr.bf16.gmra.mrb[0].mxu0 %v191
  %v227 = vpop.f32.mrb[0].mxu0
  %v228 = vadd.f32 %v176, %v227
  %v229 = vpop.f32.mrb[0].mxu0
  %v230 = vpop.f32.mrb[0].mxu0
  %v231 = vadd.f32 %v176, %v230
  %v232 = vpop.f32.mrb[0].mxu0
  %233 = vdwg.mxu0
  %v234 = vld [vmem:[%s7] sm:$0x1]
  %v235 = vld [vmem:[%s8] sm:$0x1]
  %v236 = vsel %vm119, %v228, 0.0
  %237 = vadd.xlane.f32.xlu0 %v236
  %v238 = vpop.xlane.xlu0 %237
  %v239 = vsel %vm119, %v231, 0.0
  %240 = vadd.xlane.f32.xlu0 %v239
  %v241 = vpop.xlane.xlu0 %240
  %v242 = vrcp.pop 32.0
  %v243 = vmul.f32 %v238, %v242
  %v244 = vmul.f32 %v241, %v242
  %v245 = vsub.f32 %v228, %v243
  %v246 = vsub.f32 %v231, %v244
  %v247 = vmul.f32 %v245, %v245
  %v248 = vmul.f32 %v246, %v246
  %v249 = vsel %vm119, %v247, 0.0
  %250 = vadd.xlane.f32.xlu0 %v249
  %v251 = vpop.xlane.xlu0 %250
  %v252 = vsel %vm119, %v248, 0.0
  %253 = vadd.xlane.f32.xlu0 %v252
  %v254 = vpop.xlane.xlu0 %253
  %v255 = vmul.f32 %v251, %v242
  %v256 = vmul.f32 %v254, %v242
  %v257 = vadd.f32 %v255, 1e-05
  %v258 = vadd.f32 %v256, 1e-05
  %v259 = vrsqrt.pop %v257
  %v260 = vrsqrt.pop %v258
  %v261 = vmul.f32 %v245, %v259
  %v262 = vmul.f32 %v246, %v260
  %v264 = vlaneseq
  %v265 = vshrl.u32 %v264, 7
  %v266 = vsub.s32 0, %v265
  %v267 = vrot.slane %v234, %v266
  %v269 = vmul.f32 %v261, %v267
  %v270 = vmul.f32 %v262, %v267
  %v272 = vlaneseq
  %v273 = vshrl.u32 %v272, 7
  %v274 = vsub.s32 0, %v273
  %v275 = vrot.slane %v235, %v274
  %v277 = vadd.f32 %v269, %v275
  %v278 = vadd.f32 %v270, %v275
  %279 = vst.msk [vmem:[%s9] sm:$0xff] %vm119, %v277
  %280 = vst.msk [vmem:[%s9 + $0x8] sm:$0xff] %vm119, %v278
  // Predicated region
  $region38: #{meshgraphnet_forward.9} parent=0 // pred_check
    _
  $region39: #{meshgraphnet_forward.9} parent=0 // pred_check_branch
    %282 = sbr.rel (0) target = $region41
  $region40: #{meshgraphnet_forward.9} parent=0 // pred_region
    _
  $region41: #{meshgraphnet_forward.9} parent=0 // pred_fallthru
    _
  // Predicated region
  $region42: #{meshgraphnet_forward.9} parent=0 // pred_check
    _
  $region43: #{meshgraphnet_forward.9} parent=0 // pred_check_branch
    %284 = sbr.rel (0) target = $region45
  $region44: #{meshgraphnet_forward.9} parent=0 // pred_region
    _
  $region45: #{meshgraphnet_forward.9} parent=0 // pred_fallthru
    _

// kernel: meshgraphnet_forward.12
$region0: #{meshgraphnet_forward.12}
  #allocation0 [shape = 'u32[]', space=smem, size = 0x4, offset = 0x4, fixed_abs, tag = 'smem constant byte address 0x4 - core index']
  #allocation1 [shape = 'u32[144,128]{1,0:T(1,128)}', space=vmem, size = 0x12000, scoped, tag = 'internal scratch']
  #allocation2 [shape = 'f32[16,32]{1,0:T(8,128)}', space=vmem, size = 0x2000, scoped, tag = 'scratch operand']
  %s0 = inlined_call_operand.vmem [shape: s32[1,32], index: 0, kind: input, shape index: {}]
  %s1 = inlined_call_operand.vmem [shape: f32[32,32], index: 1, kind: input, shape index: {}]
  %s2 = inlined_call_operand.vmem [shape: f32[16,1], index: 2, kind: input, shape index: {}]
  %s3 = inlined_call_operand.vmem [shape: f32[16,32], index: 3, kind: output, shape index: {}]
  %s4 = sld [smem:[#allocation0]]
  $region30: #{meshgraphnet_forward.12} parent=0
    _
  %s6 = ssub.s32 1, %s4
  %s7 = scalar_select 0, %s6, %s4
  // Predicated region
  $region2: #{meshgraphnet_forward.12} parent=0 // pred_check
    _
  $region3: #{meshgraphnet_forward.12} parent=0 // pred_check_branch
    %9 = sbr.rel (0) target = $region5
  $region4: #{meshgraphnet_forward.12} parent=0 // pred_region
    _
  $region5: #{meshgraphnet_forward.12} parent=0 // pred_fallthru
    _
  // Predicated region
  $region6: #{meshgraphnet_forward.12} parent=0 // pred_check
    _
  $region7: #{meshgraphnet_forward.12} parent=0 // pred_check_branch
    %11 = sbr.rel (0) target = $region9
  $region8: #{meshgraphnet_forward.12} parent=0 // pred_region
    _
  $region9: #{meshgraphnet_forward.12} parent=0 // pred_fallthru
    _
  // Predicated region
  $region10: #{meshgraphnet_forward.12} parent=0 // pred_check
    _
  $region11: #{meshgraphnet_forward.12} parent=0 // pred_check_branch
    %13 = sbr.rel (0) target = $region13
  $region12: #{meshgraphnet_forward.12} parent=0 // pred_region
    _
  $region13: #{meshgraphnet_forward.12} parent=0 // pred_fallthru
    _
  %p15 = scmp.eq.s32.totalorder 0, 0
  // Predicated region
  $region14: #{meshgraphnet_forward.12} parent=0 // pred_check
    %p16 = pneg %p15
  $region15: #{meshgraphnet_forward.12} parent=0 // pred_check_branch
    %18 = sbr.rel (%p16) target = $region17
  $region16: #{meshgraphnet_forward.12} parent=0 // pred_region
    %vm19 = vcmask 261120
    %20 = vst.msk [vmem:[#allocation2] sm:$0xff] %vm19, 0.0
    %21 = vst.msk [vmem:[#allocation2 + $0x8] sm:$0xff] %vm19, 0.0
  $region17: #{meshgraphnet_forward.12} parent=0 // pred_fallthru
    _
  %s22 = smul.u32 0, 16
  %v23 = vlaneseq
  %v24 = vshrl.u32 %v23, 7
  %v25 = vadd.s32 %v24, 8
  %v26 = vstv %s22
  %v27 = vadd.s32 %v26, %v24
  %v28 = vadd.s32 %v26, %v25
  %v29 = vld [vmem:[%s0] sm:$0x1]
  %v30 = vlaneseq
  %v31 = vshrl.u32 %v30, 7
  %v32 = vsub.s32 0, %v31
  %v33 = vrot.slane %v29, %v32
  %vm34 = vcmp.eq.s32.totalorder %v27, %v33
  %vm35 = vcmp.eq.s32.totalorder %v28, %v33
  %v36 = vsel %vm34, 1, 0
  %v37 = vsel %vm35, 1, 0
  %v38 = vcvt.s32.f32 %v36
  %v39 = vcvt.s32.f32 %v37
  %v40 = vpack.c.bf16 %v39, %v38
  %v41 = vld [vmem:[#allocation2] sm:$0xff]
  %v42 = vld [vmem:[#allocation2 + $0x8] sm:$0xff]
  %v43 = vld [vmem:[%s1] sm:$0xff]
  %v44 = vld [vmem:[%s1 + $0x8] sm:$0xff]
  %v45 = vld [vmem:[%s1 + $0x10] sm:$0xff]
  %v46 = vld [vmem:[%s1 + $0x18] sm:$0xff]
  %v47 = vpack.c.bf16 %v44, %v43
  %v48 = vpack.c.bf16 %v46, %v45
  %vm49 = vcmask 261120
  %v51 = vsel %vm49, %v40, 0
  %53 = vmatprep.subr.bf16.mxu0 0
  %54 = vmatpush1.bf16.msra.mxu0 %v47
  %55 = vmatprep.subr.bf16.mxu0 0
  %56 = vmatpush1.bf16.msra.mxu0 %v48
  %57 = vmatprep.subr.bf16.mxu0 0
  %58 = vmatpush1.bf16.msra.mxu0 0
  %59 = vmatprep.subr.bf16.mxu0 0
  %60 = vmatpush1.bf16.msra.mxu0 0
  %61 = vmatprep.subr.bf16.mxu0 0
  %62 = vmatpush1.bf16.msra.mxu0 0
  %63 = vmatprep.subr.bf16.mxu0 0
  %64 = vmatpush1.bf16.msra.mxu0 0
  %65 = vmatprep.subr.bf16.mxu0 0
  %66 = vmatpush1.bf16.msra.mxu0 0
  %67 = vmatprep.subr.bf16.mxu0 0
  %68 = vmatpush1.bf16.msra.mxu0 0
  %69 = vmatprep.subr.bf16.mxu0 0
  %70 = vmatpush1.bf16.msra.mxu0 0
  %71 = vmatprep.subr.bf16.mxu0 0
  %72 = vmatpush1.bf16.msra.mxu0 0
  %73 = vmatprep.subr.bf16.mxu0 0
  %74 = vmatpush1.bf16.msra.mxu0 0
  %75 = vmatprep.subr.bf16.mxu0 0
  %76 = vmatpush1.bf16.msra.mxu0 0
  %77 = vmatprep.subr.bf16.mxu0 0
  %78 = vmatpush1.bf16.msra.mxu0 0
  %79 = vmatprep.subr.bf16.mxu0 0
  %80 = vmatpush1.bf16.msra.mxu0 0
  %81 = vmatprep.subr.bf16.mxu0 0
  %82 = vmatpush1.bf16.msra.mxu0 0
  %83 = vmatprep.subr.bf16.mxu0 0
  %84 = vmatpush1.bf16.msra.mxu0 0
  %85 = vmatprep.mubr.bf16.mxu0 0
  %86 = vmatmul.mubr.bf16.gmra.mrb[0].mxu0 %v51
  %v87 = vpop.f32.mrb[0].mxu0
  %v88 = vadd.f32 0.0, %v87
  %v89 = vpop.f32.mrb[0].mxu0
  %v90 = vpop.f32.mrb[0].mxu0
  %v91 = vadd.f32 0.0, %v90
  %v92 = vpop.f32.mrb[0].mxu0
  %93 = vdwg.mxu0
  %v94 = vadd.f32 %v41, %v88
  %v95 = vadd.f32 %v42, %v91
  %96 = vst.msk [vmem:[#allocation2] sm:$0xff] %vm49, %v94
  %97 = vst.msk [vmem:[#allocation2 + $0x8] sm:$0xff] %vm49, %v95
  // Predicated region
  $region18: #{meshgraphnet_forward.12} parent=0 // pred_check
    %p98 = pneg %p15
  $region19: #{meshgraphnet_forward.12} parent=0 // pred_check_branch
    %100 = sbr.rel (%p98) target = $region21
  $region20: #{meshgraphnet_forward.12} parent=0 // pred_region
    %v101 = vld [vmem:[#allocation2] sm:$0xff]
    %v102 = vld [vmem:[#allocation2 + $0x8] sm:$0xff]
    %v103 = vld [vmem:[%s2] sm:$0xff]
    %v104 = vld [vmem:[%s2 + $0x8] sm:$0xff]
    %106 = vset.pattern.permute.xlu0 0
    %107 = vperm.xlu0 %106, %v103
    %v108 = vpop.permute.xlu0 %107
    %111 = vset.pattern.permute.xlu0 0
    %112 = vperm.xlu0 %111, %v104
    %v113 = vpop.permute.xlu0 %112
    %v115 = vmul.f32 %v101, %v108
    %v116 = vmul.f32 %v102, %v113
    %117 = vst.msk [vmem:[%s3] sm:$0xff] %vm49, %v115
    %118 = vst.msk [vmem:[%s3 + $0x8] sm:$0xff] %vm49, %v116
  $region21: #{meshgraphnet_forward.12} parent=0 // pred_fallthru
    _
  // Predicated region
  $region22: #{meshgraphnet_forward.12} parent=0 // pred_check
    _
  $region23: #{meshgraphnet_forward.12} parent=0 // pred_check_branch
    %120 = sbr.rel (0) target = $region25
  $region24: #{meshgraphnet_forward.12} parent=0 // pred_region
    _
  $region25: #{meshgraphnet_forward.12} parent=0 // pred_fallthru
    _
  // Predicated region
  $region26: #{meshgraphnet_forward.12} parent=0 // pred_check
    _
  $region27: #{meshgraphnet_forward.12} parent=0 // pred_check_branch
    %122 = sbr.rel (0) target = $region29
  $region28: #{meshgraphnet_forward.12} parent=0 // pred_region
    _
  $region29: #{meshgraphnet_forward.12} parent=0 // pred_fallthru
    _

// kernel: meshgraphnet_forward.11
$region0: #{meshgraphnet_forward.11}
  #allocation0 [shape = 'u32[]', space=smem, size = 0x4, offset = 0x4, fixed_abs, tag = 'smem constant byte address 0x4 - core index']
  #allocation1 [shape = 'u32[144,128]{1,0:T(1,128)}', space=vmem, size = 0x12000, scoped, tag = 'internal scratch']
  %s0 = inlined_call_operand.vmem [shape: f32[32,32], index: 0, kind: input, shape index: {}]
  %s1 = inlined_call_operand.vmem [shape: f32[32,32], index: 1, kind: input, shape index: {}]
  %s2 = inlined_call_operand.vmem [shape: f32[32,32], index: 2, kind: input, shape index: {}]
  %s3 = inlined_call_operand.vmem [shape: bf16[32,32], index: 3, kind: input, shape index: {}]
  %s4 = inlined_call_operand.vmem [shape: bf16[32,32], index: 4, kind: input, shape index: {}]
  %s5 = inlined_call_operand.vmem [shape: bf16[32,32], index: 5, kind: input, shape index: {}]
  %s6 = inlined_call_operand.vmem [shape: f32[1,32], index: 6, kind: input, shape index: {}]
  %s7 = inlined_call_operand.vmem [shape: bf16[32,32], index: 7, kind: input, shape index: {}]
  %s8 = inlined_call_operand.vmem [shape: f32[1,32], index: 8, kind: input, shape index: {}]
  %s9 = inlined_call_operand.vmem [shape: bf16[32,32], index: 9, kind: input, shape index: {}]
  %s10 = inlined_call_operand.vmem [shape: f32[1,32], index: 10, kind: input, shape index: {}]
  %s11 = inlined_call_operand.vmem [shape: f32[1,32], index: 11, kind: input, shape index: {}]
  %s12 = inlined_call_operand.vmem [shape: f32[1,32], index: 12, kind: input, shape index: {}]
  %s13 = inlined_call_operand.vmem [shape: f32[32,32], index: 13, kind: output, shape index: {}]
  %s14 = sld [smem:[#allocation0]]
  $region62: #{meshgraphnet_forward.11} parent=0
    _
  %s16 = ssub.s32 1, %s14
  %s17 = scalar_select 0, %s16, %s14
  // Predicated region
  $region2: #{meshgraphnet_forward.11} parent=0 // pred_check
    _
  $region3: #{meshgraphnet_forward.11} parent=0 // pred_check_branch
    %19 = sbr.rel (0) target = $region5
  $region4: #{meshgraphnet_forward.11} parent=0 // pred_region
    _
  $region5: #{meshgraphnet_forward.11} parent=0 // pred_fallthru
    _
  // Predicated region
  $region6: #{meshgraphnet_forward.11} parent=0 // pred_check
    _
  $region7: #{meshgraphnet_forward.11} parent=0 // pred_check_branch
    %21 = sbr.rel (0) target = $region9
  $region8: #{meshgraphnet_forward.11} parent=0 // pred_region
    _
  $region9: #{meshgraphnet_forward.11} parent=0 // pred_fallthru
    _
  // Predicated region
  $region10: #{meshgraphnet_forward.11} parent=0 // pred_check
    _
  $region11: #{meshgraphnet_forward.11} parent=0 // pred_check_branch
    %23 = sbr.rel (0) target = $region13
  $region12: #{meshgraphnet_forward.11} parent=0 // pred_region
    _
  $region13: #{meshgraphnet_forward.11} parent=0 // pred_fallthru
    _
  // Predicated region
  $region14: #{meshgraphnet_forward.11} parent=0 // pred_check
    _
  $region15: #{meshgraphnet_forward.11} parent=0 // pred_check_branch
    %25 = sbr.rel (0) target = $region17
  $region16: #{meshgraphnet_forward.11} parent=0 // pred_region
    _
  $region17: #{meshgraphnet_forward.11} parent=0 // pred_fallthru
    _
  // Predicated region
  $region18: #{meshgraphnet_forward.11} parent=0 // pred_check
    _
  $region19: #{meshgraphnet_forward.11} parent=0 // pred_check_branch
    %27 = sbr.rel (0) target = $region21
  $region20: #{meshgraphnet_forward.11} parent=0 // pred_region
    _
  $region21: #{meshgraphnet_forward.11} parent=0 // pred_fallthru
    _
  // Predicated region
  $region22: #{meshgraphnet_forward.11} parent=0 // pred_check
    _
  $region23: #{meshgraphnet_forward.11} parent=0 // pred_check_branch
    %29 = sbr.rel (0) target = $region25
  $region24: #{meshgraphnet_forward.11} parent=0 // pred_region
    _
  $region25: #{meshgraphnet_forward.11} parent=0 // pred_fallthru
    _
  // Predicated region
  $region26: #{meshgraphnet_forward.11} parent=0 // pred_check
    _
  $region27: #{meshgraphnet_forward.11} parent=0 // pred_check_branch
    %31 = sbr.rel (0) target = $region29
  $region28: #{meshgraphnet_forward.11} parent=0 // pred_region
    _
  $region29: #{meshgraphnet_forward.11} parent=0 // pred_fallthru
    _
  // Predicated region
  $region30: #{meshgraphnet_forward.11} parent=0 // pred_check
    _
  $region31: #{meshgraphnet_forward.11} parent=0 // pred_check_branch
    %33 = sbr.rel (0) target = $region33
  $region32: #{meshgraphnet_forward.11} parent=0 // pred_region
    _
  $region33: #{meshgraphnet_forward.11} parent=0 // pred_fallthru
    _
  // Predicated region
  $region34: #{meshgraphnet_forward.11} parent=0 // pred_check
    _
  $region35: #{meshgraphnet_forward.11} parent=0 // pred_check_branch
    %35 = sbr.rel (0) target = $region37
  $region36: #{meshgraphnet_forward.11} parent=0 // pred_region
    _
  $region37: #{meshgraphnet_forward.11} parent=0 // pred_fallthru
    _
  // Predicated region
  $region38: #{meshgraphnet_forward.11} parent=0 // pred_check
    _
  $region39: #{meshgraphnet_forward.11} parent=0 // pred_check_branch
    %37 = sbr.rel (0) target = $region41
  $region40: #{meshgraphnet_forward.11} parent=0 // pred_region
    _
  $region41: #{meshgraphnet_forward.11} parent=0 // pred_fallthru
    _
  // Predicated region
  $region42: #{meshgraphnet_forward.11} parent=0 // pred_check
    _
  $region43: #{meshgraphnet_forward.11} parent=0 // pred_check_branch
    %39 = sbr.rel (0) target = $region45
  $region44: #{meshgraphnet_forward.11} parent=0 // pred_region
    _
  $region45: #{meshgraphnet_forward.11} parent=0 // pred_fallthru
    _
  // Predicated region
  $region46: #{meshgraphnet_forward.11} parent=0 // pred_check
    _
  $region47: #{meshgraphnet_forward.11} parent=0 // pred_check_branch
    %41 = sbr.rel (0) target = $region49
  $region48: #{meshgraphnet_forward.11} parent=0 // pred_region
    _
  $region49: #{meshgraphnet_forward.11} parent=0 // pred_fallthru
    _
  // Predicated region
  $region50: #{meshgraphnet_forward.11} parent=0 // pred_check
    _
  $region51: #{meshgraphnet_forward.11} parent=0 // pred_check_branch
    %43 = sbr.rel (0) target = $region53
  $region52: #{meshgraphnet_forward.11} parent=0 // pred_region
    _
  $region53: #{meshgraphnet_forward.11} parent=0 // pred_fallthru
    _
  %v45 = vld [vmem:[%s3] sm:$0xf]
  %v46 = vld [vmem:[%s3 + $0x4] sm:$0xf]
  %v47 = vld [vmem:[%s3 + $0x8] sm:$0xf]
  %v48 = vld [vmem:[%s3 + $0xc] sm:$0xf]
  %v49 = vld [vmem:[%s0] sm:$0xff]
  %v50 = vld [vmem:[%s0 + $0x8] sm:$0xff]
  %v51 = vld [vmem:[%s0 + $0x10] sm:$0xff]
  %v52 = vld [vmem:[%s0 + $0x18] sm:$0xff]
  %v53 = vpack.c.bf16 %v50, %v49
  %v54 = vpack.c.bf16 %v52, %v51
  %v55 = vld [vmem:[%s4] sm:$0xf]
  %v56 = vld [vmem:[%s4 + $0x4] sm:$0xf]
  %v57 = vld [vmem:[%s4 + $0x8] sm:$0xf]
  %v58 = vld [vmem:[%s4 + $0xc] sm:$0xf]
  %v59 = vld [vmem:[%s1] sm:$0xff]
  %v60 = vld [vmem:[%s1 + $0x8] sm:$0xff]
  %v61 = vld [vmem:[%s1 + $0x10] sm:$0xff]
  %v62 = vld [vmem:[%s1 + $0x18] sm:$0xff]
  %v63 = vpack.c.bf16 %v60, %v59
  %v64 = vpack.c.bf16 %v62, %v61
  %v69 = vunpack.c.l.b16 %v55
  %v70 = vunpack.c.l.b16 %v56
  %v71 = vunpack.c.l.b16 %v57
  %v72 = vunpack.c.l.b16 %v58
  %v73 = vpack.c.b16 %v70, %v69
  %v74 = vpack.c.b16 %v72, %v71
  %vm77 = vcmask 261120
  %v79 = vsel %vm77, %v63, 0
  %v82 = vsel %vm77, %v64, 0
  %84 = vmatprep.subr.bf16.mxu0 0
  %85 = vmatpush1.bf16.msra.mxu0 %v73
  %86 = vmatprep.subr.bf16.mxu0 0
  %87 = vmatpush1.bf16.msra.mxu0 %v74
  %88 = vmatprep.subr.bf16.mxu0 0
  %89 = vmatpush1.bf16.msra.mxu0 0
  %90 = vmatprep.subr.bf16.mxu0 0
  %91 = vmatpush1.bf16.msra.mxu0 0
  %92 = vmatprep.subr.bf16.mxu0 0
  %93 = vmatpush1.bf16.msra.mxu0 0
  %94 = vmatprep.subr.bf16.mxu0 0
  %95 = vmatpush1.bf16.msra.mxu0 0
  %96 = vmatprep.subr.bf16.mxu0 0
  %97 = vmatpush1.bf16.msra.mxu0 0
  %98 = vmatprep.subr.bf16.mxu0 0
  %99 = vmatpush1.bf16.msra.mxu0 0
  %100 = vmatprep.subr.bf16.mxu0 0
  %101 = vmatpush1.bf16.msra.mxu0 0
  %102 = vmatprep.subr.bf16.mxu0 0
  %103 = vmatpush1.bf16.msra.mxu0 0
  %104 = vmatprep.subr.bf16.mxu0 0
  %105 = vmatpush1.bf16.msra.mxu0 0
  %106 = vmatprep.subr.bf16.mxu0 0
  %107 = vmatpush1.bf16.msra.mxu0 0
  %108 = vmatprep.subr.bf16.mxu0 0
  %109 = vmatpush1.bf16.msra.mxu0 0
  %110 = vmatprep.subr.bf16.mxu0 0
  %111 = vmatpush1.bf16.msra.mxu0 0
  %112 = vmatprep.subr.bf16.mxu0 0
  %113 = vmatpush1.bf16.msra.mxu0 0
  %114 = vmatprep.subr.bf16.mxu0 0
  %115 = vmatpush1.bf16.msra.mxu0 0
  %116 = vmatprep.mubr.bf16.mxu0 0
  %117 = vmatmul.mubr.bf16.gmra.mrb[0].mxu0 %v79
  %v118 = vpop.f32.mrb[0].mxu0
  %v119 = vadd.f32 0.0, %v118
  %v120 = vpop.f32.mrb[0].mxu0
  %v121 = vpop.f32.mrb[0].mxu0
  %v122 = vadd.f32 0.0, %v121
  %v123 = vpop.f32.mrb[0].mxu0
  %124 = vmatprep.mubr.bf16.mxu0 0
  %125 = vmatmul.mubr.bf16.gmra.mrb[0].mxu0 %v82
  %v126 = vpop.f32.mrb[0].mxu0
  %v127 = vadd.f32 0.0, %v126
  %v128 = vpop.f32.mrb[0].mxu0
  %v129 = vpop.f32.mrb[0].mxu0
  %v130 = vadd.f32 0.0, %v129
  %v131 = vpop.f32.mrb[0].mxu0
  %132 = vdwg.mxu0
  %v137 = vunpack.c.l.b16 %v45
  %v138 = vunpack.c.l.b16 %v46
  %v139 = vunpack.c.l.b16 %v47
  %v140 = vunpack.c.l.b16 %v48
  %v141 = vpack.c.b16 %v138, %v137
  %v142 = vpack.c.b16 %v140, %v139
  %v146 = vsel %vm77, %v53, 0
  %v149 = vsel %vm77, %v54, 0
  %151 = vmatprep.subr.bf16.mxu0 0
  %152 = vmatpush1.bf16.msra.mxu0 %v141
  %153 = vmatprep.subr.bf16.mxu0 0
  %154 = vmatpush1.bf16.msra.mxu0 %v142
  %155 = vmatprep.subr.bf16.mxu0 0
  %156 = vmatpush1.bf16.msra.mxu0 0
  %157 = vmatprep.subr.bf16.mxu0 0
  %158 = vmatpush1.bf16.msra.mxu0 0
  %159 = vmatprep.subr.bf16.mxu0 0
  %160 = vmatpush1.bf16.msra.mxu0 0
  %161 = vmatprep.subr.bf16.mxu0 0
  %162 = vmatpush1.bf16.msra.mxu0 0
  %163 = vmatprep.subr.bf16.mxu0 0
  %164 = vmatpush1.bf16.msra.mxu0 0
  %165 = vmatprep.subr.bf16.mxu0 0
  %166 = vmatpush1.bf16.msra.mxu0 0
  %167 = vmatprep.subr.bf16.mxu0 0
  %168 = vmatpush1.bf16.msra.mxu0 0
  %169 = vmatprep.subr.bf16.mxu0 0
  %170 = vmatpush1.bf16.msra.mxu0 0
  %171 = vmatprep.subr.bf16.mxu0 0
  %172 = vmatpush1.bf16.msra.mxu0 0
  %173 = vmatprep.subr.bf16.mxu0 0
  %174 = vmatpush1.bf16.msra.mxu0 0
  %175 = vmatprep.subr.bf16.mxu0 0
  %176 = vmatpush1.bf16.msra.mxu0 0
  %177 = vmatprep.subr.bf16.mxu0 0
  %178 = vmatpush1.bf16.msra.mxu0 0
  %179 = vmatprep.subr.bf16.mxu0 0
  %180 = vmatpush1.bf16.msra.mxu0 0
  %181 = vmatprep.subr.bf16.mxu0 0
  %182 = vmatpush1.bf16.msra.mxu0 0
  %183 = vmatprep.mubr.bf16.mxu0 0
  %184 = vmatmul.mubr.bf16.gmra.mrb[0].mxu0 %v146
  %v185 = vpop.f32.mrb[0].mxu0
  %v186 = vadd.f32 %v119, %v185
  %v187 = vpop.f32.mrb[0].mxu0
  %v188 = vpop.f32.mrb[0].mxu0
  %v189 = vadd.f32 %v122, %v188
  %v190 = vpop.f32.mrb[0].mxu0
  %191 = vmatprep.mubr.bf16.mxu0 0
  %192 = vmatmul.mubr.bf16.gmra.mrb[0].mxu0 %v149
  %v193 = vpop.f32.mrb[0].mxu0
  %v194 = vadd.f32 %v127, %v193
  %v195 = vpop.f32.mrb[0].mxu0
  %v196 = vpop.f32.mrb[0].mxu0
  %v197 = vadd.f32 %v130, %v196
  %v198 = vpop.f32.mrb[0].mxu0
  %199 = vdwg.mxu0
  %v200 = vld [vmem:[%s5] sm:$0xf]
  %v201 = vld [vmem:[%s5 + $0x4] sm:$0xf]
  %v202 = vld [vmem:[%s5 + $0x8] sm:$0xf]
  %v203 = vld [vmem:[%s5 + $0xc] sm:$0xf]
  %v204 = vld [vmem:[%s2] sm:$0xff]
  %v205 = vld [vmem:[%s2 + $0x8] sm:$0xff]
  %v206 = vld [vmem:[%s2 + $0x10] sm:$0xff]
  %v207 = vld [vmem:[%s2 + $0x18] sm:$0xff]
  %v208 = vpack.c.bf16 %v205, %v204
  %v209 = vpack.c.bf16 %v207, %v206
  %v214 = vunpack.c.l.b16 %v200
  %v215 = vunpack.c.l.b16 %v201
  %v216 = vunpack.c.l.b16 %v202
  %v217 = vunpack.c.l.b16 %v203
  %v218 = vpack.c.b16 %v215, %v214
  %v219 = vpack.c.b16 %v217, %v216
  %v223 = vsel %vm77, %v208, 0
  %v226 = vsel %vm77, %v209, 0
  %228 = vmatprep.subr.bf16.mxu0 0
  %229 = vmatpush1.bf16.msra.mxu0 %v218
  %230 = vmatprep.subr.bf16.mxu0 0
  %231 = vmatpush1.bf16.msra.mxu0 %v219
  %232 = vmatprep.subr.bf16.mxu0 0
  %233 = vmatpush1.bf16.msra.mxu0 0
  %234 = vmatprep.subr.bf16.mxu0 0
  %235 = vmatpush1.bf16.msra.mxu0 0
  %236 = vmatprep.subr.bf16.mxu0 0
  %237 = vmatpush1.bf16.msra.mxu0 0
  %238 = vmatprep.subr.bf16.mxu0 0
  %239 = vmatpush1.bf16.msra.mxu0 0
  %240 = vmatprep.subr.bf16.mxu0 0
  %241 = vmatpush1.bf16.msra.mxu0 0
  %242 = vmatprep.subr.bf16.mxu0 0
  %243 = vmatpush1.bf16.msra.mxu0 0
  %244 = vmatprep.subr.bf16.mxu0 0
  %245 = vmatpush1.bf16.msra.mxu0 0
  %246 = vmatprep.subr.bf16.mxu0 0
  %247 = vmatpush1.bf16.msra.mxu0 0
  %248 = vmatprep.subr.bf16.mxu0 0
  %249 = vmatpush1.bf16.msra.mxu0 0
  %250 = vmatprep.subr.bf16.mxu0 0
  %251 = vmatpush1.bf16.msra.mxu0 0
  %252 = vmatprep.subr.bf16.mxu0 0
  %253 = vmatpush1.bf16.msra.mxu0 0
  %254 = vmatprep.subr.bf16.mxu0 0
  %255 = vmatpush1.bf16.msra.mxu0 0
  %256 = vmatprep.subr.bf16.mxu0 0
  %257 = vmatpush1.bf16.msra.mxu0 0
  %258 = vmatprep.subr.bf16.mxu0 0
  %259 = vmatpush1.bf16.msra.mxu0 0
  %260 = vmatprep.mubr.bf16.mxu0 0
  %261 = vmatmul.mubr.bf16.gmra.mrb[0].mxu0 %v223
  %v262 = vpop.f32.mrb[0].mxu0
  %v263 = vadd.f32 0.0, %v262
  %v264 = vpop.f32.mrb[0].mxu0
  %v265 = vpop.f32.mrb[0].mxu0
  %v266 = vadd.f32 0.0, %v265
  %v267 = vpop.f32.mrb[0].mxu0
  %268 = vmatprep.mubr.bf16.mxu0 0
  %269 = vmatmul.mubr.bf16.gmra.mrb[0].mxu0 %v226
  %v270 = vpop.f32.mrb[0].mxu0
  %v271 = vadd.f32 0.0, %v270
  %v272 = vpop.f32.mrb[0].mxu0
  %v273 = vpop.f32.mrb[0].mxu0
  %v274 = vadd.f32 0.0, %v273
  %v275 = vpop.f32.mrb[0].mxu0
  %276 = vdwg.mxu0
  %v277 = vadd.f32 %v186, %v263
  %v278 = vadd.f32 %v189, %v266
  %v279 = vadd.f32 %v194, %v271
  %v280 = vadd.f32 %v197, %v274
  %v281 = vld [vmem:[%s6] sm:$0x1]
  %v283 = vlaneseq
  %v284 = vshrl.u32 %v283, 7
  %v285 = vsub.s32 0, %v284
  %v286 = vrot.slane %v281, %v285
  %v288 = vadd.f32 %v277, %v286
  %v289 = vadd.f32 %v278, %v286
  %v290 = vadd.f32 %v279, %v286
  %v291 = vadd.f32 %v280, %v286
  %v292 = vmax.f32 %v288, 0.0
  %v293 = vmax.f32 %v289, 0.0
  %v294 = vmax.f32 %v290, 0.0
  %v295 = vmax.f32 %v291, 0.0
  %v296 = vld [vmem:[%s7] sm:$0xf]
  %v297 = vld [vmem:[%s7 + $0x4] sm:$0xf]
  %v298 = vld [vmem:[%s7 + $0x8] sm:$0xf]
  %v299 = vld [vmem:[%s7 + $0xc] sm:$0xf]
  %v300 = vld [vmem:[%s8] sm:$0x1]
  %v301 = vpack.c.bf16 %v293, %v292
  %v302 = vpack.c.bf16 %v295, %v294
  %v304 = vlaneseq
  %v305 = vshrl.u32 %v304, 7
  %v306 = vsub.s32 0, %v305
  %v307 = vrot.slane %v300, %v306
  %v313 = vunpack.c.l.b16 %v296
  %v314 = vunpack.c.l.b16 %v297
  %v315 = vunpack.c.l.b16 %v298
  %v316 = vunpack.c.l.b16 %v299
  %v317 = vpack.c.b16 %v314, %v313
  %v318 = vpack.c.b16 %v316, %v315
  %v322 = vsel %vm77, %v301, 0
  %v325 = vsel %vm77, %v302, 0
  %327 = vmatprep.subr.bf16.mxu0 0
  %328 = vmatpush1.bf16.msra.mxu0 %v317
  %329 = vmatprep.subr.bf16.mxu0 0
  %330 = vmatpush1.bf16.msra.mxu0 %v318
  %331 = vmatprep.subr.bf16.mxu0 0
  %332 = vmatpush1.bf16.msra.mxu0 0
  %333 = vmatprep.subr.bf16.mxu0 0
  %334 = vmatpush1.bf16.msra.mxu0 0
  %335 = vmatprep.subr.bf16.mxu0 0
  %336 = vmatpush1.bf16.msra.mxu0 0
  %337 = vmatprep.subr.bf16.mxu0 0
  %338 = vmatpush1.bf16.msra.mxu0 0
  %339 = vmatprep.subr.bf16.mxu0 0
  %340 = vmatpush1.bf16.msra.mxu0 0
  %341 = vmatprep.subr.bf16.mxu0 0
  %342 = vmatpush1.bf16.msra.mxu0 0
  %343 = vmatprep.subr.bf16.mxu0 0
  %344 = vmatpush1.bf16.msra.mxu0 0
  %345 = vmatprep.subr.bf16.mxu0 0
  %346 = vmatpush1.bf16.msra.mxu0 0
  %347 = vmatprep.subr.bf16.mxu0 0
  %348 = vmatpush1.bf16.msra.mxu0 0
  %349 = vmatprep.subr.bf16.mxu0 0
  %350 = vmatpush1.bf16.msra.mxu0 0
  %351 = vmatprep.subr.bf16.mxu0 0
  %352 = vmatpush1.bf16.msra.mxu0 0
  %353 = vmatprep.subr.bf16.mxu0 0
  %354 = vmatpush1.bf16.msra.mxu0 0
  %355 = vmatprep.subr.bf16.mxu0 0
  %356 = vmatpush1.bf16.msra.mxu0 0
  %357 = vmatprep.subr.bf16.mxu0 0
  %358 = vmatpush1.bf16.msra.mxu0 0
  %359 = vmatprep.mubr.bf16.mxu0 0
  %360 = vmatmul.mubr.bf16.gmra.mrb[0].mxu0 %v322
  %v361 = vpop.f32.mrb[0].mxu0
  %v362 = vadd.f32 %v307, %v361
  %v363 = vpop.f32.mrb[0].mxu0
  %v364 = vpop.f32.mrb[0].mxu0
  %v365 = vadd.f32 %v307, %v364
  %v366 = vpop.f32.mrb[0].mxu0
  %367 = vmatprep.mubr.bf16.mxu0 0
  %368 = vmatmul.mubr.bf16.gmra.mrb[0].mxu0 %v325
  %v369 = vpop.f32.mrb[0].mxu0
  %v370 = vadd.f32 %v307, %v369
  %v371 = vpop.f32.mrb[0].mxu0
  %v372 = vpop.f32.mrb[0].mxu0
  %v373 = vadd.f32 %v307, %v372
  %v374 = vpop.f32.mrb[0].mxu0
  %375 = vdwg.mxu0
  %v376 = vmax.f32 %v362, 0.0
  %v377 = vmax.f32 %v365, 0.0
  %v378 = vmax.f32 %v370, 0.0
  %v379 = vmax.f32 %v373, 0.0
  %v380 = vld [vmem:[%s9] sm:$0xf]
  %v381 = vld [vmem:[%s9 + $0x4] sm:$0xf]
  %v382 = vld [vmem:[%s9 + $0x8] sm:$0xf]
  %v383 = vld [vmem:[%s9 + $0xc] sm:$0xf]
  %v384 = vld [vmem:[%s10] sm:$0x1]
  %v385 = vpack.c.bf16 %v377, %v376
  %v386 = vpack.c.bf16 %v379, %v378
  %v388 = vlaneseq
  %v389 = vshrl.u32 %v388, 7
  %v390 = vsub.s32 0, %v389
  %v391 = vrot.slane %v384, %v390
  %v397 = vunpack.c.l.b16 %v380
  %v398 = vunpack.c.l.b16 %v381
  %v399 = vunpack.c.l.b16 %v382
  %v400 = vunpack.c.l.b16 %v383
  %v401 = vpack.c.b16 %v398, %v397
  %v402 = vpack.c.b16 %v400, %v399
  %v406 = vsel %vm77, %v385, 0
  %v409 = vsel %vm77, %v386, 0
  %411 = vmatprep.subr.bf16.mxu0 0
  %412 = vmatpush1.bf16.msra.mxu0 %v401
  %413 = vmatprep.subr.bf16.mxu0 0
  %414 = vmatpush1.bf16.msra.mxu0 %v402
  %415 = vmatprep.subr.bf16.mxu0 0
  %416 = vmatpush1.bf16.msra.mxu0 0
  %417 = vmatprep.subr.bf16.mxu0 0
  %418 = vmatpush1.bf16.msra.mxu0 0
  %419 = vmatprep.subr.bf16.mxu0 0
  %420 = vmatpush1.bf16.msra.mxu0 0
  %421 = vmatprep.subr.bf16.mxu0 0
  %422 = vmatpush1.bf16.msra.mxu0 0
  %423 = vmatprep.subr.bf16.mxu0 0
  %424 = vmatpush1.bf16.msra.mxu0 0
  %425 = vmatprep.subr.bf16.mxu0 0
  %426 = vmatpush1.bf16.msra.mxu0 0
  %427 = vmatprep.subr.bf16.mxu0 0
  %428 = vmatpush1.bf16.msra.mxu0 0
  %429 = vmatprep.subr.bf16.mxu0 0
  %430 = vmatpush1.bf16.msra.mxu0 0
  %431 = vmatprep.subr.bf16.mxu0 0
  %432 = vmatpush1.bf16.msra.mxu0 0
  %433 = vmatprep.subr.bf16.mxu0 0
  %434 = vmatpush1.bf16.msra.mxu0 0
  %435 = vmatprep.subr.bf16.mxu0 0
  %436 = vmatpush1.bf16.msra.mxu0 0
  %437 = vmatprep.subr.bf16.mxu0 0
  %438 = vmatpush1.bf16.msra.mxu0 0
  %439 = vmatprep.subr.bf16.mxu0 0
  %440 = vmatpush1.bf16.msra.mxu0 0
  %441 = vmatprep.subr.bf16.mxu0 0
  %442 = vmatpush1.bf16.msra.mxu0 0
  %443 = vmatprep.mubr.bf16.mxu0 0
  %444 = vmatmul.mubr.bf16.gmra.mrb[0].mxu0 %v406
  %v445 = vpop.f32.mrb[0].mxu0
  %v446 = vadd.f32 %v391, %v445
  %v447 = vpop.f32.mrb[0].mxu0
  %v448 = vpop.f32.mrb[0].mxu0
  %v449 = vadd.f32 %v391, %v448
  %v450 = vpop.f32.mrb[0].mxu0
  %451 = vmatprep.mubr.bf16.mxu0 0
  %452 = vmatmul.mubr.bf16.gmra.mrb[0].mxu0 %v409
  %v453 = vpop.f32.mrb[0].mxu0
  %v454 = vadd.f32 %v391, %v453
  %v455 = vpop.f32.mrb[0].mxu0
  %v456 = vpop.f32.mrb[0].mxu0
  %v457 = vadd.f32 %v391, %v456
  %v458 = vpop.f32.mrb[0].mxu0
  %459 = vdwg.mxu0
  %v460 = vld [vmem:[%s11] sm:$0x1]
  %v461 = vld [vmem:[%s12] sm:$0x1]
  %v462 = vsel %vm77, %v446, 0.0
  %463 = vadd.xlane.f32.xlu0 %v462
  %v464 = vpop.xlane.xlu0 %463
  %v465 = vsel %vm77, %v449, 0.0
  %466 = vadd.xlane.f32.xlu0 %v465
  %v467 = vpop.xlane.xlu0 %466
  %v468 = vsel %vm77, %v454, 0.0
  %469 = vadd.xlane.f32.xlu0 %v468
  %v470 = vpop.xlane.xlu0 %469
  %v471 = vsel %vm77, %v457, 0.0
  %472 = vadd.xlane.f32.xlu0 %v471
  %v473 = vpop.xlane.xlu0 %472
  %v474 = vrcp.pop 32.0
  %v475 = vmul.f32 %v464, %v474
  %v476 = vmul.f32 %v467, %v474
  %v477 = vmul.f32 %v470, %v474
  %v478 = vmul.f32 %v473, %v474
  %v479 = vsub.f32 %v446, %v475
  %v480 = vsub.f32 %v449, %v476
  %v481 = vsub.f32 %v454, %v477
  %v482 = vsub.f32 %v457, %v478
  %v483 = vmul.f32 %v479, %v479
  %v484 = vmul.f32 %v480, %v480
  %v485 = vmul.f32 %v481, %v481
  %v486 = vmul.f32 %v482, %v482
  %v487 = vsel %vm77, %v483, 0.0
  %488 = vadd.xlane.f32.xlu0 %v487
  %v489 = vpop.xlane.xlu0 %488
  %v490 = vsel %vm77, %v484, 0.0
  %491 = vadd.xlane.f32.xlu0 %v490
  %v492 = vpop.xlane.xlu0 %491
  %v493 = vsel %vm77, %v485, 0.0
  %494 = vadd.xlane.f32.xlu0 %v493
  %v495 = vpop.xlane.xlu0 %494
  %v496 = vsel %vm77, %v486, 0.0
  %497 = vadd.xlane.f32.xlu0 %v496
  %v498 = vpop.xlane.xlu0 %497
  %v499 = vmul.f32 %v489, %v474
  %v500 = vmul.f32 %v492, %v474
  %v501 = vmul.f32 %v495, %v474
  %v502 = vmul.f32 %v498, %v474
  %v503 = vadd.f32 %v499, 1e-05
  %v504 = vadd.f32 %v500, 1e-05
  %v505 = vadd.f32 %v501, 1e-05
  %v506 = vadd.f32 %v502, 1e-05
  %v507 = vrsqrt.pop %v503
  %v508 = vrsqrt.pop %v504
  %v509 = vrsqrt.pop %v505
  %v510 = vrsqrt.pop %v506
  %v511 = vmul.f32 %v479, %v507
  %v512 = vmul.f32 %v480, %v508
  %v513 = vmul.f32 %v481, %v509
  %v514 = vmul.f32 %v482, %v510
  %v516 = vlaneseq
  %v517 = vshrl.u32 %v516, 7
  %v518 = vsub.s32 0, %v517
  %v519 = vrot.slane %v460, %v518
  %v521 = vmul.f32 %v511, %v519
  %v522 = vmul.f32 %v512, %v519
  %v523 = vmul.f32 %v513, %v519
  %v524 = vmul.f32 %v514, %v519
  %v526 = vlaneseq
  %v527 = vshrl.u32 %v526, 7
  %v528 = vsub.s32 0, %v527
  %v529 = vrot.slane %v461, %v528
  %v531 = vadd.f32 %v521, %v529
  %v532 = vadd.f32 %v522, %v529
  %v533 = vadd.f32 %v523, %v529
  %v534 = vadd.f32 %v524, %v529
  %v535 = vadd.f32 %v531, %v204
  %v536 = vadd.f32 %v532, %v205
  %v537 = vadd.f32 %v533, %v206
  %v538 = vadd.f32 %v534, %v207
  %539 = vst.msk [vmem:[%s13] sm:$0xff] %vm77, %v535
  %540 = vst.msk [vmem:[%s13 + $0x8] sm:$0xff] %vm77, %v536
  %541 = vst.msk [vmem:[%s13 + $0x10] sm:$0xff] %vm77, %v537
  %542 = vst.msk [vmem:[%s13 + $0x18] sm:$0xff] %vm77, %v538
  // Predicated region
  $region54: #{meshgraphnet_forward.11} parent=0 // pred_check
    _
  $region55: #{meshgraphnet_forward.11} parent=0 // pred_check_branch
    %544 = sbr.rel (0) target = $region57
  $region56: #{meshgraphnet_forward.11} parent=0 // pred_region
    _
  $region57: #{meshgraphnet_forward.11} parent=0 // pred_fallthru
    _
  // Predicated region
  $region58: #{meshgraphnet_forward.11} parent=0 // pred_check
    _
  $region59: #{meshgraphnet_forward.11} parent=0 // pred_check_branch
    %546 = sbr.rel (0) target = $region61
  $region60: #{meshgraphnet_forward.11} parent=0 // pred_region
    _
  $region61: #{meshgraphnet_forward.11} parent=0 // pred_fallthru
    _

// kernel: meshgraphnet_forward.13
$region0: #{meshgraphnet_forward.13}
  #allocation0 [shape = 'u32[]', space=smem, size = 0x4, offset = 0x4, fixed_abs, tag = 'smem constant byte address 0x4 - core index']
  #allocation1 [shape = 'u32[144,128]{1,0:T(1,128)}', space=vmem, size = 0x12000, scoped, tag = 'internal scratch']
  %s0 = inlined_call_operand.vmem [shape: f32[16,32], index: 0, kind: input, shape index: {}]
  %s1 = inlined_call_operand.vmem [shape: f32[16,32], index: 1, kind: input, shape index: {}]
  %s2 = inlined_call_operand.vmem [shape: bf16[32,32], index: 2, kind: input, shape index: {}]
  %s3 = inlined_call_operand.vmem [shape: bf16[32,32], index: 3, kind: input, shape index: {}]
  %s4 = inlined_call_operand.vmem [shape: f32[1,32], index: 4, kind: input, shape index: {}]
  %s5 = inlined_call_operand.vmem [shape: bf16[32,32], index: 5, kind: input, shape index: {}]
  %s6 = inlined_call_operand.vmem [shape: f32[1,32], index: 6, kind: input, shape index: {}]
  %s7 = inlined_call_operand.vmem [shape: bf16[32,32], index: 7, kind: input, shape index: {}]
  %s8 = inlined_call_operand.vmem [shape: f32[1,32], index: 8, kind: input, shape index: {}]
  %s9 = inlined_call_operand.vmem [shape: f32[1,32], index: 9, kind: input, shape index: {}]
  %s10 = inlined_call_operand.vmem [shape: f32[1,32], index: 10, kind: input, shape index: {}]
  %s11 = inlined_call_operand.vmem [shape: f32[16,32], index: 11, kind: output, shape index: {}]
  %s12 = sld [smem:[#allocation0]]
  $region54: #{meshgraphnet_forward.13} parent=0
    _
  %s14 = ssub.s32 1, %s12
  %s15 = scalar_select 0, %s14, %s12
  // Predicated region
  $region2: #{meshgraphnet_forward.13} parent=0 // pred_check
    _
  $region3: #{meshgraphnet_forward.13} parent=0 // pred_check_branch
    %17 = sbr.rel (0) target = $region5
  $region4: #{meshgraphnet_forward.13} parent=0 // pred_region
    _
  $region5: #{meshgraphnet_forward.13} parent=0 // pred_fallthru
    _
  // Predicated region
  $region6: #{meshgraphnet_forward.13} parent=0 // pred_check
    _
  $region7: #{meshgraphnet_forward.13} parent=0 // pred_check_branch
    %19 = sbr.rel (0) target = $region9
  $region8: #{meshgraphnet_forward.13} parent=0 // pred_region
    _
  $region9: #{meshgraphnet_forward.13} parent=0 // pred_fallthru
    _
  // Predicated region
  $region10: #{meshgraphnet_forward.13} parent=0 // pred_check
    _
  $region11: #{meshgraphnet_forward.13} parent=0 // pred_check_branch
    %21 = sbr.rel (0) target = $region13
  $region12: #{meshgraphnet_forward.13} parent=0 // pred_region
    _
  $region13: #{meshgraphnet_forward.13} parent=0 // pred_fallthru
    _
  // Predicated region
  $region14: #{meshgraphnet_forward.13} parent=0 // pred_check
    _
  $region15: #{meshgraphnet_forward.13} parent=0 // pred_check_branch
    %23 = sbr.rel (0) target = $region17
  $region16: #{meshgraphnet_forward.13} parent=0 // pred_region
    _
  $region17: #{meshgraphnet_forward.13} parent=0 // pred_fallthru
    _
  // Predicated region
  $region18: #{meshgraphnet_forward.13} parent=0 // pred_check
    _
  $region19: #{meshgraphnet_forward.13} parent=0 // pred_check_branch
    %25 = sbr.rel (0) target = $region21
  $region20: #{meshgraphnet_forward.13} parent=0 // pred_region
    _
  $region21: #{meshgraphnet_forward.13} parent=0 // pred_fallthru
    _
  // Predicated region
  $region22: #{meshgraphnet_forward.13} parent=0 // pred_check
    _
  $region23: #{meshgraphnet_forward.13} parent=0 // pred_check_branch
    %27 = sbr.rel (0) target = $region25
  $region24: #{meshgraphnet_forward.13} parent=0 // pred_region
    _
  $region25: #{meshgraphnet_forward.13} parent=0 // pred_fallthru
    _
  // Predicated region
  $region26: #{meshgraphnet_forward.13} parent=0 // pred_check
    _
  $region27: #{meshgraphnet_forward.13} parent=0 // pred_check_branch
    %29 = sbr.rel (0) target = $region29
  $region28: #{meshgraphnet_forward.13} parent=0 // pred_region
    _
  $region29: #{meshgraphnet_forward.13} parent=0 // pred_fallthru
    _
  // Predicated region
  $region30: #{meshgraphnet_forward.13} parent=0 // pred_check
    _
  $region31: #{meshgraphnet_forward.13} parent=0 // pred_check_branch
    %31 = sbr.rel (0) target = $region33
  $region32: #{meshgraphnet_forward.13} parent=0 // pred_region
    _
  $region33: #{meshgraphnet_forward.13} parent=0 // pred_fallthru
    _
  // Predicated region
  $region34: #{meshgraphnet_forward.13} parent=0 // pred_check
    _
  $region35: #{meshgraphnet_forward.13} parent=0 // pred_check_branch
    %33 = sbr.rel (0) target = $region37
  $region36: #{meshgraphnet_forward.13} parent=0 // pred_region
    _
  $region37: #{meshgraphnet_forward.13} parent=0 // pred_fallthru
    _
  // Predicated region
  $region38: #{meshgraphnet_forward.13} parent=0 // pred_check
    _
  $region39: #{meshgraphnet_forward.13} parent=0 // pred_check_branch
    %35 = sbr.rel (0) target = $region41
  $region40: #{meshgraphnet_forward.13} parent=0 // pred_region
    _
  $region41: #{meshgraphnet_forward.13} parent=0 // pred_fallthru
    _
  // Predicated region
  $region42: #{meshgraphnet_forward.13} parent=0 // pred_check
    _
  $region43: #{meshgraphnet_forward.13} parent=0 // pred_check_branch
    %37 = sbr.rel (0) target = $region45
  $region44: #{meshgraphnet_forward.13} parent=0 // pred_region
    _
  $region45: #{meshgraphnet_forward.13} parent=0 // pred_fallthru
    _
  %v39 = vld [vmem:[%s2] sm:$0xf]
  %v40 = vld [vmem:[%s2 + $0x4] sm:$0xf]
  %v41 = vld [vmem:[%s2 + $0x8] sm:$0xf]
  %v42 = vld [vmem:[%s2 + $0xc] sm:$0xf]
  %v43 = vld [vmem:[%s0] sm:$0xff]
  %v44 = vld [vmem:[%s0 + $0x8] sm:$0xff]
  %v45 = vpack.c.bf16 %v44, %v43
  %v46 = vld [vmem:[%s3] sm:$0xf]
  %v47 = vld [vmem:[%s3 + $0x4] sm:$0xf]
  %v48 = vld [vmem:[%s3 + $0x8] sm:$0xf]
  %v49 = vld [vmem:[%s3 + $0xc] sm:$0xf]
  %v50 = vld [vmem:[%s1] sm:$0xff]
  %v51 = vld [vmem:[%s1 + $0x8] sm:$0xff]
  %v52 = vpack.c.bf16 %v51, %v50
  %v57 = vunpack.c.l.b16 %v46
  %v58 = vunpack.c.l.b16 %v47
  %v59 = vunpack.c.l.b16 %v48
  %v60 = vunpack.c.l.b16 %v49
  %v61 = vpack.c.b16 %v58, %v57
  %v62 = vpack.c.b16 %v60, %v59
  %vm65 = vcmask 261120
  %v67 = vsel %vm65, %v52, 0
  %69 = vmatprep.subr.bf16.mxu0 0
  %70 = vmatpush1.bf16.msra.mxu0 %v61
  %71 = vmatprep.subr.bf16.mxu0 0
  %72 = vmatpush1.bf16.msra.mxu0 %v62
  %73 = vmatprep.subr.bf16.mxu0 0
  %74 = vmatpush1.bf16.msra.mxu0 0
  %75 = vmatprep.subr.bf16.mxu0 0
  %76 = vmatpush1.bf16.msra.mxu0 0
  %77 = vmatprep.subr.bf16.mxu0 0
  %78 = vmatpush1.bf16.msra.mxu0 0
  %79 = vmatprep.subr.bf16.mxu0 0
  %80 = vmatpush1.bf16.msra.mxu0 0
  %81 = vmatprep.subr.bf16.mxu0 0
  %82 = vmatpush1.bf16.msra.mxu0 0
  %83 = vmatprep.subr.bf16.mxu0 0
  %84 = vmatpush1.bf16.msra.mxu0 0
  %85 = vmatprep.subr.bf16.mxu0 0
  %86 = vmatpush1.bf16.msra.mxu0 0
  %87 = vmatprep.subr.bf16.mxu0 0
  %88 = vmatpush1.bf16.msra.mxu0 0
  %89 = vmatprep.subr.bf16.mxu0 0
  %90 = vmatpush1.bf16.msra.mxu0 0
  %91 = vmatprep.subr.bf16.mxu0 0
  %92 = vmatpush1.bf16.msra.mxu0 0
  %93 = vmatprep.subr.bf16.mxu0 0
  %94 = vmatpush1.bf16.msra.mxu0 0
  %95 = vmatprep.subr.bf16.mxu0 0
  %96 = vmatpush1.bf16.msra.mxu0 0
  %97 = vmatprep.subr.bf16.mxu0 0
  %98 = vmatpush1.bf16.msra.mxu0 0
  %99 = vmatprep.subr.bf16.mxu0 0
  %100 = vmatpush1.bf16.msra.mxu0 0
  %101 = vmatprep.mubr.bf16.mxu0 0
  %102 = vmatmul.mubr.bf16.gmra.mrb[0].mxu0 %v67
  %v103 = vpop.f32.mrb[0].mxu0
  %v104 = vadd.f32 0.0, %v103
  %v105 = vpop.f32.mrb[0].mxu0
  %v106 = vpop.f32.mrb[0].mxu0
  %v107 = vadd.f32 0.0, %v106
  %v108 = vpop.f32.mrb[0].mxu0
  %109 = vdwg.mxu0
  %v114 = vunpack.c.l.b16 %v39
  %v115 = vunpack.c.l.b16 %v40
  %v116 = vunpack.c.l.b16 %v41
  %v117 = vunpack.c.l.b16 %v42
  %v118 = vpack.c.b16 %v115, %v114
  %v119 = vpack.c.b16 %v117, %v116
  %v123 = vsel %vm65, %v45, 0
  %125 = vmatprep.subr.bf16.mxu0 0
  %126 = vmatpush1.bf16.msra.mxu0 %v118
  %127 = vmatprep.subr.bf16.mxu0 0
  %128 = vmatpush1.bf16.msra.mxu0 %v119
  %129 = vmatprep.subr.bf16.mxu0 0
  %130 = vmatpush1.bf16.msra.mxu0 0
  %131 = vmatprep.subr.bf16.mxu0 0
  %132 = vmatpush1.bf16.msra.mxu0 0
  %133 = vmatprep.subr.bf16.mxu0 0
  %134 = vmatpush1.bf16.msra.mxu0 0
  %135 = vmatprep.subr.bf16.mxu0 0
  %136 = vmatpush1.bf16.msra.mxu0 0
  %137 = vmatprep.subr.bf16.mxu0 0
  %138 = vmatpush1.bf16.msra.mxu0 0
  %139 = vmatprep.subr.bf16.mxu0 0
  %140 = vmatpush1.bf16.msra.mxu0 0
  %141 = vmatprep.subr.bf16.mxu0 0
  %142 = vmatpush1.bf16.msra.mxu0 0
  %143 = vmatprep.subr.bf16.mxu0 0
  %144 = vmatpush1.bf16.msra.mxu0 0
  %145 = vmatprep.subr.bf16.mxu0 0
  %146 = vmatpush1.bf16.msra.mxu0 0
  %147 = vmatprep.subr.bf16.mxu0 0
  %148 = vmatpush1.bf16.msra.mxu0 0
  %149 = vmatprep.subr.bf16.mxu0 0
  %150 = vmatpush1.bf16.msra.mxu0 0
  %151 = vmatprep.subr.bf16.mxu0 0
  %152 = vmatpush1.bf16.msra.mxu0 0
  %153 = vmatprep.subr.bf16.mxu0 0
  %154 = vmatpush1.bf16.msra.mxu0 0
  %155 = vmatprep.subr.bf16.mxu0 0
  %156 = vmatpush1.bf16.msra.mxu0 0
  %157 = vmatprep.mubr.bf16.mxu0 0
  %158 = vmatmul.mubr.bf16.gmra.mrb[0].mxu0 %v123
  %v159 = vpop.f32.mrb[0].mxu0
  %v160 = vadd.f32 %v104, %v159
  %v161 = vpop.f32.mrb[0].mxu0
  %v162 = vpop.f32.mrb[0].mxu0
  %v163 = vadd.f32 %v107, %v162
  %v164 = vpop.f32.mrb[0].mxu0
  %165 = vdwg.mxu0
  %v166 = vld [vmem:[%s4] sm:$0x1]
  %v168 = vlaneseq
  %v169 = vshrl.u32 %v168, 7
  %v170 = vsub.s32 0, %v169
  %v171 = vrot.slane %v166, %v170
  %v173 = vadd.f32 %v160, %v171
  %v174 = vadd.f32 %v163, %v171
  %v175 = vmax.f32 %v173, 0.0
  %v176 = vmax.f32 %v174, 0.0
  %v177 = vld [vmem:[%s5] sm:$0xf]
  %v178 = vld [vmem:[%s5 + $0x4] sm:$0xf]
  %v179 = vld [vmem:[%s5 + $0x8] sm:$0xf]
  %v180 = vld [vmem:[%s5 + $0xc] sm:$0xf]
  %v181 = vld [vmem:[%s6] sm:$0x1]
  %v182 = vpack.c.bf16 %v176, %v175
  %v184 = vlaneseq
  %v185 = vshrl.u32 %v184, 7
  %v186 = vsub.s32 0, %v185
  %v187 = vrot.slane %v181, %v186
  %v193 = vunpack.c.l.b16 %v177
  %v194 = vunpack.c.l.b16 %v178
  %v195 = vunpack.c.l.b16 %v179
  %v196 = vunpack.c.l.b16 %v180
  %v197 = vpack.c.b16 %v194, %v193
  %v198 = vpack.c.b16 %v196, %v195
  %v202 = vsel %vm65, %v182, 0
  %204 = vmatprep.subr.bf16.mxu0 0
  %205 = vmatpush1.bf16.msra.mxu0 %v197
  %206 = vmatprep.subr.bf16.mxu0 0
  %207 = vmatpush1.bf16.msra.mxu0 %v198
  %208 = vmatprep.subr.bf16.mxu0 0
  %209 = vmatpush1.bf16.msra.mxu0 0
  %210 = vmatprep.subr.bf16.mxu0 0
  %211 = vmatpush1.bf16.msra.mxu0 0
  %212 = vmatprep.subr.bf16.mxu0 0
  %213 = vmatpush1.bf16.msra.mxu0 0
  %214 = vmatprep.subr.bf16.mxu0 0
  %215 = vmatpush1.bf16.msra.mxu0 0
  %216 = vmatprep.subr.bf16.mxu0 0
  %217 = vmatpush1.bf16.msra.mxu0 0
  %218 = vmatprep.subr.bf16.mxu0 0
  %219 = vmatpush1.bf16.msra.mxu0 0
  %220 = vmatprep.subr.bf16.mxu0 0
  %221 = vmatpush1.bf16.msra.mxu0 0
  %222 = vmatprep.subr.bf16.mxu0 0
  %223 = vmatpush1.bf16.msra.mxu0 0
  %224 = vmatprep.subr.bf16.mxu0 0
  %225 = vmatpush1.bf16.msra.mxu0 0
  %226 = vmatprep.subr.bf16.mxu0 0
  %227 = vmatpush1.bf16.msra.mxu0 0
  %228 = vmatprep.subr.bf16.mxu0 0
  %229 = vmatpush1.bf16.msra.mxu0 0
  %230 = vmatprep.subr.bf16.mxu0 0
  %231 = vmatpush1.bf16.msra.mxu0 0
  %232 = vmatprep.subr.bf16.mxu0 0
  %233 = vmatpush1.bf16.msra.mxu0 0
  %234 = vmatprep.subr.bf16.mxu0 0
  %235 = vmatpush1.bf16.msra.mxu0 0
  %236 = vmatprep.mubr.bf16.mxu0 0
  %237 = vmatmul.mubr.bf16.gmra.mrb[0].mxu0 %v202
  %v238 = vpop.f32.mrb[0].mxu0
  %v239 = vadd.f32 %v187, %v238
  %v240 = vpop.f32.mrb[0].mxu0
  %v241 = vpop.f32.mrb[0].mxu0
  %v242 = vadd.f32 %v187, %v241
  %v243 = vpop.f32.mrb[0].mxu0
  %244 = vdwg.mxu0
  %v245 = vmax.f32 %v239, 0.0
  %v246 = vmax.f32 %v242, 0.0
  %v247 = vld [vmem:[%s7] sm:$0xf]
  %v248 = vld [vmem:[%s7 + $0x4] sm:$0xf]
  %v249 = vld [vmem:[%s7 + $0x8] sm:$0xf]
  %v250 = vld [vmem:[%s7 + $0xc] sm:$0xf]
  %v251 = vld [vmem:[%s8] sm:$0x1]
  %v252 = vpack.c.bf16 %v246, %v245
  %v254 = vlaneseq
  %v255 = vshrl.u32 %v254, 7
  %v256 = vsub.s32 0, %v255
  %v257 = vrot.slane %v251, %v256
  %v263 = vunpack.c.l.b16 %v247
  %v264 = vunpack.c.l.b16 %v248
  %v265 = vunpack.c.l.b16 %v249
  %v266 = vunpack.c.l.b16 %v250
  %v267 = vpack.c.b16 %v264, %v263
  %v268 = vpack.c.b16 %v266, %v265
  %v272 = vsel %vm65, %v252, 0
  %274 = vmatprep.subr.bf16.mxu0 0
  %275 = vmatpush1.bf16.msra.mxu0 %v267
  %276 = vmatprep.subr.bf16.mxu0 0
  %277 = vmatpush1.bf16.msra.mxu0 %v268
  %278 = vmatprep.subr.bf16.mxu0 0
  %279 = vmatpush1.bf16.msra.mxu0 0
  %280 = vmatprep.subr.bf16.mxu0 0
  %281 = vmatpush1.bf16.msra.mxu0 0
  %282 = vmatprep.subr.bf16.mxu0 0
  %283 = vmatpush1.bf16.msra.mxu0 0
  %284 = vmatprep.subr.bf16.mxu0 0
  %285 = vmatpush1.bf16.msra.mxu0 0
  %286 = vmatprep.subr.bf16.mxu0 0
  %287 = vmatpush1.bf16.msra.mxu0 0
  %288 = vmatprep.subr.bf16.mxu0 0
  %289 = vmatpush1.bf16.msra.mxu0 0
  %290 = vmatprep.subr.bf16.mxu0 0
  %291 = vmatpush1.bf16.msra.mxu0 0
  %292 = vmatprep.subr.bf16.mxu0 0
  %293 = vmatpush1.bf16.msra.mxu0 0
  %294 = vmatprep.subr.bf16.mxu0 0
  %295 = vmatpush1.bf16.msra.mxu0 0
  %296 = vmatprep.subr.bf16.mxu0 0
  %297 = vmatpush1.bf16.msra.mxu0 0
  %298 = vmatprep.subr.bf16.mxu0 0
  %299 = vmatpush1.bf16.msra.mxu0 0
  %300 = vmatprep.subr.bf16.mxu0 0
  %301 = vmatpush1.bf16.msra.mxu0 0
  %302 = vmatprep.subr.bf16.mxu0 0
  %303 = vmatpush1.bf16.msra.mxu0 0
  %304 = vmatprep.subr.bf16.mxu0 0
  %305 = vmatpush1.bf16.msra.mxu0 0
  %306 = vmatprep.mubr.bf16.mxu0 0
  %307 = vmatmul.mubr.bf16.gmra.mrb[0].mxu0 %v272
  %v308 = vpop.f32.mrb[0].mxu0
  %v309 = vadd.f32 %v257, %v308
  %v310 = vpop.f32.mrb[0].mxu0
  %v311 = vpop.f32.mrb[0].mxu0
  %v312 = vadd.f32 %v257, %v311
  %v313 = vpop.f32.mrb[0].mxu0
  %314 = vdwg.mxu0
  %v315 = vld [vmem:[%s9] sm:$0x1]
  %v316 = vld [vmem:[%s10] sm:$0x1]
  %v317 = vsel %vm65, %v309, 0.0
  %318 = vadd.xlane.f32.xlu0 %v317
  %v319 = vpop.xlane.xlu0 %318
  %v320 = vsel %vm65, %v312, 0.0
  %321 = vadd.xlane.f32.xlu0 %v320
  %v322 = vpop.xlane.xlu0 %321
  %v323 = vrcp.pop 32.0
  %v324 = vmul.f32 %v319, %v323
  %v325 = vmul.f32 %v322, %v323
  %v326 = vsub.f32 %v309, %v324
  %v327 = vsub.f32 %v312, %v325
  %v328 = vmul.f32 %v326, %v326
  %v329 = vmul.f32 %v327, %v327
  %v330 = vsel %vm65, %v328, 0.0
  %331 = vadd.xlane.f32.xlu0 %v330
  %v332 = vpop.xlane.xlu0 %331
  %v333 = vsel %vm65, %v329, 0.0
  %334 = vadd.xlane.f32.xlu0 %v333
  %v335 = vpop.xlane.xlu0 %334
  %v336 = vmul.f32 %v332, %v323
  %v337 = vmul.f32 %v335, %v323
  %v338 = vadd.f32 %v336, 1e-05
  %v339 = vadd.f32 %v337, 1e-05
  %v340 = vrsqrt.pop %v338
  %v341 = vrsqrt.pop %v339
  %v342 = vmul.f32 %v326, %v340
  %v343 = vmul.f32 %v327, %v341
  %v345 = vlaneseq
  %v346 = vshrl.u32 %v345, 7
  %v347 = vsub.s32 0, %v346
  %v348 = vrot.slane %v315, %v347
  %v350 = vmul.f32 %v342, %v348
  %v351 = vmul.f32 %v343, %v348
  %v353 = vlaneseq
  %v354 = vshrl.u32 %v353, 7
  %v355 = vsub.s32 0, %v354
  %v356 = vrot.slane %v316, %v355
  %v358 = vadd.f32 %v350, %v356
  %v359 = vadd.f32 %v351, %v356
  %v360 = vadd.f32 %v358, %v43
  %v361 = vadd.f32 %v359, %v44
  %362 = vst.msk [vmem:[%s11] sm:$0xff] %vm65, %v360
  %363 = vst.msk [vmem:[%s11 + $0x8] sm:$0xff] %vm65, %v361
  // Predicated region
  $region46: #{meshgraphnet_forward.13} parent=0 // pred_check
    _
  $region47: #{meshgraphnet_forward.13} parent=0 // pred_check_branch
    %365 = sbr.rel (0) target = $region49
  $region48: #{meshgraphnet_forward.13} parent=0 // pred_region
    _
  $region49: #{meshgraphnet_forward.13} parent=0 // pred_fallthru
    _
  // Predicated region
  $region50: #{meshgraphnet_forward.13} parent=0 // pred_check
    _
  $region51: #{meshgraphnet_forward.13} parent=0 // pred_check_branch
    %367 = sbr.rel (0) target = $region53
  $region52: #{meshgraphnet_forward.13} parent=0 // pred_region
    _
  $region53: #{meshgraphnet_forward.13} parent=0 // pred_fallthru
    _

// kernel: meshgraphnet_forward.17
$region0: #{meshgraphnet_forward.17}
  #allocation0 [shape = 'u32[]', space=smem, size = 0x4, offset = 0x4, fixed_abs, tag = 'smem constant byte address 0x4 - core index']
  #allocation1 [shape = 'u32[144,128]{1,0:T(1,128)}', space=vmem, size = 0x12000, scoped, tag = 'internal scratch']
  %s0 = inlined_call_operand.vmem [shape: f32[16,32], index: 0, kind: input, shape index: {}]
  %s1 = inlined_call_operand.vmem [shape: bf16[32,32], index: 1, kind: input, shape index: {}]
  %s2 = inlined_call_operand.vmem [shape: f32[1,32], index: 2, kind: input, shape index: {}]
  %s3 = inlined_call_operand.vmem [shape: bf16[32,32], index: 3, kind: input, shape index: {}]
  %s4 = inlined_call_operand.vmem [shape: f32[1,32], index: 4, kind: input, shape index: {}]
  %s5 = inlined_call_operand.vmem [shape: bf16[32,3], index: 5, kind: input, shape index: {}]
  %s6 = inlined_call_operand.vmem [shape: f32[1,3], index: 6, kind: input, shape index: {}]
  %s7 = inlined_call_operand.vmem [shape: f32[16,3], index: 7, kind: output, shape index: {}]
  %s8 = sld [smem:[#allocation0]]
  $region38: #{meshgraphnet_forward.17} parent=0
    _
  %s10 = ssub.s32 1, %s8
  %s11 = scalar_select 0, %s10, %s8
  // Predicated region
  $region2: #{meshgraphnet_forward.17} parent=0 // pred_check
    _
  $region3: #{meshgraphnet_forward.17} parent=0 // pred_check_branch
    %13 = sbr.rel (0) target = $region5
  $region4: #{meshgraphnet_forward.17} parent=0 // pred_region
    _
  $region5: #{meshgraphnet_forward.17} parent=0 // pred_fallthru
    _
  // Predicated region
  $region6: #{meshgraphnet_forward.17} parent=0 // pred_check
    _
  $region7: #{meshgraphnet_forward.17} parent=0 // pred_check_branch
    %15 = sbr.rel (0) target = $region9
  $region8: #{meshgraphnet_forward.17} parent=0 // pred_region
    _
  $region9: #{meshgraphnet_forward.17} parent=0 // pred_fallthru
    _
  // Predicated region
  $region10: #{meshgraphnet_forward.17} parent=0 // pred_check
    _
  $region11: #{meshgraphnet_forward.17} parent=0 // pred_check_branch
    %17 = sbr.rel (0) target = $region13
  $region12: #{meshgraphnet_forward.17} parent=0 // pred_region
    _
  $region13: #{meshgraphnet_forward.17} parent=0 // pred_fallthru
    _
  // Predicated region
  $region14: #{meshgraphnet_forward.17} parent=0 // pred_check
    _
  $region15: #{meshgraphnet_forward.17} parent=0 // pred_check_branch
    %19 = sbr.rel (0) target = $region17
  $region16: #{meshgraphnet_forward.17} parent=0 // pred_region
    _
  $region17: #{meshgraphnet_forward.17} parent=0 // pred_fallthru
    _
  // Predicated region
  $region18: #{meshgraphnet_forward.17} parent=0 // pred_check
    _
  $region19: #{meshgraphnet_forward.17} parent=0 // pred_check_branch
    %21 = sbr.rel (0) target = $region21
  $region20: #{meshgraphnet_forward.17} parent=0 // pred_region
    _
  $region21: #{meshgraphnet_forward.17} parent=0 // pred_fallthru
    _
  // Predicated region
  $region22: #{meshgraphnet_forward.17} parent=0 // pred_check
    _
  $region23: #{meshgraphnet_forward.17} parent=0 // pred_check_branch
    %23 = sbr.rel (0) target = $region25
  $region24: #{meshgraphnet_forward.17} parent=0 // pred_region
    _
  $region25: #{meshgraphnet_forward.17} parent=0 // pred_fallthru
    _
  // Predicated region
  $region26: #{meshgraphnet_forward.17} parent=0 // pred_check
    _
  $region27: #{meshgraphnet_forward.17} parent=0 // pred_check_branch
    %25 = sbr.rel (0) target = $region29
  $region28: #{meshgraphnet_forward.17} parent=0 // pred_region
    _
  $region29: #{meshgraphnet_forward.17} parent=0 // pred_fallthru
    _
  %v27 = vld [vmem:[%s1] sm:$0xf]
  %v28 = vld [vmem:[%s1 + $0x4] sm:$0xf]
  %v29 = vld [vmem:[%s1 + $0x8] sm:$0xf]
  %v30 = vld [vmem:[%s1 + $0xc] sm:$0xf]
  %v31 = vld [vmem:[%s0] sm:$0xff]
  %v32 = vld [vmem:[%s0 + $0x8] sm:$0xff]
  %v33 = vpack.c.bf16 %v32, %v31
  %v34 = vld [vmem:[%s2] sm:$0x1]
  %v36 = vlaneseq
  %v37 = vshrl.u32 %v36, 7
  %v38 = vsub.s32 0, %v37
  %v39 = vrot.slane %v34, %v38
  %v45 = vunpack.c.l.b16 %v27
  %v46 = vunpack.c.l.b16 %v28
  %v47 = vunpack.c.l.b16 %v29
  %v48 = vunpack.c.l.b16 %v30
  %v49 = vpack.c.b16 %v46, %v45
  %v50 = vpack.c.b16 %v48, %v47
  %vm53 = vcmask 261120
  %v55 = vsel %vm53, %v33, 0
  %57 = vmatprep.subr.bf16.mxu0 0
  %58 = vmatpush1.bf16.msra.mxu0 %v49
  %59 = vmatprep.subr.bf16.mxu0 0
  %60 = vmatpush1.bf16.msra.mxu0 %v50
  %61 = vmatprep.subr.bf16.mxu0 0
  %62 = vmatpush1.bf16.msra.mxu0 0
  %63 = vmatprep.subr.bf16.mxu0 0
  %64 = vmatpush1.bf16.msra.mxu0 0
  %65 = vmatprep.subr.bf16.mxu0 0
  %66 = vmatpush1.bf16.msra.mxu0 0
  %67 = vmatprep.subr.bf16.mxu0 0
  %68 = vmatpush1.bf16.msra.mxu0 0
  %69 = vmatprep.subr.bf16.mxu0 0
  %70 = vmatpush1.bf16.msra.mxu0 0
  %71 = vmatprep.subr.bf16.mxu0 0
  %72 = vmatpush1.bf16.msra.mxu0 0
  %73 = vmatprep.subr.bf16.mxu0 0
  %74 = vmatpush1.bf16.msra.mxu0 0
  %75 = vmatprep.subr.bf16.mxu0 0
  %76 = vmatpush1.bf16.msra.mxu0 0
  %77 = vmatprep.subr.bf16.mxu0 0
  %78 = vmatpush1.bf16.msra.mxu0 0
  %79 = vmatprep.subr.bf16.mxu0 0
  %80 = vmatpush1.bf16.msra.mxu0 0
  %81 = vmatprep.subr.bf16.mxu0 0
  %82 = vmatpush1.bf16.msra.mxu0 0
  %83 = vmatprep.subr.bf16.mxu0 0
  %84 = vmatpush1.bf16.msra.mxu0 0
  %85 = vmatprep.subr.bf16.mxu0 0
  %86 = vmatpush1.bf16.msra.mxu0 0
  %87 = vmatprep.subr.bf16.mxu0 0
  %88 = vmatpush1.bf16.msra.mxu0 0
  %89 = vmatprep.mubr.bf16.mxu0 0
  %90 = vmatmul.mubr.bf16.gmra.mrb[0].mxu0 %v55
  %v91 = vpop.f32.mrb[0].mxu0
  %v92 = vadd.f32 %v39, %v91
  %v93 = vpop.f32.mrb[0].mxu0
  %v94 = vpop.f32.mrb[0].mxu0
  %v95 = vadd.f32 %v39, %v94
  %v96 = vpop.f32.mrb[0].mxu0
  %97 = vdwg.mxu0
  %v98 = vmax.f32 %v92, 0.0
  %v99 = vmax.f32 %v95, 0.0
  %v100 = vld [vmem:[%s3] sm:$0xf]
  %v101 = vld [vmem:[%s3 + $0x4] sm:$0xf]
  %v102 = vld [vmem:[%s3 + $0x8] sm:$0xf]
  %v103 = vld [vmem:[%s3 + $0xc] sm:$0xf]
  %v104 = vld [vmem:[%s4] sm:$0x1]
  %v105 = vpack.c.bf16 %v99, %v98
  %v107 = vlaneseq
  %v108 = vshrl.u32 %v107, 7
  %v109 = vsub.s32 0, %v108
  %v110 = vrot.slane %v104, %v109
  %v116 = vunpack.c.l.b16 %v100
  %v117 = vunpack.c.l.b16 %v101
  %v118 = vunpack.c.l.b16 %v102
  %v119 = vunpack.c.l.b16 %v103
  %v120 = vpack.c.b16 %v117, %v116
  %v121 = vpack.c.b16 %v119, %v118
  %v125 = vsel %vm53, %v105, 0
  %127 = vmatprep.subr.bf16.mxu0 0
  %128 = vmatpush1.bf16.msra.mxu0 %v120
  %129 = vmatprep.subr.bf16.mxu0 0
  %130 = vmatpush1.bf16.msra.mxu0 %v121
  %131 = vmatprep.subr.bf16.mxu0 0
  %132 = vmatpush1.bf16.msra.mxu0 0
  %133 = vmatprep.subr.bf16.mxu0 0
  %134 = vmatpush1.bf16.msra.mxu0 0
  %135 = vmatprep.subr.bf16.mxu0 0
  %136 = vmatpush1.bf16.msra.mxu0 0
  %137 = vmatprep.subr.bf16.mxu0 0
  %138 = vmatpush1.bf16.msra.mxu0 0
  %139 = vmatprep.subr.bf16.mxu0 0
  %140 = vmatpush1.bf16.msra.mxu0 0
  %141 = vmatprep.subr.bf16.mxu0 0
  %142 = vmatpush1.bf16.msra.mxu0 0
  %143 = vmatprep.subr.bf16.mxu0 0
  %144 = vmatpush1.bf16.msra.mxu0 0
  %145 = vmatprep.subr.bf16.mxu0 0
  %146 = vmatpush1.bf16.msra.mxu0 0
  %147 = vmatprep.subr.bf16.mxu0 0
  %148 = vmatpush1.bf16.msra.mxu0 0
  %149 = vmatprep.subr.bf16.mxu0 0
  %150 = vmatpush1.bf16.msra.mxu0 0
  %151 = vmatprep.subr.bf16.mxu0 0
  %152 = vmatpush1.bf16.msra.mxu0 0
  %153 = vmatprep.subr.bf16.mxu0 0
  %154 = vmatpush1.bf16.msra.mxu0 0
  %155 = vmatprep.subr.bf16.mxu0 0
  %156 = vmatpush1.bf16.msra.mxu0 0
  %157 = vmatprep.subr.bf16.mxu0 0
  %158 = vmatpush1.bf16.msra.mxu0 0
  %159 = vmatprep.mubr.bf16.mxu0 0
  %160 = vmatmul.mubr.bf16.gmra.mrb[0].mxu0 %v125
  %v161 = vpop.f32.mrb[0].mxu0
  %v162 = vadd.f32 %v110, %v161
  %v163 = vpop.f32.mrb[0].mxu0
  %v164 = vpop.f32.mrb[0].mxu0
  %v165 = vadd.f32 %v110, %v164
  %v166 = vpop.f32.mrb[0].mxu0
  %167 = vdwg.mxu0
  %v168 = vmax.f32 %v162, 0.0
  %v169 = vmax.f32 %v165, 0.0
  %v170 = vld [vmem:[%s5] sm:$0xf]
  %v171 = vld [vmem:[%s5 + $0x4] sm:$0xf]
  %v172 = vld [vmem:[%s5 + $0x8] sm:$0xf]
  %v173 = vld [vmem:[%s5 + $0xc] sm:$0xf]
  %v174 = vld [vmem:[%s6] sm:$0x1]
  %v175 = vpack.c.bf16 %v169, %v168
  %v177 = vlaneseq
  %v178 = vshrl.u32 %v177, 7
  %v179 = vsub.s32 0, %v178
  %v180 = vrot.slane %v174, %v179
  %v186 = vunpack.c.l.b16 %v170
  %v187 = vunpack.c.l.b16 %v171
  %v188 = vunpack.c.l.b16 %v172
  %v189 = vunpack.c.l.b16 %v173
  %v190 = vpack.c.b16 %v187, %v186
  %v191 = vpack.c.b16 %v189, %v188
  %v195 = vsel %vm53, %v175, 0
  %197 = vmatprep.subr.bf16.mxu0 0
  %198 = vmatpush1.bf16.msra.mxu0 %v190
  %199 = vmatprep.subr.bf16.mxu0 0
  %200 = vmatpush1.bf16.msra.mxu0 %v191
  %201 = vmatprep.subr.bf16.mxu0 0
  %202 = vmatpush1.bf16.msra.mxu0 0
  %203 = vmatprep.subr.bf16.mxu0 0
  %204 = vmatpush1.bf16.msra.mxu0 0
  %205 = vmatprep.subr.bf16.mxu0 0
  %206 = vmatpush1.bf16.msra.mxu0 0
  %207 = vmatprep.subr.bf16.mxu0 0
  %208 = vmatpush1.bf16.msra.mxu0 0
  %209 = vmatprep.subr.bf16.mxu0 0
  %210 = vmatpush1.bf16.msra.mxu0 0
  %211 = vmatprep.subr.bf16.mxu0 0
  %212 = vmatpush1.bf16.msra.mxu0 0
  %213 = vmatprep.subr.bf16.mxu0 0
  %214 = vmatpush1.bf16.msra.mxu0 0
  %215 = vmatprep.subr.bf16.mxu0 0
  %216 = vmatpush1.bf16.msra.mxu0 0
  %217 = vmatprep.subr.bf16.mxu0 0
  %218 = vmatpush1.bf16.msra.mxu0 0
  %219 = vmatprep.subr.bf16.mxu0 0
  %220 = vmatpush1.bf16.msra.mxu0 0
  %221 = vmatprep.subr.bf16.mxu0 0
  %222 = vmatpush1.bf16.msra.mxu0 0
  %223 = vmatprep.subr.bf16.mxu0 0
  %224 = vmatpush1.bf16.msra.mxu0 0
  %225 = vmatprep.subr.bf16.mxu0 0
  %226 = vmatpush1.bf16.msra.mxu0 0
  %227 = vmatprep.subr.bf16.mxu0 0
  %228 = vmatpush1.bf16.msra.mxu0 0
  %229 = vmatprep.mubr.bf16.mxu0 0
  %230 = vmatmul.mubr.bf16.gmra.mrb[0].mxu0 %v195
  %v231 = vpop.f32.mrb[0].mxu0
  %v232 = vadd.f32 %v180, %v231
  %v233 = vpop.f32.mrb[0].mxu0
  %v234 = vpop.f32.mrb[0].mxu0
  %v235 = vadd.f32 %v180, %v234
  %v236 = vpop.f32.mrb[0].mxu0
  %237 = vdwg.mxu0
  %vm238 = vcmask 23552
  %239 = vst.msk [vmem:[%s7] sm:$0xff] %vm238, %v232
  %240 = vst.msk [vmem:[%s7 + $0x8] sm:$0xff] %vm238, %v235
  // Predicated region
  $region30: #{meshgraphnet_forward.17} parent=0 // pred_check
    _
  $region31: #{meshgraphnet_forward.17} parent=0 // pred_check_branch
    %242 = sbr.rel (0) target = $region33
  $region32: #{meshgraphnet_forward.17} parent=0 // pred_region
    _
  $region33: #{meshgraphnet_forward.17} parent=0 // pred_fallthru
    _
  // Predicated region
  $region34: #{meshgraphnet_forward.17} parent=0 // pred_check
    _
  $region35: #{meshgraphnet_forward.17} parent=0 // pred_check_branch
    %244 = sbr.rel (0) target = $region37
  $region36: #{meshgraphnet_forward.17} parent=0 // pred_region
    _
  $region37: #{meshgraphnet_forward.17} parent=0 // pred_fallthru
    _

</llo_original>
